<compile_context>
chip_gen: v7x
topology: tpu7x:2x2x1
jax: 0.10.0
libtpu: 0.0.40
codegen_flags: <defaults>
</compile_context>

<pallas_src>
import math
from functools import partial

import jax
import jax.numpy as jnp
from jax.experimental import pallas as pl
from jax.experimental.pallas import tpu as pltpu


def _make_fused_kernel(S, H, D, scale):
    """grid=(B, nT). t==0: Q/K in-proj + per-head softmax + head mean -> scratch.
    every t: weighted sum over the image set for this (batch, token-tile)."""

    def kernel(q_ref, kv_ref, wq_ref, bq_ref, wk_ref, bk_ref, hmt_ref, img_ref,
               attn_ref, out_ref, w_sd):
        # q_ref   (1, 1, D)      question pooled vector of batch b
        # kv_ref  (1, S, D)      image pooled vectors of batch b
        # wq/wk   (D, D)         untransposed in-proj weights (resident across grid)
        # bq/bk   (1, D)
        # hmt_ref (H, D)         head mask: hmt[h, d] = 1 iff feature d belongs to head h
        # img_ref (1, S, T_TILE, D)
        # attn_ref (1, S, 1)     head-averaged attention weights (written at t==0)
        # out_ref  (1, T_TILE, D)
        # w_sd     (S, D) f32 VMEM scratch: attention weight of image s, lane-broadcast
        t = pl.program_id(1)

        @pl.when(t == 0)
        def _():
            # x @ W^T without materializing W^T (contract dim 1 of both operands).
            dn = (((1,), (1,)), ((), ()))
            qp = jax.lax.dot_general(q_ref[0], wq_ref[...], dn,
                                     preferred_element_type=jnp.float32) + bq_ref[...]   # (1, D)
            kp = jax.lax.dot_general(kv_ref[0], wk_ref[...], dn,
                                     preferred_element_type=jnp.float32) + bk_ref[...]   # (S, D)
            # fold q into the head mask: qh[h, d] = q[d] if feature d is in head h
            qh = hmt_ref[...] * qp                                                        # (H, D)
            # per-head scaled dot products, image-set axis on sublanes:
            # scores[s, h] = (1/sqrt(dh)) * sum_{d in head h} q[d] * k[s, d]
            scores = jax.lax.dot_general(kp, qh, dn,
                                         preferred_element_type=jnp.float32) * scale     # (S, H)
            # softmax over the image-set axis, per head
            m = jnp.max(scores, axis=0, keepdims=True)                                    # (1, H)
            e = jnp.exp(scores - m)
            w = e / jnp.sum(e, axis=0, keepdims=True)                                     # (S, H)
            # PyTorch default: average attention weights over heads
            a = jnp.mean(w, axis=1, keepdims=True)                                        # (S, 1)
            attn_ref[0] = a
            # lane-broadcast per-image weights for the fusion passes of this batch
            w_sd[...] = jnp.broadcast_to(a, (S, D))

        # weighted fusion of this token tile: out = sum_s attn[s] * images[s]
        # (single expression -> no VMEM-resident accumulator round-trips)
        acc = img_ref[0, 0].astype(jnp.float32) * w_sd[0:1, :]
        for s in range(1, S):   # S is tiny & static -> unrolled
            acc = acc + img_ref[0, s].astype(jnp.float32) * w_sd[s:s + 1, :]
        out_ref[0] = acc.astype(out_ref.dtype)

    return kernel


@partial(jax.jit, static_argnames=("num_heads", "t_tile"))
def image_set_question_attention(question_vec, image_vectors, images,
                                 wq, bq, wk, bk, num_heads, t_tile=64):
    """Returns (attn_scores (B,1,S), image_set (B,T,D)) — the module's fusion output.

    # TODO(synk): the ViT / BERT backbones producing these features and the final
    # ViltForQuestionAnswering head are pretrained transformers with no clean
    # single-kernel Pallas equivalent; they are modeled as inputs / omitted.
    """
    B, S, T, D = images.shape
    H = num_heads
    dh = D // H
    scale = 1.0 / math.sqrt(dh)
    n_t = pl.cdiv(T, t_tile)          # ragged last tile handled by Pallas edge masking

    q3 = question_vec.reshape(B, 1, D)
    bq2 = bq.reshape(1, D)
    bk2 = bk.reshape(1, D)
    # head mask: hmt[h, d] = 1 if feature d belongs to head h
    hmt = (jnp.arange(H)[:, None] == (jnp.arange(D)[None, :] // dh)).astype(jnp.float32)

    attn_bs1, image_set = pl.pallas_call(
        _make_fused_kernel(S, H, D, scale),
        grid=(B, n_t),
        in_specs=[
            pl.BlockSpec((1, 1, D), lambda b, t: (b, 0, 0)),          # question vector
            pl.BlockSpec((1, S, D), lambda b, t: (b, 0, 0)),          # image pooled vectors
            pl.BlockSpec((D, D), lambda b, t: (0, 0)),                # Wq (untransposed, resident)
            pl.BlockSpec((1, D), lambda b, t: (0, 0)),                # bq
            pl.BlockSpec((D, D), lambda b, t: (0, 0)),                # Wk (untransposed, resident)
            pl.BlockSpec((1, D), lambda b, t: (0, 0)),                # bk
            pl.BlockSpec((H, D), lambda b, t: (0, 0)),                # head mask
            pl.BlockSpec((1, S, t_tile, D), lambda b, t: (b, 0, t, 0)),   # token-tile of all S images
        ],
        out_specs=[
            pl.BlockSpec((1, S, 1), lambda b, t: (b, 0, 0)),          # attn weights (per batch)
            pl.BlockSpec((1, t_tile, D), lambda b, t: (b, t, 0)),     # fused token tile
        ],
        out_shape=[
            jax.ShapeDtypeStruct((B, S, 1), jnp.float32),
            jax.ShapeDtypeStruct((B, T, D), images.dtype),
        ],
        scratch_shapes=[pltpu.VMEM((S, D), jnp.float32)],             # per-batch attn weights
        compiler_params=pltpu.CompilerParams(
            # B across TensorCores (v7x); T stays sequential per batch because the
            # attention scratch / resident attn block are written at t==0 and reused.
            dimension_semantics=("parallel", "arbitrary"),
            # measured need ~12 MiB (weights double-buffered 9.4 + tiles ~2.3);
            # 24 MiB fits every generation's VMEM with headroom.
            vmem_limit_bytes=24 * 1024 * 1024,
        ),
    )(q3, image_vectors, wq, bq2, wk, bk2, hmt, images)

    attn_scores = jnp.transpose(attn_bs1, (0, 2, 1))   # (B, 1, S), like PyTorch MHA weights
    return attn_scores, image_set


def _reference(question_vec, image_vectors, images, wq, bq, wk, bk, num_heads):
    B, S, T, D = images.shape
    H = num_heads
    dh = D // H
    q = question_vec @ wq.T + bq                               # (B, D)
    k = jnp.einsum('bsd,ed->bse', image_vectors, wk) + bk      # (B, S, D)
    qh = q.reshape(B, 1, H, dh)
    kh = k.reshape(B, S, H, dh)
    scores = jnp.einsum('bqhd,bkhd->bhqk', qh, kh) / math.sqrt(dh)   # (B, H, 1, S)
    w = jax.nn.softmax(scores, axis=-1)
    attn = jnp.mean(w, axis=1)                                 # (B, 1, S)
    image_set = jnp.einsum('bs,bstd->btd', attn[:, 0, :], images)
    return attn, image_set


if __name__ == "__main__":
    # Small, deterministic setup consistent with the module's fixed dims
    # (embed_dim=768, num_heads=12, 197 ViT tokens), batch=2, set_size=4.
    B, S, T, D, H = 2, 4, 197, 768, 12

    key = jax.random.PRNGKey(0)
    k0, k1, k2, k3, k4, k5, k6 = jax.random.split(key, 7)
    question_vec = jax.random.normal(k0, (B, D), jnp.float32)
    image_vectors = jax.random.normal(k1, (B, S, D), jnp.float32)
    images = jax.random.normal(k2, (B, S, T, D), jnp.float32)

    # nn.MultiheadAttention(768, 12) in_proj params — only the Q and K slices of
    # in_proj_weight/in_proj_bias matter for attn_scores. Deterministic synthetic init.
    wq = 0.02 * jax.random.normal(k3, (D, D), jnp.float32)
    bq = 0.02 * jax.random.normal(k4, (D,), jnp.float32)
    wk = 0.02 * jax.random.normal(k5, (D, D), jnp.float32)
    bk = 0.02 * jax.random.normal(k6, (D,), jnp.float32)

    attn_scores, image_set = image_set_question_attention(
        question_vec, image_vectors, images, wq, bq, wk, bk, num_heads=H)
    jax.block_until_ready((attn_scores, image_set))

    ref_attn, ref_set = _reference(
        question_vec, image_vectors, images, wq, bq, wk, bk, H)

    assert attn_scores.shape == (B, 1, S)
    assert image_set.shape == (B, T, D)
    assert jnp.allclose(attn_scores, ref_attn, atol=1e-5, rtol=1e-5), "attn mismatch"
    assert jnp.allclose(image_set, ref_set, atol=1e-4, rtol=1e-4), "image_set mismatch"

    print("KERNEL_OK")
</pallas_src>

<mosaic_0001>
module attributes {stable_mosaic.version = 11 : i64} {
  func.func @kernel(%arg0: i32, %arg1: i32, %arg2: memref<1x1x768xf32, #tpu.memory_space<vmem>>, %arg3: memref<1x4x768xf32, #tpu.memory_space<vmem>>, %arg4: memref<768x768xf32, #tpu.memory_space<vmem>>, %arg5: memref<1x768xf32, #tpu.memory_space<vmem>>, %arg6: memref<768x768xf32, #tpu.memory_space<vmem>>, %arg7: memref<1x768xf32, #tpu.memory_space<vmem>>, %arg8: memref<12x768xf32, #tpu.memory_space<vmem>>, %arg9: memref<1x4x64x768xf32, #tpu.memory_space<vmem>>, %arg10: memref<1x4x1xf32, #tpu.memory_space<vmem>>, %arg11: memref<1x64x768xf32, #tpu.memory_space<vmem>>, %arg12: memref<4x768xf32, #tpu.memory_space<vmem>>) attributes {dimension_semantics = [#tpu.dimension_semantics<parallel>, #tpu.dimension_semantics<arbitrary>], iteration_bounds = array<i64: 2, 4>, scalar_prefetch = 0 : i64, scratch_operands = 1 : i64, tpu.core_type = #tpu.core_type<tc>, window_params = [{transform_indices = @transform_0, window_bounds = array<i64: 1, 1, 768>}, {transform_indices = @transform_1, window_bounds = array<i64: 1, 4, 768>}, {pipeline_mode = #tpu.pipeline_mode<synchronous>, transform_indices = @transform_2, window_bounds = array<i64: 768, 768>}, {pipeline_mode = #tpu.pipeline_mode<synchronous>, transform_indices = @transform_3, window_bounds = array<i64: 1, 768>}, {pipeline_mode = #tpu.pipeline_mode<synchronous>, transform_indices = @transform_4, window_bounds = array<i64: 768, 768>}, {pipeline_mode = #tpu.pipeline_mode<synchronous>, transform_indices = @transform_5, window_bounds = array<i64: 1, 768>}, {pipeline_mode = #tpu.pipeline_mode<synchronous>, transform_indices = @transform_6, window_bounds = array<i64: 12, 768>}, {transform_indices = @transform_7, window_bounds = array<i64: 1, 4, 64, 768>}, {transform_indices = @transform_8, window_bounds = array<i64: 1, 4, 1>}, {transform_indices = @transform_9, window_bounds = array<i64: 1, 64, 768>}]} {
    %c0_i32 = arith.constant 0 : i32
    %0 = arith.cmpi eq, %arg1, %c0_i32 : i32
    %1 = arith.extui %0 : i1 to i32
    %c0_i32_0 = arith.constant 0 : i32
    %2 = arith.cmpi ne, %1, %c0_i32_0 : i32
    scf.if %2 {
      %c0_24 = arith.constant 0 : index
      %c0_25 = arith.constant 0 : index
      %c0_26 = arith.constant 0 : index
      %29 = vector.load %arg2[%c0_24, %c0_25, %c0_26] : memref<1x1x768xf32, #tpu.memory_space<vmem>>, vector<1x1x768xf32>
      %30 = vector.shape_cast %29 : vector<1x1x768xf32> to vector<1x768xf32>
      %c0_27 = arith.constant 0 : index
      %c0_28 = arith.constant 0 : index
      %31 = vector.load %arg4[%c0_27, %c0_28] : memref<768x768xf32, #tpu.memory_space<vmem>>, vector<768x768xf32>
      %cst = arith.constant dense<0.000000e+00> : vector<1x768xf32>
      %32 = tpu.matmul %30, %31, %cst {dimension_numbers = #tpu.dot_dimension_numbers<[1], [1], [0], [0], [0, 0, 1, 0], [], []>} : vector<1x768xf32>, vector<768x768xf32>, vector<1x768xf32> -> vector<1x768xf32>
      %c0_29 = arith.constant 0 : index
      %c0_30 = arith.constant 0 : index
      %33 = vector.load %arg5[%c0_29, %c0_30] : memref<1x768xf32, #tpu.memory_space<vmem>>, vector<1x768xf32>
      %34 = arith.addf %32, %33 : vector<1x768xf32>
      %c0_31 = arith.constant 0 : index
      %c0_32 = arith.constant 0 : index
      %c0_33 = arith.constant 0 : index
      %35 = vector.load %arg3[%c0_31, %c0_32, %c0_33] : memref<1x4x768xf32, #tpu.memory_space<vmem>>, vector<1x4x768xf32>
      %36 = vector.shape_cast %35 : vector<1x4x768xf32> to vector<4x768xf32>
      %c0_34 = arith.constant 0 : index
      %c0_35 = arith.constant 0 : index
      %37 = vector.load %arg6[%c0_34, %c0_35] : memref<768x768xf32, #tpu.memory_space<vmem>>, vector<768x768xf32>
      %cst_36 = arith.constant dense<0.000000e+00> : vector<4x768xf32>
      %38 = tpu.matmul %36, %37, %cst_36 {dimension_numbers = #tpu.dot_dimension_numbers<[1], [1], [0], [0], [0, 0, 1, 0], [], []>} : vector<4x768xf32>, vector<768x768xf32>, vector<4x768xf32> -> vector<4x768xf32>
      %c0_37 = arith.constant 0 : index
      %c0_38 = arith.constant 0 : index
      %39 = vector.load %arg7[%c0_37, %c0_38] : memref<1x768xf32, #tpu.memory_space<vmem>>, vector<1x768xf32>
      %40 = vector.broadcast %39 : vector<1x768xf32> to vector<4x768xf32>
      %41 = arith.addf %38, %40 : vector<4x768xf32>
      %c0_39 = arith.constant 0 : index
      %c0_40 = arith.constant 0 : index
      %42 = vector.load %arg8[%c0_39, %c0_40] : memref<12x768xf32, #tpu.memory_space<vmem>>, vector<12x768xf32>
      %43 = vector.broadcast %34 : vector<1x768xf32> to vector<12x768xf32>
      %44 = arith.mulf %42, %43 : vector<12x768xf32>
      %cst_41 = arith.constant dense<0.000000e+00> : vector<4x12xf32>
      %45 = tpu.matmul %41, %44, %cst_41 {dimension_numbers = #tpu.dot_dimension_numbers<[1], [1], [0], [0], [0, 0, 1, 0], [], []>} : vector<4x768xf32>, vector<12x768xf32>, vector<4x12xf32> -> vector<4x12xf32>
      %cst_42 = arith.constant 1.250000e-01 : f32
      %46 = vector.broadcast %cst_42 : f32 to vector<4x12xf32>
      %47 = arith.mulf %45, %46 : vector<4x12xf32>
      %cst_43 = arith.constant dense<0xFF800000> : vector<12xf32>
      %48 = vector.multi_reduction <maximumf>, %47, %cst_43 [0] : vector<4x12xf32> to vector<12xf32>
      %49 = vector.shape_cast %48 : vector<12xf32> to vector<1x12xf32>
      %50 = vector.broadcast %49 : vector<1x12xf32> to vector<4x12xf32>
      %51 = arith.subf %47, %50 : vector<4x12xf32>
      %52 = math.exp %51 : vector<4x12xf32>
      %cst_44 = arith.constant dense<0.000000e+00> : vector<12xf32>
      %53 = vector.multi_reduction <add>, %52, %cst_44 [0] : vector<4x12xf32> to vector<12xf32>
      %54 = vector.shape_cast %53 : vector<12xf32> to vector<1x12xf32>
      %55 = vector.broadcast %54 : vector<1x12xf32> to vector<4x12xf32>
      %56 = arith.divf %52, %55 : vector<4x12xf32>
      %cst_45 = arith.constant dense<0.000000e+00> : vector<4xf32>
      %57 = vector.multi_reduction <add>, %56, %cst_45 [1] : vector<4x12xf32> to vector<4xf32>
      %58 = vector.shape_cast %57 : vector<4xf32> to vector<4x1xf32>
      %cst_46 = arith.constant 1.200000e+01 : f32
      %59 = vector.broadcast %cst_46 : f32 to vector<4x1xf32>
      %60 = arith.divf %58, %59 : vector<4x1xf32>
      %c0_47 = arith.constant 0 : index
      %c0_48 = arith.constant 0 : index
      %c0_49 = arith.constant 0 : index
      %61 = vector.load %arg10[%c0_47, %c0_48, %c0_49] : memref<1x4x1xf32, #tpu.memory_space<vmem>>, vector<1x4x1xf32>
      %62 = vector.shape_cast %61 : vector<1x4x1xf32> to vector<4x1xf32>
      %63 = vector.shape_cast %60 : vector<4x1xf32> to vector<1x4x1xf32>
      tpu.vector_store %arg10[%c0_47, %c0_48, %c0_49], %63 {strides = array<i32>} : memref<1x4x1xf32, #tpu.memory_space<vmem>>, vector<1x4x1xf32>,
      %64 = vector.shape_cast %60 : vector<4x1xf32> to vector<4x1xf32>
      %65 = vector.broadcast %64 : vector<4x1xf32> to vector<4x768xf32>
      %c0_50 = arith.constant 0 : index
      %c0_51 = arith.constant 0 : index
      %66 = vector.load %arg12[%c0_50, %c0_51] : memref<4x768xf32, #tpu.memory_space<vmem>>, vector<4x768xf32>
      tpu.vector_store %arg12[%c0_50, %c0_51], %65 {strides = array<i32>} : memref<4x768xf32, #tpu.memory_space<vmem>>, vector<4x768xf32>,
    } else {
    }
    %c0 = arith.constant 0 : index
    %c0_1 = arith.constant 0 : index
    %c0_2 = arith.constant 0 : index
    %c0_3 = arith.constant 0 : index
    %3 = vector.load %arg9[%c0, %c0_1, %c0_2, %c0_3] : memref<1x4x64x768xf32, #tpu.memory_space<vmem>>, vector<1x1x64x768xf32>
    %4 = vector.shape_cast %3 : vector<1x1x64x768xf32> to vector<64x768xf32>
    %c0_4 = arith.constant 0 : index
    %c0_5 = arith.constant 0 : index
    %5 = vector.load %arg12[%c0_4, %c0_5] : memref<4x768xf32, #tpu.memory_space<vmem>>, vector<1x768xf32>
    %6 = vector.broadcast %5 : vector<1x768xf32> to vector<64x768xf32>
    %7 = arith.mulf %4, %6 : vector<64x768xf32>
    %c0_6 = arith.constant 0 : index
    %c1 = arith.constant 1 : index
    %c0_7 = arith.constant 0 : index
    %c0_8 = arith.constant 0 : index
    %8 = vector.load %arg9[%c0_6, %c1, %c0_7, %c0_8] : memref<1x4x64x768xf32, #tpu.memory_space<vmem>>, vector<1x1x64x768xf32>
    %9 = vector.shape_cast %8 : vector<1x1x64x768xf32> to vector<64x768xf32>
    %c1_9 = arith.constant 1 : index
    %c0_10 = arith.constant 0 : index
    %10 = vector.load %arg12[%c1_9, %c0_10] : memref<4x768xf32, #tpu.memory_space<vmem>>, vector<1x768xf32>
    %11 = vector.broadcast %10 : vector<1x768xf32> to vector<64x768xf32>
    %12 = arith.mulf %9, %11 : vector<64x768xf32>
    %13 = arith.addf %7, %12 : vector<64x768xf32>
    %c0_11 = arith.constant 0 : index
    %c2 = arith.constant 2 : index
    %c0_12 = arith.constant 0 : index
    %c0_13 = arith.constant 0 : index
    %14 = vector.load %arg9[%c0_11, %c2, %c0_12, %c0_13] : memref<1x4x64x768xf32, #tpu.memory_space<vmem>>, vector<1x1x64x768xf32>
    %15 = vector.shape_cast %14 : vector<1x1x64x768xf32> to vector<64x768xf32>
    %c2_14 = arith.constant 2 : index
    %c0_15 = arith.constant 0 : index
    %16 = vector.load %arg12[%c2_14, %c0_15] : memref<4x768xf32, #tpu.memory_space<vmem>>, vector<1x768xf32>
    %17 = vector.broadcast %16 : vector<1x768xf32> to vector<64x768xf32>
    %18 = arith.mulf %15, %17 : vector<64x768xf32>
    %19 = arith.addf %13, %18 : vector<64x768xf32>
    %c0_16 = arith.constant 0 : index
    %c3 = arith.constant 3 : index
    %c0_17 = arith.constant 0 : index
    %c0_18 = arith.constant 0 : index
    %20 = vector.load %arg9[%c0_16, %c3, %c0_17, %c0_18] : memref<1x4x64x768xf32, #tpu.memory_space<vmem>>, vector<1x1x64x768xf32>
    %21 = vector.shape_cast %20 : vector<1x1x64x768xf32> to vector<64x768xf32>
    %c3_19 = arith.constant 3 : index
    %c0_20 = arith.constant 0 : index
    %22 = vector.load %arg12[%c3_19, %c0_20] : memref<4x768xf32, #tpu.memory_space<vmem>>, vector<1x768xf32>
    %23 = vector.broadcast %22 : vector<1x768xf32> to vector<64x768xf32>
    %24 = arith.mulf %21, %23 : vector<64x768xf32>
    %25 = arith.addf %19, %24 : vector<64x768xf32>
    %c0_21 = arith.constant 0 : index
    %c0_22 = arith.constant 0 : index
    %c0_23 = arith.constant 0 : index
    %26 = vector.load %arg11[%c0_21, %c0_22, %c0_23] : memref<1x64x768xf32, #tpu.memory_space<vmem>>, vector<1x64x768xf32>
    %27 = vector.shape_cast %26 : vector<1x64x768xf32> to vector<64x768xf32>
    %28 = vector.shape_cast %25 : vector<64x768xf32> to vector<1x64x768xf32>
    tpu.vector_store %arg11[%c0_21, %c0_22, %c0_23], %28 {strides = array<i32>} : memref<1x64x768xf32, #tpu.memory_space<vmem>>, vector<1x64x768xf32>,
    return
  }
  func.func @transform_0(%arg0: i32, %arg1: i32) -> (i32, i32, i32) {
    %c0_i32 = arith.constant 0 : i32
    %c0_i32_0 = arith.constant 0 : i32
    %c0_i32_1 = arith.constant 0 : i32
    return %arg0, %c0_i32, %c0_i32_0 : i32, i32, i32
  }
  func.func @transform_1(%arg0: i32, %arg1: i32) -> (i32, i32, i32) {
    %c0_i32 = arith.constant 0 : i32
    %c0_i32_0 = arith.constant 0 : i32
    %c0_i32_1 = arith.constant 0 : i32
    return %arg0, %c0_i32, %c0_i32_0 : i32, i32, i32
  }
  func.func @transform_2(%arg0: i32, %arg1: i32) -> (i32, i32) {
    %c0_i32 = arith.constant 0 : i32
    %c0_i32_0 = arith.constant 0 : i32
    %c0_i32_1 = arith.constant 0 : i32
    return %c0_i32, %c0_i32_0 : i32, i32
  }
  func.func @transform_3(%arg0: i32, %arg1: i32) -> (i32, i32) {
    %c0_i32 = arith.constant 0 : i32
    %c0_i32_0 = arith.constant 0 : i32
    %c0_i32_1 = arith.constant 0 : i32
    return %c0_i32, %c0_i32_0 : i32, i32
  }
  func.func @transform_4(%arg0: i32, %arg1: i32) -> (i32, i32) {
    %c0_i32 = arith.constant 0 : i32
    %c0_i32_0 = arith.constant 0 : i32
    %c0_i32_1 = arith.constant 0 : i32
    return %c0_i32, %c0_i32_0 : i32, i32
  }
  func.func @transform_5(%arg0: i32, %arg1: i32) -> (i32, i32) {
    %c0_i32 = arith.constant 0 : i32
    %c0_i32_0 = arith.constant 0 : i32
    %c0_i32_1 = arith.constant 0 : i32
    return %c0_i32, %c0_i32_0 : i32, i32
  }
  func.func @transform_6(%arg0: i32, %arg1: i32) -> (i32, i32) {
    %c0_i32 = arith.constant 0 : i32
    %c0_i32_0 = arith.constant 0 : i32
    %c0_i32_1 = arith.constant 0 : i32
    return %c0_i32, %c0_i32_0 : i32, i32
  }
  func.func @transform_7(%arg0: i32, %arg1: i32) -> (i32, i32, i32, i32) {
    %c0_i32 = arith.constant 0 : i32
    %c0_i32_0 = arith.constant 0 : i32
    %c0_i32_1 = arith.constant 0 : i32
    return %arg0, %c0_i32, %arg1, %c0_i32_0 : i32, i32, i32, i32
  }
  func.func @transform_8(%arg0: i32, %arg1: i32) -> (i32, i32, i32) {
    %c0_i32 = arith.constant 0 : i32
    %c0_i32_0 = arith.constant 0 : i32
    %c0_i32_1 = arith.constant 0 : i32
    return %arg0, %c0_i32, %c0_i32_0 : i32, i32, i32
  }
  func.func @transform_9(%arg0: i32, %arg1: i32) -> (i32, i32, i32) {
    %c0_i32 = arith.constant 0 : i32
    %c0_i32_0 = arith.constant 0 : i32
    return %arg0, %arg1, %c0_i32 : i32, i32, i32
  }
}

</mosaic_0001>

<llo_original>
// kernel: image_set_question_attention.1
$region0: #{image_set_question_attention.1}
  #allocation0 [shape = 'u32[]', space=smem, size = 0x4, offset = 0x4, fixed_abs, tag = 'smem constant byte address 0x4 - core index']
  #allocation1 [shape = 'u32[144,128]{1,0:T(1,128)}', space=vmem, size = 0x12000, scoped, tag = 'internal scratch']
  #allocation2 [shape = 'f32[4,768]{1,0:T(4,128)}', space=vmem, size = 0x3000, scoped, tag = 'scratch operand']
  %s0 = inlined_call_operand.vmem [shape: f32[2,1,768], index: 0, kind: input, shape index: {}]
  %s1 = inlined_call_operand.vmem [shape: f32[2,4,768], index: 1, kind: input, shape index: {}]
  %s2 = inlined_call_operand.vmem [shape: f32[768,768], index: 2, kind: input, shape index: {}]
  %s3 = inlined_call_operand.vmem [shape: f32[1,768], index: 3, kind: input, shape index: {}]
  %s4 = inlined_call_operand.vmem [shape: f32[768,768], index: 4, kind: input, shape index: {}]
  %s5 = inlined_call_operand.vmem [shape: f32[1,768], index: 5, kind: input, shape index: {}]
  %s6 = inlined_call_operand.vmem [shape: f32[12,768], index: 6, kind: input, shape index: {}]
  %s7 = inlined_call_operand.vmem [shape: f32[2,4,197,768], index: 7, kind: input, shape index: {}]
  %s8 = inlined_call_operand.vmem [shape: f32[2,4,1], index: 8, kind: output, shape index: {0}]
  %s9 = inlined_call_operand.vmem [shape: f32[2,197,768], index: 9, kind: output, shape index: {1}]
  %10 = xla_tuple %s8, %s9
  %s11 = sld [smem:[#allocation0]]
  $region133: #{image_set_question_attention.1} parent=0
    _
  %s13 = ssub.s32 1, %s11
  %s14 = scalar_select 0, %s13, %s11
  $region1: #{image_set_question_attention.1} parent=0
    #allocation3 [shape = 'u8[1572864]{0}', space=vmem, size = 0x180000, scoped, tag = 'input window, operand 7']
    #allocation4 [shape = 'u8[393216]{0}', space=vmem, size = 0x60000, scoped, tag = 'output window, operand 1']
    loop: start=0, step=1, limit=10
    $region2: #{image_set_question_attention.1} parent=1 // loop_pre_header
      _
    $region3: #{image_set_question_attention.1} parent=1 // loop_header
      %s16 = sphi 0, %s20
      %p17 = scmp.ge.s32.totalorder %s16, 10
      %s23 = sphi 0, %s35
      %s24 = sphi 0, %s31
      %s25 = sphi 0, %s23
      %s26 = sphi 0, %s24
      %s27 = sphi 0, %s25
      %s28 = sphi 0, %s26
      %s38 = sphi 0, %s40
      %s41 = sphi 0, %s38
      %s42 = sphi 0, %s41
      %s58 = sphi 0, %s42
      %s64 = sphi 0, %s66
      %s67 = sphi 0, %s64
      %s68 = sphi 0, %s67
      %s84 = sphi 0, %s68
      %s88 = sphi 0, %s88
      %s90 = sphi 0, %s88
      %s91 = sphi 0, %s90
      %s105 = sphi 0, %s91
      %s109 = sphi 0, %s109
      %s111 = sphi 0, %s109
      %s112 = sphi 0, %s111
      %s126 = sphi 0, %s112
      %s130 = sphi 0, %s130
      %s132 = sphi 0, %s130
      %s133 = sphi 0, %s132
      %s147 = sphi 0, %s133
      %s151 = sphi 0, %s151
      %s153 = sphi 0, %s151
      %s154 = sphi 0, %s153
      %s168 = sphi 0, %s154
      %s172 = sphi 0, %s172
      %s174 = sphi 0, %s172
      %s175 = sphi 0, %s174
      %s189 = sphi 0, %s175
      %s197 = sphi 0, %s199
      %s200 = sphi 0, %s197
      %s201 = sphi 0, %s200
      %s217 = sphi 0, %s201
      %s223 = sphi 0, %s225
      %s226 = sphi 0, %s223
      %s227 = sphi 0, %s226
      %s243 = sphi 0, %s227
      %s251 = sphi 0, %s253
      %s254 = sphi 0, %s251
      %s255 = sphi 0, %s254
      %s271 = sphi 0, %s255
    $region4: #{image_set_question_attention.1} parent=1 // loop_header_branch
      %19 = sbr.rel (%p17) target = $region8
    $region5: #{image_set_question_attention.1} parent=1 // loop_body
      %s21 = ssub.s32 %s16, 1
      %s22 = ssub.s32 %s16, 2
      %s29 = sadd.s32 1, %s24
      %p30 = scmp.ge.s32.totalorder %s29, 4
      %s31 = scalar_select %p30, 0, %s29
      %s32 = sadd.s32 1, %s23
      %s33 = scalar_select %p30, %s32, %s23
      %p34 = scmp.ge.s32.totalorder %s33, 2
      %s35 = scalar_select %p34, 0, %s33
      %s36 = ssub.s32 %s23, %s35
      %p37 = scmp.eq.s32.totalorder %s36, 0
      %s39 = sadd.s32 %s38, 1
      %s40 = scalar_select %p37, %s38, %s39
      %p43 = pneg %p37
      %p44 = scmp.eq.s32.totalorder %s16, 7
      %p45 = por %p43, %p44
      %p46 = scmp.ne.s32.totalorder %s38, %s41
      %p47 = scmp.eq.s32.totalorder %s16, 0
      %p48 = por %p46, %p47
      %p49 = scmp.ne.s32.totalorder %s38, %s41
      %p50 = scmp.eq.s32.totalorder %s21, 7
      %p51 = por %p49, %p50
      %p52 = scmp.ne.s32.totalorder %s41, %s42
      %p53 = scmp.eq.s32.totalorder %s21, 0
      %p54 = por %p52, %p53
      %p55 = scmp.ne.s32.totalorder %s41, %s42
      %p56 = scmp.eq.s32.totalorder %s22, 7
      %p57 = por %p55, %p56
      %p59 = scmp.ne.s32.totalorder %s42, %s58
      %p60 = scmp.eq.s32.totalorder %s22, 0
      %p61 = por %p59, %p60
      %s62 = ssub.s32 %s23, %s35
      %p63 = scmp.eq.s32.totalorder %s62, 0
      %s65 = sadd.s32 %s64, 1
      %s66 = scalar_select %p63, %s64, %s65
      %p69 = pneg %p63
      %p70 = scmp.eq.s32.totalorder %s16, 7
      %p71 = por %p69, %p70
      %p72 = scmp.ne.s32.totalorder %s64, %s67
      %p73 = scmp.eq.s32.totalorder %s16, 0
      %p74 = por %p72, %p73
      %p75 = scmp.ne.s32.totalorder %s64, %s67
      %p76 = scmp.eq.s32.totalorder %s21, 7
      %p77 = por %p75, %p76
      %p78 = scmp.ne.s32.totalorder %s67, %s68
      %p79 = scmp.eq.s32.totalorder %s21, 0
      %p80 = por %p78, %p79
      %p81 = scmp.ne.s32.totalorder %s67, %s68
      %p82 = scmp.eq.s32.totalorder %s22, 7
      %p83 = por %p81, %p82
      %p85 = scmp.ne.s32.totalorder %s68, %s84
      %p86 = scmp.eq.s32.totalorder %s22, 0
      %p87 = por %p85, %p86
      %s89 = sadd.s32 %s88, 1
      %p92 = scmp.eq.s32.totalorder %s16, 7
      %p93 = scmp.ne.s32.totalorder %s88, %s90
      %p94 = scmp.eq.s32.totalorder %s16, 0
      %p95 = por %p93, %p94
      %p96 = scmp.ne.s32.totalorder %s88, %s90
      %p97 = scmp.eq.s32.totalorder %s21, 7
      %p98 = por %p96, %p97
      %p99 = scmp.ne.s32.totalorder %s90, %s91
      %p100 = scmp.eq.s32.totalorder %s21, 0
      %p101 = por %p99, %p100
      %p102 = scmp.ne.s32.totalorder %s90, %s91
      %p103 = scmp.eq.s32.totalorder %s22, 7
      %p104 = por %p102, %p103
      %p106 = scmp.ne.s32.totalorder %s91, %s105
      %p107 = scmp.eq.s32.totalorder %s22, 0
      %p108 = por %p106, %p107
      %s110 = sadd.s32 %s109, 1
      %p113 = scmp.eq.s32.totalorder %s16, 7
      %p114 = scmp.ne.s32.totalorder %s109, %s111
      %p115 = scmp.eq.s32.totalorder %s16, 0
      %p116 = por %p114, %p115
      %p117 = scmp.ne.s32.totalorder %s109, %s111
      %p118 = scmp.eq.s32.totalorder %s21, 7
      %p119 = por %p117, %p118
      %p120 = scmp.ne.s32.totalorder %s111, %s112
      %p121 = scmp.eq.s32.totalorder %s21, 0
      %p122 = por %p120, %p121
      %p123 = scmp.ne.s32.totalorder %s111, %s112
      %p124 = scmp.eq.s32.totalorder %s22, 7
      %p125 = por %p123, %p124
      %p127 = scmp.ne.s32.totalorder %s112, %s126
      %p128 = scmp.eq.s32.totalorder %s22, 0
      %p129 = por %p127, %p128
      %s131 = sadd.s32 %s130, 1
      %p134 = scmp.eq.s32.totalorder %s16, 7
      %p135 = scmp.ne.s32.totalorder %s130, %s132
      %p136 = scmp.eq.s32.totalorder %s16, 0
      %p137 = por %p135, %p136
      %p138 = scmp.ne.s32.totalorder %s130, %s132
      %p139 = scmp.eq.s32.totalorder %s21, 7
      %p140 = por %p138, %p139
      %p141 = scmp.ne.s32.totalorder %s132, %s133
      %p142 = scmp.eq.s32.totalorder %s21, 0
      %p143 = por %p141, %p142
      %p144 = scmp.ne.s32.totalorder %s132, %s133
      %p145 = scmp.eq.s32.totalorder %s22, 7
      %p146 = por %p144, %p145
      %p148 = scmp.ne.s32.totalorder %s133, %s147
      %p149 = scmp.eq.s32.totalorder %s22, 0
      %p150 = por %p148, %p149
      %s152 = sadd.s32 %s151, 1
      %p155 = scmp.eq.s32.totalorder %s16, 7
      %p156 = scmp.ne.s32.totalorder %s151, %s153
      %p157 = scmp.eq.s32.totalorder %s16, 0
      %p158 = por %p156, %p157
      %p159 = scmp.ne.s32.totalorder %s151, %s153
      %p160 = scmp.eq.s32.totalorder %s21, 7
      %p161 = por %p159, %p160
      %p162 = scmp.ne.s32.totalorder %s153, %s154
      %p163 = scmp.eq.s32.totalorder %s21, 0
      %p164 = por %p162, %p163
      %p165 = scmp.ne.s32.totalorder %s153, %s154
      %p166 = scmp.eq.s32.totalorder %s22, 7
      %p167 = por %p165, %p166
      %p169 = scmp.ne.s32.totalorder %s154, %s168
      %p170 = scmp.eq.s32.totalorder %s22, 0
      %p171 = por %p169, %p170
      %s173 = sadd.s32 %s172, 1
      %p176 = scmp.eq.s32.totalorder %s16, 7
      %p177 = scmp.ne.s32.totalorder %s172, %s174
      %p178 = scmp.eq.s32.totalorder %s16, 0
      %p179 = por %p177, %p178
      %p180 = scmp.ne.s32.totalorder %s172, %s174
      %p181 = scmp.eq.s32.totalorder %s21, 7
      %p182 = por %p180, %p181
      %p183 = scmp.ne.s32.totalorder %s174, %s175
      %p184 = scmp.eq.s32.totalorder %s21, 0
      %p185 = por %p183, %p184
      %p186 = scmp.ne.s32.totalorder %s174, %s175
      %p187 = scmp.eq.s32.totalorder %s22, 7
      %p188 = por %p186, %p187
      %p190 = scmp.ne.s32.totalorder %s175, %s189
      %p191 = scmp.eq.s32.totalorder %s22, 0
      %p192 = por %p190, %p191
      %s193 = ssub.s32 %s23, %s35
      %s194 = ssub.s32 %s24, %s31
      %s195 = sor.u32 %s193, %s194
      %p196 = scmp.eq.s32.totalorder %s195, 0
      %s198 = sadd.s32 %s197, 1
      %s199 = scalar_select %p196, %s197, %s198
      %p202 = pneg %p196
      %p203 = scmp.eq.s32.totalorder %s16, 7
      %p204 = por %p202, %p203
      %p205 = scmp.ne.s32.totalorder %s197, %s200
      %p206 = scmp.eq.s32.totalorder %s16, 0
      %p207 = por %p205, %p206
      %p208 = scmp.ne.s32.totalorder %s197, %s200
      %p209 = scmp.eq.s32.totalorder %s21, 7
      %p210 = por %p208, %p209
      %p211 = scmp.ne.s32.totalorder %s200, %s201
      %p212 = scmp.eq.s32.totalorder %s21, 0
      %p213 = por %p211, %p212
      %p214 = scmp.ne.s32.totalorder %s200, %s201
      %p215 = scmp.eq.s32.totalorder %s22, 7
      %p216 = por %p214, %p215
      %p218 = scmp.ne.s32.totalorder %s201, %s217
      %p219 = scmp.eq.s32.totalorder %s22, 0
      %p220 = por %p218, %p219
      %s221 = ssub.s32 %s23, %s35
      %p222 = scmp.eq.s32.totalorder %s221, 0
      %s224 = sadd.s32 %s223, 1
      %s225 = scalar_select %p222, %s223, %s224
      %p228 = pneg %p222
      %p229 = scmp.eq.s32.totalorder %s16, 7
      %p230 = por %p228, %p229
      %p231 = scmp.ne.s32.totalorder %s223, %s226
      %p232 = scmp.eq.s32.totalorder %s16, 0
      %p233 = por %p231, %p232
      %p234 = scmp.ne.s32.totalorder %s223, %s226
      %p235 = scmp.eq.s32.totalorder %s21, 7
      %p236 = por %p234, %p235
      %p237 = scmp.ne.s32.totalorder %s226, %s227
      %p238 = scmp.eq.s32.totalorder %s21, 0
      %p239 = por %p237, %p238
      %p240 = scmp.ne.s32.totalorder %s226, %s227
      %p241 = scmp.eq.s32.totalorder %s22, 7
      %p242 = por %p240, %p241
      %p244 = scmp.ne.s32.totalorder %s227, %s243
      %p245 = scmp.eq.s32.totalorder %s22, 0
      %p246 = por %p244, %p245
      %s247 = ssub.s32 %s23, %s35
      %s248 = ssub.s32 %s24, %s31
      %s249 = sor.u32 %s247, %s248
      %p250 = scmp.eq.s32.totalorder %s249, 0
      %s252 = sadd.s32 %s251, 1
      %s253 = scalar_select %p250, %s251, %s252
      %p256 = pneg %p250
      %p257 = scmp.eq.s32.totalorder %s16, 7
      %p258 = por %p256, %p257
      %p259 = scmp.ne.s32.totalorder %s251, %s254
      %p260 = scmp.eq.s32.totalorder %s16, 0
      %p261 = por %p259, %p260
      %p262 = scmp.ne.s32.totalorder %s251, %s254
      %p263 = scmp.eq.s32.totalorder %s21, 7
      %p264 = por %p262, %p263
      %p265 = scmp.ne.s32.totalorder %s254, %s255
      %p266 = scmp.eq.s32.totalorder %s21, 0
      %p267 = por %p265, %p266
      %p268 = scmp.ne.s32.totalorder %s254, %s255
      %p269 = scmp.eq.s32.totalorder %s22, 7
      %p270 = por %p268, %p269
      %p272 = scmp.ne.s32.totalorder %s255, %s271
      %p273 = scmp.eq.s32.totalorder %s22, 0
      %p274 = por %p272, %p273
      %p275 = scmp.le.s32.totalorder 1, %s16
      %p276 = scmp.lt.s32.totalorder %s16, 9
      %p277 = pnand %p275, %p276
      %p278 = pneg %p277
      // Predicated region
      $region9: #{image_set_question_attention.1} parent=5 // pred_check
        _
      $region10: #{image_set_question_attention.1} parent=5 // pred_check_branch
        %280 = sbr.rel (%p277) target = $region12
      $region11: #{image_set_question_attention.1} parent=5 // pred_region
        %s281 = ssub.s32 %s16, 1
        // Predicated region
        $region13: #{image_set_question_attention.1} parent=11 // pred_check
          %p282 = pneg %p101
        $region14: #{image_set_question_attention.1} parent=11 // pred_check_branch
          %284 = sbr.rel (%p282) target = $region16
        $region15: #{image_set_question_attention.1} parent=11 // pred_region
          _
        $region16: #{image_set_question_attention.1} parent=11 // pred_fallthru
          _
        // Predicated region
        $region17: #{image_set_question_attention.1} parent=11 // pred_check
          %p285 = pneg %p122
        $region18: #{image_set_question_attention.1} parent=11 // pred_check_branch
          %287 = sbr.rel (%p285) target = $region20
        $region19: #{image_set_question_attention.1} parent=11 // pred_region
          _
        $region20: #{image_set_question_attention.1} parent=11 // pred_fallthru
          _
        // Predicated region
        $region21: #{image_set_question_attention.1} parent=11 // pred_check
          %p288 = pneg %p143
        $region22: #{image_set_question_attention.1} parent=11 // pred_check_branch
          %290 = sbr.rel (%p288) target = $region24
        $region23: #{image_set_question_attention.1} parent=11 // pred_region
          _
        $region24: #{image_set_question_attention.1} parent=11 // pred_fallthru
          _
        // Predicated region
        $region25: #{image_set_question_attention.1} parent=11 // pred_check
          %p291 = pneg %p164
        $region26: #{image_set_question_attention.1} parent=11 // pred_check_branch
          %293 = sbr.rel (%p291) target = $region28
        $region27: #{image_set_question_attention.1} parent=11 // pred_region
          _
        $region28: #{image_set_question_attention.1} parent=11 // pred_fallthru
          _
        // Predicated region
        $region29: #{image_set_question_attention.1} parent=11 // pred_check
          %p294 = pneg %p185
        $region30: #{image_set_question_attention.1} parent=11 // pred_check_branch
          %296 = sbr.rel (%p294) target = $region32
        $region31: #{image_set_question_attention.1} parent=11 // pred_region
          _
        $region32: #{image_set_question_attention.1} parent=11 // pred_fallthru
          _
      $region12: #{image_set_question_attention.1} parent=5 // pred_fallthru
        _
      %p297 = scmp.lt.s32.totalorder %s16, 8
      // Predicated region
      $region33: #{image_set_question_attention.1} parent=5 // pred_check
        %p298 = pneg %p297
      $region34: #{image_set_question_attention.1} parent=5 // pred_check_branch
        %300 = sbr.rel (%p298) target = $region36
      $region35: #{image_set_question_attention.1} parent=5 // pred_region
        // Predicated region
        $region37: #{image_set_question_attention.1} parent=35 // pred_check
          %p301 = pneg %p48
        $region38: #{image_set_question_attention.1} parent=35 // pred_check_branch
          %303 = sbr.rel (%p301) target = $region40
        $region39: #{image_set_question_attention.1} parent=35 // pred_region
          %p304 = scmp.lt.s32.totalorder %s23, 1
          %s305 = scalar_select %p304, %s23, 1
          %s306 = smul.addr %s305, 6
          %s307 = scalar_lea.vmem %s0, %s306
        $region40: #{image_set_question_attention.1} parent=35 // pred_fallthru
          _
        // Predicated region
        $region41: #{image_set_question_attention.1} parent=35 // pred_check
          %p308 = pneg %p74
        $region42: #{image_set_question_attention.1} parent=35 // pred_check_branch
          %310 = sbr.rel (%p308) target = $region44
        $region43: #{image_set_question_attention.1} parent=35 // pred_region
          %p311 = scmp.lt.s32.totalorder %s23, 1
          %s312 = scalar_select %p311, %s23, 1
          %s313 = smul.addr %s312, 6
          %s314 = smul.addr %s313, 4
          %s315 = scalar_lea.vmem %s1, %s314
        $region44: #{image_set_question_attention.1} parent=35 // pred_fallthru
          _
        // Predicated region
        $region45: #{image_set_question_attention.1} parent=35 // pred_check
          %p316 = pneg %p207
        $region46: #{image_set_question_attention.1} parent=35 // pred_check_branch
          %318 = sbr.rel (%p316) target = $region48
        $region47: #{image_set_question_attention.1} parent=35 // pred_region
          %s319 = sand.u32 %s197, 1
          %s320 = sand.u32 %s197, 1
          %s321 = smul.addr %s320, 1536
          %s322 = scalar_lea.vmem [#allocation3], %s321
          %s323 = smul.u32 8, %s24
          %s324 = ssub.s32 25, %s323
          %p325 = scmp.lt.s32.totalorder %s324, 8
          %s326 = scalar_select %p325, %s324, 8
          %s327 = smul.u32 512, %s326
          %s328 = smul.u32 %s327, 6
          %p329 = scmp.ne.s32.totalorder 0, %s328
          %s330 = smul.addr %s323, 6
          %s331 = smul.addr %s23, 600
          %s332 = sadd.s32 %s330, %s331
          %s333 = smul.addr %s332, 8
          %s334 = scalar_lea.vmem %s7, %s333
          // Predicated region
          $region49: #{image_set_question_attention.1} parent=47 // pred_check
            %p335 = pneg %p329
          $region50: #{image_set_question_attention.1} parent=47 // pred_check_branch
            %337 = sbr.rel (%p335) target = $region52
          $region51: #{image_set_question_attention.1} parent=47 // pred_region
            // Predicated region
            $region53: #{image_set_question_attention.1} parent=51 // pred_check
              _
            $region54: #{image_set_question_attention.1} parent=51 // pred_check_branch
              %339 = sbr.rel (0) target = $region56
            $region55: #{image_set_question_attention.1} parent=51 // pred_region
              %s340 = sdiv.u32.pop %s326, 3
              %s341 = srem.u32.pop %s326, 3
              // While loop
              $region57: #{image_set_question_attention.1} parent=55 // loop_pre_header
                _
              $region58: #{image_set_question_attention.1} parent=55 // loop_header
                %s343 = sphi 0, %s345
                %p344 = scmp.ge.s32.totalorder %s343, %s340
                %s348 = sphi 0, %s497
                %s349 = sphi %s334, %s500
                %s350 = sphi %s322, %s501
              $region59: #{image_set_question_attention.1} parent=55 // loop_header_branch
                %347 = sbr.rel (%p344) target = $region63
              $region60: #{image_set_question_attention.1} parent=55 // loop_body
                %v351 = vld [vmem:[%s349] sm:$0xff]
                %352 = vst [vmem:[%s350] sm:$0xff] %v351
                %v353 = vld [vmem:[%s349 + $0x30] sm:$0xff]
                %354 = vst [vmem:[%s350 + $0x30] sm:$0xff] %v353
                %v355 = vld [vmem:[%s349 + $0x60] sm:$0xff]
                %356 = vst [vmem:[%s350 + $0x60] sm:$0xff] %v355
                %v357 = vld [vmem:[%s349 + $0x8] sm:$0xff]
                %358 = vst [vmem:[%s350 + $0x8] sm:$0xff] %v357
                %v359 = vld [vmem:[%s349 + $0x38] sm:$0xff]
                %360 = vst [vmem:[%s350 + $0x38] sm:$0xff] %v359
                %v361 = vld [vmem:[%s349 + $0x68] sm:$0xff]
                %362 = vst [vmem:[%s350 + $0x68] sm:$0xff] %v361
                %v363 = vld [vmem:[%s349 + $0x10] sm:$0xff]
                %364 = vst [vmem:[%s350 + $0x10] sm:$0xff] %v363
                %v365 = vld [vmem:[%s349 + $0x40] sm:$0xff]
                %366 = vst [vmem:[%s350 + $0x40] sm:$0xff] %v365
                %v367 = vld [vmem:[%s349 + $0x70] sm:$0xff]
                %368 = vst [vmem:[%s350 + $0x70] sm:$0xff] %v367
                %v369 = vld [vmem:[%s349 + $0x18] sm:$0xff]
                %370 = vst [vmem:[%s350 + $0x18] sm:$0xff] %v369
                %v371 = vld [vmem:[%s349 + $0x48] sm:$0xff]
                %372 = vst [vmem:[%s350 + $0x48] sm:$0xff] %v371
                %v373 = vld [vmem:[%s349 + $0x78] sm:$0xff]
                %374 = vst [vmem:[%s350 + $0x78] sm:$0xff] %v373
                %v375 = vld [vmem:[%s349 + $0x20] sm:$0xff]
                %376 = vst [vmem:[%s350 + $0x20] sm:$0xff] %v375
                %v377 = vld [vmem:[%s349 + $0x50] sm:$0xff]
                %378 = vst [vmem:[%s350 + $0x50] sm:$0xff] %v377
                %v379 = vld [vmem:[%s349 + $0x80] sm:$0xff]
                %380 = vst [vmem:[%s350 + $0x80] sm:$0xff] %v379
                %v381 = vld [vmem:[%s349 + $0x28] sm:$0xff]
                %382 = vst [vmem:[%s350 + $0x28] sm:$0xff] %v381
                %v383 = vld [vmem:[%s349 + $0x58] sm:$0xff]
                %384 = vst [vmem:[%s350 + $0x58] sm:$0xff] %v383
                %v385 = vld [vmem:[%s349 + $0x88] sm:$0xff]
                %386 = vst [vmem:[%s350 + $0x88] sm:$0xff] %v385
                %v387 = vld [vmem:[%s349 + $0x4b0] sm:$0xff]
                %388 = vst [vmem:[%s350 + $0x180] sm:$0xff] %v387
                %v389 = vld [vmem:[%s349 + $0x4e0] sm:$0xff]
                %390 = vst [vmem:[%s350 + $0x1b0] sm:$0xff] %v389
                %v391 = vld [vmem:[%s349 + $0x510] sm:$0xff]
                %392 = vst [vmem:[%s350 + $0x1e0] sm:$0xff] %v391
                %v393 = vld [vmem:[%s349 + $0x4b8] sm:$0xff]
                %394 = vst [vmem:[%s350 + $0x188] sm:$0xff] %v393
                %v395 = vld [vmem:[%s349 + $0x4e8] sm:$0xff]
                %396 = vst [vmem:[%s350 + $0x1b8] sm:$0xff] %v395
                %v397 = vld [vmem:[%s349 + $0x518] sm:$0xff]
                %398 = vst [vmem:[%s350 + $0x1e8] sm:$0xff] %v397
                %v399 = vld [vmem:[%s349 + $0x4c0] sm:$0xff]
                %400 = vst [vmem:[%s350 + $0x190] sm:$0xff] %v399
                %v401 = vld [vmem:[%s349 + $0x4f0] sm:$0xff]
                %402 = vst [vmem:[%s350 + $0x1c0] sm:$0xff] %v401
                %v403 = vld [vmem:[%s349 + $0x520] sm:$0xff]
                %404 = vst [vmem:[%s350 + $0x1f0] sm:$0xff] %v403
                %v405 = vld [vmem:[%s349 + $0x4c8] sm:$0xff]
                %406 = vst [vmem:[%s350 + $0x198] sm:$0xff] %v405
                %v407 = vld [vmem:[%s349 + $0x4f8] sm:$0xff]
                %408 = vst [vmem:[%s350 + $0x1c8] sm:$0xff] %v407
                %v409 = vld [vmem:[%s349 + $0x528] sm:$0xff]
                %410 = vst [vmem:[%s350 + $0x1f8] sm:$0xff] %v409
                %v411 = vld [vmem:[%s349 + $0x4d0] sm:$0xff]
                %412 = vst [vmem:[%s350 + $0x1a0] sm:$0xff] %v411
                %v413 = vld [vmem:[%s349 + $0x500] sm:$0xff]
                %414 = vst [vmem:[%s350 + $0x1d0] sm:$0xff] %v413
                %v415 = vld [vmem:[%s349 + $0x530] sm:$0xff]
                %416 = vst [vmem:[%s350 + $0x200] sm:$0xff] %v415
                %v417 = vld [vmem:[%s349 + $0x4d8] sm:$0xff]
                %418 = vst [vmem:[%s350 + $0x1a8] sm:$0xff] %v417
                %v419 = vld [vmem:[%s349 + $0x508] sm:$0xff]
                %420 = vst [vmem:[%s350 + $0x1d8] sm:$0xff] %v419
                %v421 = vld [vmem:[%s349 + $0x538] sm:$0xff]
                %422 = vst [vmem:[%s350 + $0x208] sm:$0xff] %v421
                %v423 = vld [vmem:[%s349 + $0x960] sm:$0xff]
                %424 = vst [vmem:[%s350 + $0x300] sm:$0xff] %v423
                %v425 = vld [vmem:[%s349 + $0x990] sm:$0xff]
                %426 = vst [vmem:[%s350 + $0x330] sm:$0xff] %v425
                %v427 = vld [vmem:[%s349 + $0x9c0] sm:$0xff]
                %428 = vst [vmem:[%s350 + $0x360] sm:$0xff] %v427
                %v429 = vld [vmem:[%s349 + $0x968] sm:$0xff]
                %430 = vst [vmem:[%s350 + $0x308] sm:$0xff] %v429
                %v431 = vld [vmem:[%s349 + $0x998] sm:$0xff]
                %432 = vst [vmem:[%s350 + $0x338] sm:$0xff] %v431
                %v433 = vld [vmem:[%s349 + $0x9c8] sm:$0xff]
                %434 = vst [vmem:[%s350 + $0x368] sm:$0xff] %v433
                %v435 = vld [vmem:[%s349 + $0x970] sm:$0xff]
                %436 = vst [vmem:[%s350 + $0x310] sm:$0xff] %v435
                %v437 = vld [vmem:[%s349 + $0x9a0] sm:$0xff]
                %438 = vst [vmem:[%s350 + $0x340] sm:$0xff] %v437
                %v439 = vld [vmem:[%s349 + $0x9d0] sm:$0xff]
                %440 = vst [vmem:[%s350 + $0x370] sm:$0xff] %v439
                %v441 = vld [vmem:[%s349 + $0x978] sm:$0xff]
                %442 = vst [vmem:[%s350 + $0x318] sm:$0xff] %v441
                %v443 = vld [vmem:[%s349 + $0x9a8] sm:$0xff]
                %444 = vst [vmem:[%s350 + $0x348] sm:$0xff] %v443
                %v445 = vld [vmem:[%s349 + $0x9d8] sm:$0xff]
                %446 = vst [vmem:[%s350 + $0x378] sm:$0xff] %v445
                %v447 = vld [vmem:[%s349 + $0x980] sm:$0xff]
                %448 = vst [vmem:[%s350 + $0x320] sm:$0xff] %v447
                %v449 = vld [vmem:[%s349 + $0x9b0] sm:$0xff]
                %450 = vst [vmem:[%s350 + $0x350] sm:$0xff] %v449
                %v451 = vld [vmem:[%s349 + $0x9e0] sm:$0xff]
                %452 = vst [vmem:[%s350 + $0x380] sm:$0xff] %v451
                %v453 = vld [vmem:[%s349 + $0x988] sm:$0xff]
                %454 = vst [vmem:[%s350 + $0x328] sm:$0xff] %v453
                %v455 = vld [vmem:[%s349 + $0x9b8] sm:$0xff]
                %456 = vst [vmem:[%s350 + $0x358] sm:$0xff] %v455
                %v457 = vld [vmem:[%s349 + $0x9e8] sm:$0xff]
                %458 = vst [vmem:[%s350 + $0x388] sm:$0xff] %v457
                %v459 = vld [vmem:[%s349 + $0xe10] sm:$0xff]
                %460 = vst [vmem:[%s350 + $0x480] sm:$0xff] %v459
                %v461 = vld [vmem:[%s349 + $0xe40] sm:$0xff]
                %462 = vst [vmem:[%s350 + $0x4b0] sm:$0xff] %v461
                %v463 = vld [vmem:[%s349 + $0xe70] sm:$0xff]
                %464 = vst [vmem:[%s350 + $0x4e0] sm:$0xff] %v463
                %v465 = vld [vmem:[%s349 + $0xe18] sm:$0xff]
                %466 = vst [vmem:[%s350 + $0x488] sm:$0xff] %v465
                %v467 = vld [vmem:[%s349 + $0xe48] sm:$0xff]
                %468 = vst [vmem:[%s350 + $0x4b8] sm:$0xff] %v467
                %v469 = vld [vmem:[%s349 + $0xe78] sm:$0xff]
                %470 = vst [vmem:[%s350 + $0x4e8] sm:$0xff] %v469
                %v471 = vld [vmem:[%s349 + $0xe20] sm:$0xff]
                %472 = vst [vmem:[%s350 + $0x490] sm:$0xff] %v471
                %v473 = vld [vmem:[%s349 + $0xe50] sm:$0xff]
                %474 = vst [vmem:[%s350 + $0x4c0] sm:$0xff] %v473
                %v475 = vld [vmem:[%s349 + $0xe80] sm:$0xff]
                %476 = vst [vmem:[%s350 + $0x4f0] sm:$0xff] %v475
                %v477 = vld [vmem:[%s349 + $0xe28] sm:$0xff]
                %478 = vst [vmem:[%s350 + $0x498] sm:$0xff] %v477
                %v479 = vld [vmem:[%s349 + $0xe58] sm:$0xff]
                %480 = vst [vmem:[%s350 + $0x4c8] sm:$0xff] %v479
                %v481 = vld [vmem:[%s349 + $0xe88] sm:$0xff]
                %482 = vst [vmem:[%s350 + $0x4f8] sm:$0xff] %v481
                %v483 = vld [vmem:[%s349 + $0xe30] sm:$0xff]
                %484 = vst [vmem:[%s350 + $0x4a0] sm:$0xff] %v483
                %v485 = vld [vmem:[%s349 + $0xe60] sm:$0xff]
                %486 = vst [vmem:[%s350 + $0x4d0] sm:$0xff] %v485
                %v487 = vld [vmem:[%s349 + $0xe90] sm:$0xff]
                %488 = vst [vmem:[%s350 + $0x500] sm:$0xff] %v487
                %v489 = vld [vmem:[%s349 + $0xe38] sm:$0xff]
                %490 = vst [vmem:[%s350 + $0x4a8] sm:$0xff] %v489
                %v491 = vld [vmem:[%s349 + $0xe68] sm:$0xff]
                %492 = vst [vmem:[%s350 + $0x4d8] sm:$0xff] %v491
                %v493 = vld [vmem:[%s349 + $0xe98] sm:$0xff]
                %494 = vst [vmem:[%s350 + $0x508] sm:$0xff] %v493
                %s495 = sadd.s32 1, %s348
                %p496 = scmp.ge.s32.totalorder %s495, %s340
                %s497 = scalar_select %p496, 0, %s495
                %s498 = smul.u32 %s497, 144
                %s499 = smul.u32 %s497, 144
                %s500 = scalar_lea.vmem %s334, %s498
                %s501 = scalar_lea.vmem %s322, %s499 [#allocation3]
              $region61: #{image_set_question_attention.1} parent=55 // loop_footer
                %s345 = sadd.s32 %s343, 1
              $region62: #{image_set_question_attention.1} parent=55 // loop_footer_branch
                %342 = sbr.rel target = $region58
              $region63: #{image_set_question_attention.1} parent=55 // loop_exit
                _
              %s502 = sdiv.u32.pop %s326, 3
              %s503 = srem.u32.pop %s326, 3
              %s504 = smul.u32 %s502, 3
              %s505 = smul.u32 48, %s504
              %s506 = scalar_lea.vmem %s334, %s505
              %s507 = smul.u32 48, %s504
              %s508 = scalar_lea.vmem %s322, %s507 [#allocation3]
              // While loop
              $region64: #{image_set_question_attention.1} parent=55 // loop_pre_header
                _
              $region65: #{image_set_question_attention.1} parent=55 // loop_header
                %s510 = sphi 0, %s512
                %p511 = scmp.ge.s32.totalorder %s510, %s503
                %s515 = sphi 0, %s568
                %s516 = sphi %s506, %s571
                %s517 = sphi %s508, %s572
              $region66: #{image_set_question_attention.1} parent=55 // loop_header_branch
                %514 = sbr.rel (%p511) target = $region70
              $region67: #{image_set_question_attention.1} parent=55 // loop_body
                %v518 = vld [vmem:[%s516] sm:$0xff]
                %519 = vst [vmem:[%s517] sm:$0xff] %v518
                %v520 = vld [vmem:[%s516 + $0x8] sm:$0xff]
                %521 = vst [vmem:[%s517 + $0x8] sm:$0xff] %v520
                %v522 = vld [vmem:[%s516 + $0x10] sm:$0xff]
                %523 = vst [vmem:[%s517 + $0x10] sm:$0xff] %v522
                %v524 = vld [vmem:[%s516 + $0x18] sm:$0xff]
                %525 = vst [vmem:[%s517 + $0x18] sm:$0xff] %v524
                %v526 = vld [vmem:[%s516 + $0x20] sm:$0xff]
                %527 = vst [vmem:[%s517 + $0x20] sm:$0xff] %v526
                %v528 = vld [vmem:[%s516 + $0x28] sm:$0xff]
                %529 = vst [vmem:[%s517 + $0x28] sm:$0xff] %v528
                %v530 = vld [vmem:[%s516 + $0x4b0] sm:$0xff]
                %531 = vst [vmem:[%s517 + $0x180] sm:$0xff] %v530
                %v532 = vld [vmem:[%s516 + $0x4b8] sm:$0xff]
                %533 = vst [vmem:[%s517 + $0x188] sm:$0xff] %v532
                %v534 = vld [vmem:[%s516 + $0x4c0] sm:$0xff]
                %535 = vst [vmem:[%s517 + $0x190] sm:$0xff] %v534
                %v536 = vld [vmem:[%s516 + $0x4c8] sm:$0xff]
                %537 = vst [vmem:[%s517 + $0x198] sm:$0xff] %v536
                %v538 = vld [vmem:[%s516 + $0x4d0] sm:$0xff]
                %539 = vst [vmem:[%s517 + $0x1a0] sm:$0xff] %v538
                %v540 = vld [vmem:[%s516 + $0x4d8] sm:$0xff]
                %541 = vst [vmem:[%s517 + $0x1a8] sm:$0xff] %v540
                %v542 = vld [vmem:[%s516 + $0x960] sm:$0xff]
                %543 = vst [vmem:[%s517 + $0x300] sm:$0xff] %v542
                %v544 = vld [vmem:[%s516 + $0x968] sm:$0xff]
                %545 = vst [vmem:[%s517 + $0x308] sm:$0xff] %v544
                %v546 = vld [vmem:[%s516 + $0x970] sm:$0xff]
                %547 = vst [vmem:[%s517 + $0x310] sm:$0xff] %v546
                %v548 = vld [vmem:[%s516 + $0x978] sm:$0xff]
                %549 = vst [vmem:[%s517 + $0x318] sm:$0xff] %v548
                %v550 = vld [vmem:[%s516 + $0x980] sm:$0xff]
                %551 = vst [vmem:[%s517 + $0x320] sm:$0xff] %v550
                %v552 = vld [vmem:[%s516 + $0x988] sm:$0xff]
                %553 = vst [vmem:[%s517 + $0x328] sm:$0xff] %v552
                %v554 = vld [vmem:[%s516 + $0xe10] sm:$0xff]
                %555 = vst [vmem:[%s517 + $0x480] sm:$0xff] %v554
                %v556 = vld [vmem:[%s516 + $0xe18] sm:$0xff]
                %557 = vst [vmem:[%s517 + $0x488] sm:$0xff] %v556
                %v558 = vld [vmem:[%s516 + $0xe20] sm:$0xff]
                %559 = vst [vmem:[%s517 + $0x490] sm:$0xff] %v558
                %v560 = vld [vmem:[%s516 + $0xe28] sm:$0xff]
                %561 = vst [vmem:[%s517 + $0x498] sm:$0xff] %v560
                %v562 = vld [vmem:[%s516 + $0xe30] sm:$0xff]
                %563 = vst [vmem:[%s517 + $0x4a0] sm:$0xff] %v562
                %v564 = vld [vmem:[%s516 + $0xe38] sm:$0xff]
                %565 = vst [vmem:[%s517 + $0x4a8] sm:$0xff] %v564
                %s566 = sadd.s32 1, %s515
                %p567 = scmp.ge.s32.totalorder %s566, %s503
                %s568 = scalar_select %p567, 0, %s566
                %s569 = smul.u32 %s568, 48
                %s570 = smul.u32 %s568, 48
                %s571 = scalar_lea.vmem %s506, %s569
                %s572 = scalar_lea.vmem %s508, %s570 [#allocation3]
              $region68: #{image_set_question_attention.1} parent=55 // loop_footer
                %s512 = sadd.s32 %s510, 1
              $region69: #{image_set_question_attention.1} parent=55 // loop_footer_branch
                %509 = sbr.rel target = $region65
              $region70: #{image_set_question_attention.1} parent=55 // loop_exit
                _
            $region56: #{image_set_question_attention.1} parent=51 // pred_fallthru
              _
            // Predicated region
            $region71: #{image_set_question_attention.1} parent=51 // pred_check
              _
            $region72: #{image_set_question_attention.1} parent=51 // pred_check_branch
              %574 = sbr.rel target = $region74
            $region73: #{image_set_question_attention.1} parent=51 // pred_region
              _
            $region74: #{image_set_question_attention.1} parent=51 // pred_fallthru
              _
          $region52: #{image_set_question_attention.1} parent=47 // pred_fallthru
            _
          %575 = vnop
        $region48: #{image_set_question_attention.1} parent=35 // pred_fallthru
          _
      $region36: #{image_set_question_attention.1} parent=5 // pred_fallthru
        _
      %p576 = scmp.le.s32.totalorder 1, %s16
      %p577 = scmp.lt.s32.totalorder %s16, 9
      %p578 = pnand %p576, %p577
      %p579 = pneg %p578
      // Predicated region
      $region75: #{image_set_question_attention.1} parent=5 // pred_check
        _
      $region76: #{image_set_question_attention.1} parent=5 // pred_check_branch
        %581 = sbr.rel (%p578) target = $region78
      $region77: #{image_set_question_attention.1} parent=5 // pred_region
        %s582 = ssub.s32 %s16, 1
        %s583 = sand.u32 %s200, 1
        %s584 = sand.u32 %s200, 1
        %s585 = smul.addr %s584, 1536
        %s586 = scalar_lea.vmem [#allocation3], %s585
        // Predicated region
        $region79: #{image_set_question_attention.1} parent=77 // pred_check
          %p587 = pneg %p213
        $region80: #{image_set_question_attention.1} parent=77 // pred_check_branch
          %589 = sbr.rel (%p587) target = $region82
        $region81: #{image_set_question_attention.1} parent=77 // pred_region
          _
        $region82: #{image_set_question_attention.1} parent=77 // pred_fallthru
          _
        %p590 = scmp.lt.s32.totalorder %s25, 1
        %s591 = scalar_select %p590, %s25, 1
        %s592 = smul.addr %s591, 6
        %s593 = scalar_lea.vmem %s0, %s592
        %p594 = pneg %p54
        %p595 = pneg %p51
        %p596 = scmp.lt.s32.totalorder %s25, 1
        %s597 = scalar_select %p596, %s25, 1
        %s598 = smul.addr %s597, 6
        %s599 = smul.addr %s598, 4
        %s600 = scalar_lea.vmem %s1, %s599
        %p601 = pneg %p80
        %p602 = pneg %p77
        %p603 = pneg %p101
        %p604 = pneg %p98
        %p605 = pneg %p122
        %p606 = pneg %p119
        %p607 = pneg %p143
        %p608 = pneg %p140
        %p609 = pneg %p164
        %p610 = pneg %p161
        %p611 = pneg %p185
        %p612 = pneg %p182
        %s613 = sand.u32 %s200, 1
        %s614 = sand.u32 %s200, 1
        %s615 = smul.addr %s614, 1536
        %s616 = scalar_lea.vmem [#allocation3], %s615
        %p617 = pneg %p213
        %p618 = pneg %p210
        %p619 = pneg %p239
        %p620 = pneg %p236
        %p621 = scmp.lt.s32.totalorder %s25, 1
        %s622 = scalar_select %p621, %s25, 1
        %s623 = smul.addr %s622, 4
        %s624 = scalar_lea.vmem %s8, %s623
        %p625 = pneg %p267
        %p626 = pneg %p264
        %s627 = sand.u32 %s254, 1
        %s628 = sand.u32 %s254, 1
        %s629 = smul.addr %s628, 384
        %s630 = scalar_lea.vmem [#allocation4], %s629
        %p631 = scmp.lt.s32.totalorder %s25, 1
        %s632 = scalar_select %p631, %s25, 1
        %s633 = smul.addr %s632, 6
        %s634 = scalar_lea.vmem %s0, %s633
        %p635 = scmp.lt.s32.totalorder %s25, 1
        %s636 = scalar_select %p635, %s25, 1
        %s637 = smul.addr %s636, 6
        %s638 = smul.addr %s637, 4
        %s639 = scalar_lea.vmem %s1, %s638
        %s640 = smul.u32 8, %s26
        %s641 = ssub.s32 25, %s640
        %p642 = scmp.lt.s32.totalorder %s641, 8
        %s643 = scalar_select %p642, %s641, 8
        %s644 = smul.u32 512, %s643
        %s645 = smul.u32 %s644, 6
        %p646 = scmp.lt.s32.totalorder %s25, 1
        %s647 = scalar_select %p646, %s25, 1
        %s648 = smul.addr %s647, 4
        %s649 = scalar_lea.vmem %s8, %s648
        %s650 = smul.u32 8, %s26
        %s651 = ssub.s32 25, %s650
        %p652 = scmp.lt.s32.totalorder %s651, 8
        %s653 = scalar_select %p652, %s651, 8
        %s654 = smul.u32 128, %s653
        %s655 = smul.u32 %s654, 6
        %p656 = scmp.eq.s32.totalorder %s26, 0
        // Predicated region
        $region83: #{image_set_question_attention.1} parent=77 // pred_check
          %p657 = pneg %p656
        $region84: #{image_set_question_attention.1} parent=77 // pred_check_branch
          %659 = sbr.rel (%p657) target = $region86
        $region85: #{image_set_question_attention.1} parent=77 // pred_region
          %v660 = vld [vmem:[%s634] sm:$0x3f]
          %v661 = vld [vmem:[%s2] sm:$0xff]
          %v662 = vld [vmem:[%s2 + $0x8] sm:$0xff]
          %v663 = vld [vmem:[%s2 + $0x10] sm:$0xff]
          %v664 = vld [vmem:[%s2 + $0x18] sm:$0xff]
          %v665 = vld [vmem:[%s2 + $0x20] sm:$0xff]
          %v666 = vld [vmem:[%s2 + $0x28] sm:$0xff]
          %v667 = vld [vmem:[%s2 + $0x30] sm:$0xff]
          %v668 = vld [vmem:[%s2 + $0x38] sm:$0xff]
          %v669 = vld [vmem:[%s2 + $0x40] sm:$0xff]
          %v670 = vld [vmem:[%s2 + $0x48] sm:$0xff]
          %v671 = vld [vmem:[%s2 + $0x50] sm:$0xff]
          %v672 = vld [vmem:[%s2 + $0x58] sm:$0xff]
          %v673 = vld [vmem:[%s2 + $0x60] sm:$0xff]
          %v674 = vld [vmem:[%s2 + $0x68] sm:$0xff]
          %v675 = vld [vmem:[%s2 + $0x70] sm:$0xff]
          %v676 = vld [vmem:[%s2 + $0x78] sm:$0xff]
          %v677 = vld [vmem:[%s2 + $0x80] sm:$0xff]
          %v678 = vld [vmem:[%s2 + $0x88] sm:$0xff]
          %v679 = vld [vmem:[%s2 + $0x90] sm:$0xff]
          %v680 = vld [vmem:[%s2 + $0x98] sm:$0xff]
          %v681 = vld [vmem:[%s2 + $0xa0] sm:$0xff]
          %v682 = vld [vmem:[%s2 + $0xa8] sm:$0xff]
          %v683 = vld [vmem:[%s2 + $0xb0] sm:$0xff]
          %v684 = vld [vmem:[%s2 + $0xb8] sm:$0xff]
          %v685 = vld [vmem:[%s2 + $0xc0] sm:$0xff]
          %v686 = vld [vmem:[%s2 + $0xc8] sm:$0xff]
          %v687 = vld [vmem:[%s2 + $0xd0] sm:$0xff]
          %v688 = vld [vmem:[%s2 + $0xd8] sm:$0xff]
          %v689 = vld [vmem:[%s2 + $0xe0] sm:$0xff]
          %v690 = vld [vmem:[%s2 + $0xe8] sm:$0xff]
          %v691 = vld [vmem:[%s2 + $0xf0] sm:$0xff]
          %v692 = vld [vmem:[%s2 + $0xf8] sm:$0xff]
          %v693 = vld [vmem:[%s2 + $0x100] sm:$0xff]
          %v694 = vld [vmem:[%s2 + $0x108] sm:$0xff]
          %v695 = vld [vmem:[%s2 + $0x110] sm:$0xff]
          %v696 = vld [vmem:[%s2 + $0x118] sm:$0xff]
          %v697 = vld [vmem:[%s2 + $0x120] sm:$0xff]
          %v698 = vld [vmem:[%s2 + $0x128] sm:$0xff]
          %v699 = vld [vmem:[%s2 + $0x130] sm:$0xff]
          %v700 = vld [vmem:[%s2 + $0x138] sm:$0xff]
          %v701 = vld [vmem:[%s2 + $0x140] sm:$0xff]
          %v702 = vld [vmem:[%s2 + $0x148] sm:$0xff]
          %v703 = vld [vmem:[%s2 + $0x150] sm:$0xff]
          %v704 = vld [vmem:[%s2 + $0x158] sm:$0xff]
          %v705 = vld [vmem:[%s2 + $0x160] sm:$0xff]
          %v706 = vld [vmem:[%s2 + $0x168] sm:$0xff]
          %v707 = vld [vmem:[%s2 + $0x170] sm:$0xff]
          %v708 = vld [vmem:[%s2 + $0x178] sm:$0xff]
          %v709 = vld [vmem:[%s2 + $0x180] sm:$0xff]
          %v710 = vld [vmem:[%s2 + $0x188] sm:$0xff]
          %v711 = vld [vmem:[%s2 + $0x190] sm:$0xff]
          %v712 = vld [vmem:[%s2 + $0x198] sm:$0xff]
          %v713 = vld [vmem:[%s2 + $0x1a0] sm:$0xff]
          %v714 = vld [vmem:[%s2 + $0x1a8] sm:$0xff]
          %v715 = vld [vmem:[%s2 + $0x1b0] sm:$0xff]
          %v716 = vld [vmem:[%s2 + $0x1b8] sm:$0xff]
          %v717 = vld [vmem:[%s2 + $0x1c0] sm:$0xff]
          %v718 = vld [vmem:[%s2 + $0x1c8] sm:$0xff]
          %v719 = vld [vmem:[%s2 + $0x1d0] sm:$0xff]
          %v720 = vld [vmem:[%s2 + $0x1d8] sm:$0xff]
          %v721 = vld [vmem:[%s2 + $0x1e0] sm:$0xff]
          %v722 = vld [vmem:[%s2 + $0x1e8] sm:$0xff]
          %v723 = vld [vmem:[%s2 + $0x1f0] sm:$0xff]
          %v724 = vld [vmem:[%s2 + $0x1f8] sm:$0xff]
          %v725 = vld [vmem:[%s2 + $0x200] sm:$0xff]
          %v726 = vld [vmem:[%s2 + $0x208] sm:$0xff]
          %v727 = vld [vmem:[%s2 + $0x210] sm:$0xff]
          %v728 = vld [vmem:[%s2 + $0x218] sm:$0xff]
          %v729 = vld [vmem:[%s2 + $0x220] sm:$0xff]
          %v730 = vld [vmem:[%s2 + $0x228] sm:$0xff]
          %v731 = vld [vmem:[%s2 + $0x230] sm:$0xff]
          %v732 = vld [vmem:[%s2 + $0x238] sm:$0xff]
          %v733 = vld [vmem:[%s2 + $0x240] sm:$0xff]
          %v734 = vld [vmem:[%s2 + $0x248] sm:$0xff]
          %v735 = vld [vmem:[%s2 + $0x250] sm:$0xff]
          %v736 = vld [vmem:[%s2 + $0x258] sm:$0xff]
          %v737 = vld [vmem:[%s2 + $0x260] sm:$0xff]
          %v738 = vld [vmem:[%s2 + $0x268] sm:$0xff]
          %v739 = vld [vmem:[%s2 + $0x270] sm:$0xff]
          %v740 = vld [vmem:[%s2 + $0x278] sm:$0xff]
          %v741 = vld [vmem:[%s2 + $0x280] sm:$0xff]
          %v742 = vld [vmem:[%s2 + $0x288] sm:$0xff]
          %v743 = vld [vmem:[%s2 + $0x290] sm:$0xff]
          %v744 = vld [vmem:[%s2 + $0x298] sm:$0xff]
          %v745 = vld [vmem:[%s2 + $0x2a0] sm:$0xff]
          %v746 = vld [vmem:[%s2 + $0x2a8] sm:$0xff]
          %v747 = vld [vmem:[%s2 + $0x2b0] sm:$0xff]
          %v748 = vld [vmem:[%s2 + $0x2b8] sm:$0xff]
          %v749 = vld [vmem:[%s2 + $0x2c0] sm:$0xff]
          %v750 = vld [vmem:[%s2 + $0x2c8] sm:$0xff]
          %v751 = vld [vmem:[%s2 + $0x2d0] sm:$0xff]
          %v752 = vld [vmem:[%s2 + $0x2d8] sm:$0xff]
          %v753 = vld [vmem:[%s2 + $0x2e0] sm:$0xff]
          %v754 = vld [vmem:[%s2 + $0x2e8] sm:$0xff]
          %v755 = vld [vmem:[%s2 + $0x2f0] sm:$0xff]
          %v756 = vld [vmem:[%s2 + $0x2f8] sm:$0xff]
          %v757 = vld [vmem:[%s2 + $0x300] sm:$0xff]
          %v758 = vld [vmem:[%s2 + $0x308] sm:$0xff]
          %v759 = vld [vmem:[%s2 + $0x310] sm:$0xff]
          %v760 = vld [vmem:[%s2 + $0x318] sm:$0xff]
          %v761 = vld [vmem:[%s2 + $0x320] sm:$0xff]
          %v762 = vld [vmem:[%s2 + $0x328] sm:$0xff]
          %v763 = vld [vmem:[%s2 + $0x330] sm:$0xff]
          %v764 = vld [vmem:[%s2 + $0x338] sm:$0xff]
          %v765 = vld [vmem:[%s2 + $0x340] sm:$0xff]
          %v766 = vld [vmem:[%s2 + $0x348] sm:$0xff]
          %v767 = vld [vmem:[%s2 + $0x350] sm:$0xff]
          %v768 = vld [vmem:[%s2 + $0x358] sm:$0xff]
          %v769 = vld [vmem:[%s2 + $0x360] sm:$0xff]
          %v770 = vld [vmem:[%s2 + $0x368] sm:$0xff]
          %v771 = vld [vmem:[%s2 + $0x370] sm:$0xff]
          %v772 = vld [vmem:[%s2 + $0x378] sm:$0xff]
          %v773 = vld [vmem:[%s2 + $0x380] sm:$0xff]
          %v774 = vld [vmem:[%s2 + $0x388] sm:$0xff]
          %v775 = vld [vmem:[%s2 + $0x390] sm:$0xff]
          %v776 = vld [vmem:[%s2 + $0x398] sm:$0xff]
          %v777 = vld [vmem:[%s2 + $0x3a0] sm:$0xff]
          %v778 = vld [vmem:[%s2 + $0x3a8] sm:$0xff]
          %v779 = vld [vmem:[%s2 + $0x3b0] sm:$0xff]
          %v780 = vld [vmem:[%s2 + $0x3b8] sm:$0xff]
          %v781 = vld [vmem:[%s2 + $0x3c0] sm:$0xff]
          %v782 = vld [vmem:[%s2 + $0x3c8] sm:$0xff]
          %v783 = vld [vmem:[%s2 + $0x3d0] sm:$0xff]
          %v784 = vld [vmem:[%s2 + $0x3d8] sm:$0xff]
          %v785 = vld [vmem:[%s2 + $0x3e0] sm:$0xff]
          %v786 = vld [vmem:[%s2 + $0x3e8] sm:$0xff]
          %v787 = vld [vmem:[%s2 + $0x3f0] sm:$0xff]
          %v788 = vld [vmem:[%s2 + $0x3f8] sm:$0xff]
          %v789 = vld [vmem:[%s2 + $0x400] sm:$0xff]
          %v790 = vld [vmem:[%s2 + $0x408] sm:$0xff]
          %v791 = vld [vmem:[%s2 + $0x410] sm:$0xff]
          %v792 = vld [vmem:[%s2 + $0x418] sm:$0xff]
          %v793 = vld [vmem:[%s2 + $0x420] sm:$0xff]
          %v794 = vld [vmem:[%s2 + $0x428] sm:$0xff]
          %v795 = vld [vmem:[%s2 + $0x430] sm:$0xff]
          %v796 = vld [vmem:[%s2 + $0x438] sm:$0xff]
          %v797 = vld [vmem:[%s2 + $0x440] sm:$0xff]
          %v798 = vld [vmem:[%s2 + $0x448] sm:$0xff]
          %v799 = vld [vmem:[%s2 + $0x450] sm:$0xff]
          %v800 = vld [vmem:[%s2 + $0x458] sm:$0xff]
          %v801 = vld [vmem:[%s2 + $0x460] sm:$0xff]
          %v802 = vld [vmem:[%s2 + $0x468] sm:$0xff]
          %v803 = vld [vmem:[%s2 + $0x470] sm:$0xff]
          %v804 = vld [vmem:[%s2 + $0x478] sm:$0xff]
          %v805 = vld [vmem:[%s2 + $0x480] sm:$0xff]
          %v806 = vld [vmem:[%s2 + $0x488] sm:$0xff]
          %v807 = vld [vmem:[%s2 + $0x490] sm:$0xff]
          %v808 = vld [vmem:[%s2 + $0x498] sm:$0xff]
          %v809 = vld [vmem:[%s2 + $0x4a0] sm:$0xff]
          %v810 = vld [vmem:[%s2 + $0x4a8] sm:$0xff]
          %v811 = vld [vmem:[%s2 + $0x4b0] sm:$0xff]
          %v812 = vld [vmem:[%s2 + $0x4b8] sm:$0xff]
          %v813 = vld [vmem:[%s2 + $0x4c0] sm:$0xff]
          %v814 = vld [vmem:[%s2 + $0x4c8] sm:$0xff]
          %v815 = vld [vmem:[%s2 + $0x4d0] sm:$0xff]
          %v816 = vld [vmem:[%s2 + $0x4d8] sm:$0xff]
          %v817 = vld [vmem:[%s2 + $0x4e0] sm:$0xff]
          %v818 = vld [vmem:[%s2 + $0x4e8] sm:$0xff]
          %v819 = vld [vmem:[%s2 + $0x4f0] sm:$0xff]
          %v820 = vld [vmem:[%s2 + $0x4f8] sm:$0xff]
          %v821 = vld [vmem:[%s2 + $0x500] sm:$0xff]
          %v822 = vld [vmem:[%s2 + $0x508] sm:$0xff]
          %v823 = vld [vmem:[%s2 + $0x510] sm:$0xff]
          %v824 = vld [vmem:[%s2 + $0x518] sm:$0xff]
          %v825 = vld [vmem:[%s2 + $0x520] sm:$0xff]
          %v826 = vld [vmem:[%s2 + $0x528] sm:$0xff]
          %v827 = vld [vmem:[%s2 + $0x530] sm:$0xff]
          %v828 = vld [vmem:[%s2 + $0x538] sm:$0xff]
          %v829 = vld [vmem:[%s2 + $0x540] sm:$0xff]
          %v830 = vld [vmem:[%s2 + $0x548] sm:$0xff]
          %v831 = vld [vmem:[%s2 + $0x550] sm:$0xff]
          %v832 = vld [vmem:[%s2 + $0x558] sm:$0xff]
          %v833 = vld [vmem:[%s2 + $0x560] sm:$0xff]
          %v834 = vld [vmem:[%s2 + $0x568] sm:$0xff]
          %v835 = vld [vmem:[%s2 + $0x570] sm:$0xff]
          %v836 = vld [vmem:[%s2 + $0x578] sm:$0xff]
          %v837 = vld [vmem:[%s2 + $0x580] sm:$0xff]
          %v838 = vld [vmem:[%s2 + $0x588] sm:$0xff]
          %v839 = vld [vmem:[%s2 + $0x590] sm:$0xff]
          %v840 = vld [vmem:[%s2 + $0x598] sm:$0xff]
          %v841 = vld [vmem:[%s2 + $0x5a0] sm:$0xff]
          %v842 = vld [vmem:[%s2 + $0x5a8] sm:$0xff]
          %v843 = vld [vmem:[%s2 + $0x5b0] sm:$0xff]
          %v844 = vld [vmem:[%s2 + $0x5b8] sm:$0xff]
          %v845 = vld [vmem:[%s2 + $0x5c0] sm:$0xff]
          %v846 = vld [vmem:[%s2 + $0x5c8] sm:$0xff]
          %v847 = vld [vmem:[%s2 + $0x5d0] sm:$0xff]
          %v848 = vld [vmem:[%s2 + $0x5d8] sm:$0xff]
          %v849 = vld [vmem:[%s2 + $0x5e0] sm:$0xff]
          %v850 = vld [vmem:[%s2 + $0x5e8] sm:$0xff]
          %v851 = vld [vmem:[%s2 + $0x5f0] sm:$0xff]
          %v852 = vld [vmem:[%s2 + $0x5f8] sm:$0xff]
          %v853 = vld [vmem:[%s2 + $0x600] sm:$0xff]
          %v854 = vld [vmem:[%s2 + $0x608] sm:$0xff]
          %v855 = vld [vmem:[%s2 + $0x610] sm:$0xff]
          %v856 = vld [vmem:[%s2 + $0x618] sm:$0xff]
          %v857 = vld [vmem:[%s2 + $0x620] sm:$0xff]
          %v858 = vld [vmem:[%s2 + $0x628] sm:$0xff]
          %v859 = vld [vmem:[%s2 + $0x630] sm:$0xff]
          %v860 = vld [vmem:[%s2 + $0x638] sm:$0xff]
          %v861 = vld [vmem:[%s2 + $0x640] sm:$0xff]
          %v862 = vld [vmem:[%s2 + $0x648] sm:$0xff]
          %v863 = vld [vmem:[%s2 + $0x650] sm:$0xff]
          %v864 = vld [vmem:[%s2 + $0x658] sm:$0xff]
          %v865 = vld [vmem:[%s2 + $0x660] sm:$0xff]
          %v866 = vld [vmem:[%s2 + $0x668] sm:$0xff]
          %v867 = vld [vmem:[%s2 + $0x670] sm:$0xff]
          %v868 = vld [vmem:[%s2 + $0x678] sm:$0xff]
          %v869 = vld [vmem:[%s2 + $0x680] sm:$0xff]
          %v870 = vld [vmem:[%s2 + $0x688] sm:$0xff]
          %v871 = vld [vmem:[%s2 + $0x690] sm:$0xff]
          %v872 = vld [vmem:[%s2 + $0x698] sm:$0xff]
          %v873 = vld [vmem:[%s2 + $0x6a0] sm:$0xff]
          %v874 = vld [vmem:[%s2 + $0x6a8] sm:$0xff]
          %v875 = vld [vmem:[%s2 + $0x6b0] sm:$0xff]
          %v876 = vld [vmem:[%s2 + $0x6b8] sm:$0xff]
          %v877 = vld [vmem:[%s2 + $0x6c0] sm:$0xff]
          %v878 = vld [vmem:[%s2 + $0x6c8] sm:$0xff]
          %v879 = vld [vmem:[%s2 + $0x6d0] sm:$0xff]
          %v880 = vld [vmem:[%s2 + $0x6d8] sm:$0xff]
          %v881 = vld [vmem:[%s2 + $0x6e0] sm:$0xff]
          %v882 = vld [vmem:[%s2 + $0x6e8] sm:$0xff]
          %v883 = vld [vmem:[%s2 + $0x6f0] sm:$0xff]
          %v884 = vld [vmem:[%s2 + $0x6f8] sm:$0xff]
          %v885 = vld [vmem:[%s2 + $0x700] sm:$0xff]
          %v886 = vld [vmem:[%s2 + $0x708] sm:$0xff]
          %v887 = vld [vmem:[%s2 + $0x710] sm:$0xff]
          %v888 = vld [vmem:[%s2 + $0x718] sm:$0xff]
          %v889 = vld [vmem:[%s2 + $0x720] sm:$0xff]
          %v890 = vld [vmem:[%s2 + $0x728] sm:$0xff]
          %v891 = vld [vmem:[%s2 + $0x730] sm:$0xff]
          %v892 = vld [vmem:[%s2 + $0x738] sm:$0xff]
          %v893 = vld [vmem:[%s2 + $0x740] sm:$0xff]
          %v894 = vld [vmem:[%s2 + $0x748] sm:$0xff]
          %v895 = vld [vmem:[%s2 + $0x750] sm:$0xff]
          %v896 = vld [vmem:[%s2 + $0x758] sm:$0xff]
          %v897 = vld [vmem:[%s2 + $0x760] sm:$0xff]
          %v898 = vld [vmem:[%s2 + $0x768] sm:$0xff]
          %v899 = vld [vmem:[%s2 + $0x770] sm:$0xff]
          %v900 = vld [vmem:[%s2 + $0x778] sm:$0xff]
          %v901 = vld [vmem:[%s2 + $0x780] sm:$0xff]
          %v902 = vld [vmem:[%s2 + $0x788] sm:$0xff]
          %v903 = vld [vmem:[%s2 + $0x790] sm:$0xff]
          %v904 = vld [vmem:[%s2 + $0x798] sm:$0xff]
          %v905 = vld [vmem:[%s2 + $0x7a0] sm:$0xff]
          %v906 = vld [vmem:[%s2 + $0x7a8] sm:$0xff]
          %v907 = vld [vmem:[%s2 + $0x7b0] sm:$0xff]
          %v908 = vld [vmem:[%s2 + $0x7b8] sm:$0xff]
          %v909 = vld [vmem:[%s2 + $0x7c0] sm:$0xff]
          %v910 = vld [vmem:[%s2 + $0x7c8] sm:$0xff]
          %v911 = vld [vmem:[%s2 + $0x7d0] sm:$0xff]
          %v912 = vld [vmem:[%s2 + $0x7d8] sm:$0xff]
          %v913 = vld [vmem:[%s2 + $0x7e0] sm:$0xff]
          %v914 = vld [vmem:[%s2 + $0x7e8] sm:$0xff]
          %v915 = vld [vmem:[%s2 + $0x7f0] sm:$0xff]
          %v916 = vld [vmem:[%s2 + $0x7f8] sm:$0xff]
          %v917 = vld [vmem:[%s2 + $0x800] sm:$0xff]
          %v918 = vld [vmem:[%s2 + $0x808] sm:$0xff]
          %v919 = vld [vmem:[%s2 + $0x810] sm:$0xff]
          %v920 = vld [vmem:[%s2 + $0x818] sm:$0xff]
          %v921 = vld [vmem:[%s2 + $0x820] sm:$0xff]
          %v922 = vld [vmem:[%s2 + $0x828] sm:$0xff]
          %v923 = vld [vmem:[%s2 + $0x830] sm:$0xff]
          %v924 = vld [vmem:[%s2 + $0x838] sm:$0xff]
          %v925 = vld [vmem:[%s2 + $0x840] sm:$0xff]
          %v926 = vld [vmem:[%s2 + $0x848] sm:$0xff]
          %v927 = vld [vmem:[%s2 + $0x850] sm:$0xff]
          %v928 = vld [vmem:[%s2 + $0x858] sm:$0xff]
          %v929 = vld [vmem:[%s2 + $0x860] sm:$0xff]
          %v930 = vld [vmem:[%s2 + $0x868] sm:$0xff]
          %v931 = vld [vmem:[%s2 + $0x870] sm:$0xff]
          %v932 = vld [vmem:[%s2 + $0x878] sm:$0xff]
          %v933 = vld [vmem:[%s2 + $0x880] sm:$0xff]
          %v934 = vld [vmem:[%s2 + $0x888] sm:$0xff]
          %v935 = vld [vmem:[%s2 + $0x890] sm:$0xff]
          %v936 = vld [vmem:[%s2 + $0x898] sm:$0xff]
          %v937 = vld [vmem:[%s2 + $0x8a0] sm:$0xff]
          %v938 = vld [vmem:[%s2 + $0x8a8] sm:$0xff]
          %v939 = vld [vmem:[%s2 + $0x8b0] sm:$0xff]
          %v940 = vld [vmem:[%s2 + $0x8b8] sm:$0xff]
          %v941 = vld [vmem:[%s2 + $0x8c0] sm:$0xff]
          %v942 = vld [vmem:[%s2 + $0x8c8] sm:$0xff]
          %v943 = vld [vmem:[%s2 + $0x8d0] sm:$0xff]
          %v944 = vld [vmem:[%s2 + $0x8d8] sm:$0xff]
          %v945 = vld [vmem:[%s2 + $0x8e0] sm:$0xff]
          %v946 = vld [vmem:[%s2 + $0x8e8] sm:$0xff]
          %v947 = vld [vmem:[%s2 + $0x8f0] sm:$0xff]
          %v948 = vld [vmem:[%s2 + $0x8f8] sm:$0xff]
          %v949 = vld [vmem:[%s2 + $0x900] sm:$0xff]
          %v950 = vld [vmem:[%s2 + $0x908] sm:$0xff]
          %v951 = vld [vmem:[%s2 + $0x910] sm:$0xff]
          %v952 = vld [vmem:[%s2 + $0x918] sm:$0xff]
          %v953 = vld [vmem:[%s2 + $0x920] sm:$0xff]
          %v954 = vld [vmem:[%s2 + $0x928] sm:$0xff]
          %v955 = vld [vmem:[%s2 + $0x930] sm:$0xff]
          %v956 = vld [vmem:[%s2 + $0x938] sm:$0xff]
          %v957 = vld [vmem:[%s2 + $0x940] sm:$0xff]
          %v958 = vld [vmem:[%s2 + $0x948] sm:$0xff]
          %v959 = vld [vmem:[%s2 + $0x950] sm:$0xff]
          %v960 = vld [vmem:[%s2 + $0x958] sm:$0xff]
          %v961 = vld [vmem:[%s2 + $0x960] sm:$0xff]
          %v962 = vld [vmem:[%s2 + $0x968] sm:$0xff]
          %v963 = vld [vmem:[%s2 + $0x970] sm:$0xff]
          %v964 = vld [vmem:[%s2 + $0x978] sm:$0xff]
          %v965 = vld [vmem:[%s2 + $0x980] sm:$0xff]
          %v966 = vld [vmem:[%s2 + $0x988] sm:$0xff]
          %v967 = vld [vmem:[%s2 + $0x990] sm:$0xff]
          %v968 = vld [vmem:[%s2 + $0x998] sm:$0xff]
          %v969 = vld [vmem:[%s2 + $0x9a0] sm:$0xff]
          %v970 = vld [vmem:[%s2 + $0x9a8] sm:$0xff]
          %v971 = vld [vmem:[%s2 + $0x9b0] sm:$0xff]
          %v972 = vld [vmem:[%s2 + $0x9b8] sm:$0xff]
          %v973 = vld [vmem:[%s2 + $0x9c0] sm:$0xff]
          %v974 = vld [vmem:[%s2 + $0x9c8] sm:$0xff]
          %v975 = vld [vmem:[%s2 + $0x9d0] sm:$0xff]
          %v976 = vld [vmem:[%s2 + $0x9d8] sm:$0xff]
          %v977 = vld [vmem:[%s2 + $0x9e0] sm:$0xff]
          %v978 = vld [vmem:[%s2 + $0x9e8] sm:$0xff]
          %v979 = vld [vmem:[%s2 + $0x9f0] sm:$0xff]
          %v980 = vld [vmem:[%s2 + $0x9f8] sm:$0xff]
          %v981 = vld [vmem:[%s2 + $0xa00] sm:$0xff]
          %v982 = vld [vmem:[%s2 + $0xa08] sm:$0xff]
          %v983 = vld [vmem:[%s2 + $0xa10] sm:$0xff]
          %v984 = vld [vmem:[%s2 + $0xa18] sm:$0xff]
          %v985 = vld [vmem:[%s2 + $0xa20] sm:$0xff]
          %v986 = vld [vmem:[%s2 + $0xa28] sm:$0xff]
          %v987 = vld [vmem:[%s2 + $0xa30] sm:$0xff]
          %v988 = vld [vmem:[%s2 + $0xa38] sm:$0xff]
          %v989 = vld [vmem:[%s2 + $0xa40] sm:$0xff]
          %v990 = vld [vmem:[%s2 + $0xa48] sm:$0xff]
          %v991 = vld [vmem:[%s2 + $0xa50] sm:$0xff]
          %v992 = vld [vmem:[%s2 + $0xa58] sm:$0xff]
          %v993 = vld [vmem:[%s2 + $0xa60] sm:$0xff]
          %v994 = vld [vmem:[%s2 + $0xa68] sm:$0xff]
          %v995 = vld [vmem:[%s2 + $0xa70] sm:$0xff]
          %v996 = vld [vmem:[%s2 + $0xa78] sm:$0xff]
          %v997 = vld [vmem:[%s2 + $0xa80] sm:$0xff]
          %v998 = vld [vmem:[%s2 + $0xa88] sm:$0xff]
          %v999 = vld [vmem:[%s2 + $0xa90] sm:$0xff]
          %v1000 = vld [vmem:[%s2 + $0xa98] sm:$0xff]
          %v1001 = vld [vmem:[%s2 + $0xaa0] sm:$0xff]
          %v1002 = vld [vmem:[%s2 + $0xaa8] sm:$0xff]
          %v1003 = vld [vmem:[%s2 + $0xab0] sm:$0xff]
          %v1004 = vld [vmem:[%s2 + $0xab8] sm:$0xff]
          %v1005 = vld [vmem:[%s2 + $0xac0] sm:$0xff]
          %v1006 = vld [vmem:[%s2 + $0xac8] sm:$0xff]
          %v1007 = vld [vmem:[%s2 + $0xad0] sm:$0xff]
          %v1008 = vld [vmem:[%s2 + $0xad8] sm:$0xff]
          %v1009 = vld [vmem:[%s2 + $0xae0] sm:$0xff]
          %v1010 = vld [vmem:[%s2 + $0xae8] sm:$0xff]
          %v1011 = vld [vmem:[%s2 + $0xaf0] sm:$0xff]
          %v1012 = vld [vmem:[%s2 + $0xaf8] sm:$0xff]
          %v1013 = vld [vmem:[%s2 + $0xb00] sm:$0xff]
          %v1014 = vld [vmem:[%s2 + $0xb08] sm:$0xff]
          %v1015 = vld [vmem:[%s2 + $0xb10] sm:$0xff]
          %v1016 = vld [vmem:[%s2 + $0xb18] sm:$0xff]
          %v1017 = vld [vmem:[%s2 + $0xb20] sm:$0xff]
          %v1018 = vld [vmem:[%s2 + $0xb28] sm:$0xff]
          %v1019 = vld [vmem:[%s2 + $0xb30] sm:$0xff]
          %v1020 = vld [vmem:[%s2 + $0xb38] sm:$0xff]
          %v1021 = vld [vmem:[%s2 + $0xb40] sm:$0xff]
          %v1022 = vld [vmem:[%s2 + $0xb48] sm:$0xff]
          %v1023 = vld [vmem:[%s2 + $0xb50] sm:$0xff]
          %v1024 = vld [vmem:[%s2 + $0xb58] sm:$0xff]
          %v1025 = vld [vmem:[%s2 + $0xb60] sm:$0xff]
          %v1026 = vld [vmem:[%s2 + $0xb68] sm:$0xff]
          %v1027 = vld [vmem:[%s2 + $0xb70] sm:$0xff]
          %v1028 = vld [vmem:[%s2 + $0xb78] sm:$0xff]
          %v1029 = vld [vmem:[%s2 + $0xb80] sm:$0xff]
          %v1030 = vld [vmem:[%s2 + $0xb88] sm:$0xff]
          %v1031 = vld [vmem:[%s2 + $0xb90] sm:$0xff]
          %v1032 = vld [vmem:[%s2 + $0xb98] sm:$0xff]
          %v1033 = vld [vmem:[%s2 + $0xba0] sm:$0xff]
          %v1034 = vld [vmem:[%s2 + $0xba8] sm:$0xff]
          %v1035 = vld [vmem:[%s2 + $0xbb0] sm:$0xff]
          %v1036 = vld [vmem:[%s2 + $0xbb8] sm:$0xff]
          %v1037 = vld [vmem:[%s2 + $0xbc0] sm:$0xff]
          %v1038 = vld [vmem:[%s2 + $0xbc8] sm:$0xff]
          %v1039 = vld [vmem:[%s2 + $0xbd0] sm:$0xff]
          %v1040 = vld [vmem:[%s2 + $0xbd8] sm:$0xff]
          %v1041 = vld [vmem:[%s2 + $0xbe0] sm:$0xff]
          %v1042 = vld [vmem:[%s2 + $0xbe8] sm:$0xff]
          %v1043 = vld [vmem:[%s2 + $0xbf0] sm:$0xff]
          %v1044 = vld [vmem:[%s2 + $0xbf8] sm:$0xff]
          %v1045 = vld [vmem:[%s2 + $0xc00] sm:$0xff]
          %v1046 = vld [vmem:[%s2 + $0xc08] sm:$0xff]
          %v1047 = vld [vmem:[%s2 + $0xc10] sm:$0xff]
          %v1048 = vld [vmem:[%s2 + $0xc18] sm:$0xff]
          %v1049 = vld [vmem:[%s2 + $0xc20] sm:$0xff]
          %v1050 = vld [vmem:[%s2 + $0xc28] sm:$0xff]
          %v1051 = vld [vmem:[%s2 + $0xc30] sm:$0xff]
          %v1052 = vld [vmem:[%s2 + $0xc38] sm:$0xff]
          %v1053 = vld [vmem:[%s2 + $0xc40] sm:$0xff]
          %v1054 = vld [vmem:[%s2 + $0xc48] sm:$0xff]
          %v1055 = vld [vmem:[%s2 + $0xc50] sm:$0xff]
          %v1056 = vld [vmem:[%s2 + $0xc58] sm:$0xff]
          %v1057 = vld [vmem:[%s2 + $0xc60] sm:$0xff]
          %v1058 = vld [vmem:[%s2 + $0xc68] sm:$0xff]
          %v1059 = vld [vmem:[%s2 + $0xc70] sm:$0xff]
          %v1060 = vld [vmem:[%s2 + $0xc78] sm:$0xff]
          %v1061 = vld [vmem:[%s2 + $0xc80] sm:$0xff]
          %v1062 = vld [vmem:[%s2 + $0xc88] sm:$0xff]
          %v1063 = vld [vmem:[%s2 + $0xc90] sm:$0xff]
          %v1064 = vld [vmem:[%s2 + $0xc98] sm:$0xff]
          %v1065 = vld [vmem:[%s2 + $0xca0] sm:$0xff]
          %v1066 = vld [vmem:[%s2 + $0xca8] sm:$0xff]
          %v1067 = vld [vmem:[%s2 + $0xcb0] sm:$0xff]
          %v1068 = vld [vmem:[%s2 + $0xcb8] sm:$0xff]
          %v1069 = vld [vmem:[%s2 + $0xcc0] sm:$0xff]
          %v1070 = vld [vmem:[%s2 + $0xcc8] sm:$0xff]
          %v1071 = vld [vmem:[%s2 + $0xcd0] sm:$0xff]
          %v1072 = vld [vmem:[%s2 + $0xcd8] sm:$0xff]
          %v1073 = vld [vmem:[%s2 + $0xce0] sm:$0xff]
          %v1074 = vld [vmem:[%s2 + $0xce8] sm:$0xff]
          %v1075 = vld [vmem:[%s2 + $0xcf0] sm:$0xff]
          %v1076 = vld [vmem:[%s2 + $0xcf8] sm:$0xff]
          %v1077 = vld [vmem:[%s2 + $0xd00] sm:$0xff]
          %v1078 = vld [vmem:[%s2 + $0xd08] sm:$0xff]
          %v1079 = vld [vmem:[%s2 + $0xd10] sm:$0xff]
          %v1080 = vld [vmem:[%s2 + $0xd18] sm:$0xff]
          %v1081 = vld [vmem:[%s2 + $0xd20] sm:$0xff]
          %v1082 = vld [vmem:[%s2 + $0xd28] sm:$0xff]
          %v1083 = vld [vmem:[%s2 + $0xd30] sm:$0xff]
          %v1084 = vld [vmem:[%s2 + $0xd38] sm:$0xff]
          %v1085 = vld [vmem:[%s2 + $0xd40] sm:$0xff]
          %v1086 = vld [vmem:[%s2 + $0xd48] sm:$0xff]
          %v1087 = vld [vmem:[%s2 + $0xd50] sm:$0xff]
          %v1088 = vld [vmem:[%s2 + $0xd58] sm:$0xff]
          %v1089 = vld [vmem:[%s2 + $0xd60] sm:$0xff]
          %v1090 = vld [vmem:[%s2 + $0xd68] sm:$0xff]
          %v1091 = vld [vmem:[%s2 + $0xd70] sm:$0xff]
          %v1092 = vld [vmem:[%s2 + $0xd78] sm:$0xff]
          %v1093 = vld [vmem:[%s2 + $0xd80] sm:$0xff]
          %v1094 = vld [vmem:[%s2 + $0xd88] sm:$0xff]
          %v1095 = vld [vmem:[%s2 + $0xd90] sm:$0xff]
          %v1096 = vld [vmem:[%s2 + $0xd98] sm:$0xff]
          %v1097 = vld [vmem:[%s2 + $0xda0] sm:$0xff]
          %v1098 = vld [vmem:[%s2 + $0xda8] sm:$0xff]
          %v1099 = vld [vmem:[%s2 + $0xdb0] sm:$0xff]
          %v1100 = vld [vmem:[%s2 + $0xdb8] sm:$0xff]
          %v1101 = vld [vmem:[%s2 + $0xdc0] sm:$0xff]
          %v1102 = vld [vmem:[%s2 + $0xdc8] sm:$0xff]
          %v1103 = vld [vmem:[%s2 + $0xdd0] sm:$0xff]
          %v1104 = vld [vmem:[%s2 + $0xdd8] sm:$0xff]
          %v1105 = vld [vmem:[%s2 + $0xde0] sm:$0xff]
          %v1106 = vld [vmem:[%s2 + $0xde8] sm:$0xff]
          %v1107 = vld [vmem:[%s2 + $0xdf0] sm:$0xff]
          %v1108 = vld [vmem:[%s2 + $0xdf8] sm:$0xff]
          %v1109 = vld [vmem:[%s2 + $0xe00] sm:$0xff]
          %v1110 = vld [vmem:[%s2 + $0xe08] sm:$0xff]
          %v1111 = vld [vmem:[%s2 + $0xe10] sm:$0xff]
          %v1112 = vld [vmem:[%s2 + $0xe18] sm:$0xff]
          %v1113 = vld [vmem:[%s2 + $0xe20] sm:$0xff]
          %v1114 = vld [vmem:[%s2 + $0xe28] sm:$0xff]
          %v1115 = vld [vmem:[%s2 + $0xe30] sm:$0xff]
          %v1116 = vld [vmem:[%s2 + $0xe38] sm:$0xff]
          %v1117 = vld [vmem:[%s2 + $0xe40] sm:$0xff]
          %v1118 = vld [vmem:[%s2 + $0xe48] sm:$0xff]
          %v1119 = vld [vmem:[%s2 + $0xe50] sm:$0xff]
          %v1120 = vld [vmem:[%s2 + $0xe58] sm:$0xff]
          %v1121 = vld [vmem:[%s2 + $0xe60] sm:$0xff]
          %v1122 = vld [vmem:[%s2 + $0xe68] sm:$0xff]
          %v1123 = vld [vmem:[%s2 + $0xe70] sm:$0xff]
          %v1124 = vld [vmem:[%s2 + $0xe78] sm:$0xff]
          %v1125 = vld [vmem:[%s2 + $0xe80] sm:$0xff]
          %v1126 = vld [vmem:[%s2 + $0xe88] sm:$0xff]
          %v1127 = vld [vmem:[%s2 + $0xe90] sm:$0xff]
          %v1128 = vld [vmem:[%s2 + $0xe98] sm:$0xff]
          %v1129 = vld [vmem:[%s2 + $0xea0] sm:$0xff]
          %v1130 = vld [vmem:[%s2 + $0xea8] sm:$0xff]
          %v1131 = vld [vmem:[%s2 + $0xeb0] sm:$0xff]
          %v1132 = vld [vmem:[%s2 + $0xeb8] sm:$0xff]
          %v1133 = vld [vmem:[%s2 + $0xec0] sm:$0xff]
          %v1134 = vld [vmem:[%s2 + $0xec8] sm:$0xff]
          %v1135 = vld [vmem:[%s2 + $0xed0] sm:$0xff]
          %v1136 = vld [vmem:[%s2 + $0xed8] sm:$0xff]
          %v1137 = vld [vmem:[%s2 + $0xee0] sm:$0xff]
          %v1138 = vld [vmem:[%s2 + $0xee8] sm:$0xff]
          %v1139 = vld [vmem:[%s2 + $0xef0] sm:$0xff]
          %v1140 = vld [vmem:[%s2 + $0xef8] sm:$0xff]
          %v1141 = vld [vmem:[%s2 + $0xf00] sm:$0xff]
          %v1142 = vld [vmem:[%s2 + $0xf08] sm:$0xff]
          %v1143 = vld [vmem:[%s2 + $0xf10] sm:$0xff]
          %v1144 = vld [vmem:[%s2 + $0xf18] sm:$0xff]
          %v1145 = vld [vmem:[%s2 + $0xf20] sm:$0xff]
          %v1146 = vld [vmem:[%s2 + $0xf28] sm:$0xff]
          %v1147 = vld [vmem:[%s2 + $0xf30] sm:$0xff]
          %v1148 = vld [vmem:[%s2 + $0xf38] sm:$0xff]
          %v1149 = vld [vmem:[%s2 + $0xf40] sm:$0xff]
          %v1150 = vld [vmem:[%s2 + $0xf48] sm:$0xff]
          %v1151 = vld [vmem:[%s2 + $0xf50] sm:$0xff]
          %v1152 = vld [vmem:[%s2 + $0xf58] sm:$0xff]
          %v1153 = vld [vmem:[%s2 + $0xf60] sm:$0xff]
          %v1154 = vld [vmem:[%s2 + $0xf68] sm:$0xff]
          %v1155 = vld [vmem:[%s2 + $0xf70] sm:$0xff]
          %v1156 = vld [vmem:[%s2 + $0xf78] sm:$0xff]
          %v1157 = vld [vmem:[%s2 + $0xf80] sm:$0xff]
          %v1158 = vld [vmem:[%s2 + $0xf88] sm:$0xff]
          %v1159 = vld [vmem:[%s2 + $0xf90] sm:$0xff]
          %v1160 = vld [vmem:[%s2 + $0xf98] sm:$0xff]
          %v1161 = vld [vmem:[%s2 + $0xfa0] sm:$0xff]
          %v1162 = vld [vmem:[%s2 + $0xfa8] sm:$0xff]
          %v1163 = vld [vmem:[%s2 + $0xfb0] sm:$0xff]
          %v1164 = vld [vmem:[%s2 + $0xfb8] sm:$0xff]
          %v1165 = vld [vmem:[%s2 + $0xfc0] sm:$0xff]
          %v1166 = vld [vmem:[%s2 + $0xfc8] sm:$0xff]
          %v1167 = vld [vmem:[%s2 + $0xfd0] sm:$0xff]
          %v1168 = vld [vmem:[%s2 + $0xfd8] sm:$0xff]
          %v1169 = vld [vmem:[%s2 + $0xfe0] sm:$0xff]
          %v1170 = vld [vmem:[%s2 + $0xfe8] sm:$0xff]
          %v1171 = vld [vmem:[%s2 + $0xff0] sm:$0xff]
          %v1172 = vld [vmem:[%s2 + $0xff8] sm:$0xff]
          %v1173 = vld [vmem:[%s2 + $0x1000] sm:$0xff]
          %v1174 = vld [vmem:[%s2 + $0x1008] sm:$0xff]
          %v1175 = vld [vmem:[%s2 + $0x1010] sm:$0xff]
          %v1176 = vld [vmem:[%s2 + $0x1018] sm:$0xff]
          %v1177 = vld [vmem:[%s2 + $0x1020] sm:$0xff]
          %v1178 = vld [vmem:[%s2 + $0x1028] sm:$0xff]
          %v1179 = vld [vmem:[%s2 + $0x1030] sm:$0xff]
          %v1180 = vld [vmem:[%s2 + $0x1038] sm:$0xff]
          %v1181 = vld [vmem:[%s2 + $0x1040] sm:$0xff]
          %v1182 = vld [vmem:[%s2 + $0x1048] sm:$0xff]
          %v1183 = vld [vmem:[%s2 + $0x1050] sm:$0xff]
          %v1184 = vld [vmem:[%s2 + $0x1058] sm:$0xff]
          %v1185 = vld [vmem:[%s2 + $0x1060] sm:$0xff]
          %v1186 = vld [vmem:[%s2 + $0x1068] sm:$0xff]
          %v1187 = vld [vmem:[%s2 + $0x1070] sm:$0xff]
          %v1188 = vld [vmem:[%s2 + $0x1078] sm:$0xff]
          %v1189 = vld [vmem:[%s2 + $0x1080] sm:$0xff]
          %v1190 = vld [vmem:[%s2 + $0x1088] sm:$0xff]
          %v1191 = vld [vmem:[%s2 + $0x1090] sm:$0xff]
          %v1192 = vld [vmem:[%s2 + $0x1098] sm:$0xff]
          %v1193 = vld [vmem:[%s2 + $0x10a0] sm:$0xff]
          %v1194 = vld [vmem:[%s2 + $0x10a8] sm:$0xff]
          %v1195 = vld [vmem:[%s2 + $0x10b0] sm:$0xff]
          %v1196 = vld [vmem:[%s2 + $0x10b8] sm:$0xff]
          %v1197 = vld [vmem:[%s2 + $0x10c0] sm:$0xff]
          %v1198 = vld [vmem:[%s2 + $0x10c8] sm:$0xff]
          %v1199 = vld [vmem:[%s2 + $0x10d0] sm:$0xff]
          %v1200 = vld [vmem:[%s2 + $0x10d8] sm:$0xff]
          %v1201 = vld [vmem:[%s2 + $0x10e0] sm:$0xff]
          %v1202 = vld [vmem:[%s2 + $0x10e8] sm:$0xff]
          %v1203 = vld [vmem:[%s2 + $0x10f0] sm:$0xff]
          %v1204 = vld [vmem:[%s2 + $0x10f8] sm:$0xff]
          %v1205 = vld [vmem:[%s2 + $0x1100] sm:$0xff]
          %v1206 = vld [vmem:[%s2 + $0x1108] sm:$0xff]
          %v1207 = vld [vmem:[%s2 + $0x1110] sm:$0xff]
          %v1208 = vld [vmem:[%s2 + $0x1118] sm:$0xff]
          %v1209 = vld [vmem:[%s2 + $0x1120] sm:$0xff]
          %v1210 = vld [vmem:[%s2 + $0x1128] sm:$0xff]
          %v1211 = vld [vmem:[%s2 + $0x1130] sm:$0xff]
          %v1212 = vld [vmem:[%s2 + $0x1138] sm:$0xff]
          %v1213 = vld [vmem:[%s2 + $0x1140] sm:$0xff]
          %v1214 = vld [vmem:[%s2 + $0x1148] sm:$0xff]
          %v1215 = vld [vmem:[%s2 + $0x1150] sm:$0xff]
          %v1216 = vld [vmem:[%s2 + $0x1158] sm:$0xff]
          %v1217 = vld [vmem:[%s2 + $0x1160] sm:$0xff]
          %v1218 = vld [vmem:[%s2 + $0x1168] sm:$0xff]
          %v1219 = vld [vmem:[%s2 + $0x1170] sm:$0xff]
          %v1220 = vld [vmem:[%s2 + $0x1178] sm:$0xff]
          %v1221 = vld [vmem:[%s2 + $0x1180] sm:$0xff]
          %v1222 = vld [vmem:[%s2 + $0x1188] sm:$0xff]
          %v1223 = vld [vmem:[%s2 + $0x1190] sm:$0xff]
          %v1224 = vld [vmem:[%s2 + $0x1198] sm:$0xff]
          %v1225 = vld [vmem:[%s2 + $0x11a0] sm:$0xff]
          %v1226 = vld [vmem:[%s2 + $0x11a8] sm:$0xff]
          %v1227 = vld [vmem:[%s2 + $0x11b0] sm:$0xff]
          %v1228 = vld [vmem:[%s2 + $0x11b8] sm:$0xff]
          %v1229 = vld [vmem:[%s2 + $0x11c0] sm:$0xff]
          %v1230 = vld [vmem:[%s2 + $0x11c8] sm:$0xff]
          %v1231 = vld [vmem:[%s2 + $0x11d0] sm:$0xff]
          %v1232 = vld [vmem:[%s2 + $0x11d8] sm:$0xff]
          %v1233 = vld [vmem:[%s2 + $0x11e0] sm:$0xff]
          %v1234 = vld [vmem:[%s2 + $0x11e8] sm:$0xff]
          %v1235 = vld [vmem:[%s2 + $0x11f0] sm:$0xff]
          %v1236 = vld [vmem:[%s2 + $0x11f8] sm:$0xff]
          %v1237 = vld [vmem:[%s3] sm:$0x3f]
          %v1239 = vlaneseq
          %v1240 = vshrl.u32 %v1239, 7
          %v1241 = vsub.s32 0, %v1240
          %v1242 = vrot.slane %v660, %v1241
          %v1243 = vlaneseq
          %v1244 = vshrl.u32 %v1243, 7
          %v1245 = vsub.s32 1, %v1244
          %v1246 = vrot.slane %v660, %v1245
          %v1247 = vlaneseq
          %v1248 = vshrl.u32 %v1247, 7
          %v1249 = vsub.s32 2, %v1248
          %v1250 = vrot.slane %v660, %v1249
          %v1251 = vlaneseq
          %v1252 = vshrl.u32 %v1251, 7
          %v1253 = vsub.s32 3, %v1252
          %v1254 = vrot.slane %v660, %v1253
          %v1255 = vlaneseq
          %v1256 = vshrl.u32 %v1255, 7
          %v1257 = vsub.s32 4, %v1256
          %v1258 = vrot.slane %v660, %v1257
          %v1259 = vlaneseq
          %v1260 = vshrl.u32 %v1259, 7
          %v1261 = vsub.s32 5, %v1260
          %v1262 = vrot.slane %v660, %v1261
          %v1270 = vlaneseq
          %v1271 = vshrl.u32 %v1270, 7
          %v1272 = vsub.s32 0, %v1271
          %v1273 = vrot.slane %v1237, %v1272
          %v1274 = vlaneseq
          %v1275 = vshrl.u32 %v1274, 7
          %v1276 = vsub.s32 1, %v1275
          %v1277 = vrot.slane %v1237, %v1276
          %v1278 = vlaneseq
          %v1279 = vshrl.u32 %v1278, 7
          %v1280 = vsub.s32 2, %v1279
          %v1281 = vrot.slane %v1237, %v1280
          %v1282 = vlaneseq
          %v1283 = vshrl.u32 %v1282, 7
          %v1284 = vsub.s32 3, %v1283
          %v1285 = vrot.slane %v1237, %v1284
          %v1286 = vlaneseq
          %v1287 = vshrl.u32 %v1286, 7
          %v1288 = vsub.s32 4, %v1287
          %v1289 = vrot.slane %v1237, %v1288
          %v1290 = vlaneseq
          %v1291 = vshrl.u32 %v1290, 7
          %v1292 = vsub.s32 5, %v1291
          %v1293 = vrot.slane %v1237, %v1292
          %1300 = vmatprep.subr.mxu0 %v662
          %1301 = vmatpush1.xpose.msra.mxu0 %v661
          %1302 = vmatprep.subr.mxu0 %v668
          %1303 = vmatpush1.xpose.msra.mxu0 %v667
          %1304 = vmatprep.subr.mxu0 %v674
          %1305 = vmatpush1.xpose.msra.mxu0 %v673
          %1306 = vmatprep.subr.mxu0 %v680
          %1307 = vmatpush1.xpose.msra.mxu0 %v679
          %1308 = vmatprep.subr.mxu0 %v686
          %1309 = vmatpush1.xpose.msra.mxu0 %v685
          %1310 = vmatprep.subr.mxu0 %v692
          %1311 = vmatpush1.xpose.msra.mxu0 %v691
          %1312 = vmatprep.subr.mxu0 %v698
          %1313 = vmatpush1.xpose.msra.mxu0 %v697
          %1314 = vmatprep.subr.mxu0 %v704
          %1315 = vmatpush1.xpose.msra.mxu0 %v703
          %1316 = vmatprep.subr.mxu0 %v710
          %1317 = vmatpush1.xpose.msra.mxu0 %v709
          %1318 = vmatprep.subr.mxu0 %v716
          %1319 = vmatpush1.xpose.msra.mxu0 %v715
          %1320 = vmatprep.subr.mxu0 %v722
          %1321 = vmatpush1.xpose.msra.mxu0 %v721
          %1322 = vmatprep.subr.mxu0 %v728
          %1323 = vmatpush1.xpose.msra.mxu0 %v727
          %1324 = vmatprep.subr.mxu0 %v734
          %1325 = vmatpush1.xpose.msra.mxu0 %v733
          %1326 = vmatprep.subr.mxu0 %v740
          %1327 = vmatpush1.xpose.msra.mxu0 %v739
          %1328 = vmatprep.subr.mxu0 %v746
          %1329 = vmatpush1.xpose.msra.mxu0 %v745
          %1330 = vmatprep.subr.mxu0 %v752
          %1331 = vmatpush1.xpose.msra.mxu0 %v751
          %1332 = vmatprep.subr.mxu0 %v758
          %1333 = vmatpush1.xpose.msra.mxu0 %v757
          %1334 = vmatprep.subr.mxu0 %v764
          %1335 = vmatpush1.xpose.msra.mxu0 %v763
          %1336 = vmatprep.subr.mxu0 %v770
          %1337 = vmatpush1.xpose.msra.mxu0 %v769
          %1338 = vmatprep.subr.mxu0 %v776
          %1339 = vmatpush1.xpose.msra.mxu0 %v775
          %1340 = vmatprep.subr.mxu0 %v782
          %1341 = vmatpush1.xpose.msra.mxu0 %v781
          %1342 = vmatprep.subr.mxu0 %v788
          %1343 = vmatpush1.xpose.msra.mxu0 %v787
          %1344 = vmatprep.subr.mxu0 %v794
          %1345 = vmatpush1.xpose.msra.mxu0 %v793
          %1346 = vmatprep.subr.mxu0 %v800
          %1347 = vmatpush1.xpose.msra.mxu0 %v799
          %1348 = vmatprep.subr.mxu0 %v806
          %1349 = vmatpush1.xpose.msra.mxu0 %v805
          %1350 = vmatprep.subr.mxu0 %v812
          %1351 = vmatpush1.xpose.msra.mxu0 %v811
          %1352 = vmatprep.subr.mxu0 %v818
          %1353 = vmatpush1.xpose.msra.mxu0 %v817
          %1354 = vmatprep.subr.mxu0 %v824
          %1355 = vmatpush1.xpose.msra.mxu0 %v823
          %1356 = vmatprep.subr.mxu0 %v830
          %1357 = vmatpush1.xpose.msra.mxu0 %v829
          %1358 = vmatprep.subr.mxu0 %v836
          %1359 = vmatpush1.xpose.msra.mxu0 %v835
          %1360 = vmatprep.subr.mxu0 %v842
          %1361 = vmatpush1.xpose.msra.mxu0 %v841
          %1362 = vmatprep.subr.mxu0 %v848
          %1363 = vmatpush1.xpose.msra.mxu0 %v847
          %1364 = vmatprep.mubr.f32.mxu0 %v1246
          %1365 = vmatmul.mubr.f32.gmra.mrb[0].mxu0 %v1242
          %v1366 = vpop.f32.mrb[0].mxu0
          %v1367 = vadd.f32 %v1273, %v1366
          %v1368 = vpop.f32.mrb[0].mxu0
          %v1369 = vadd.f32 %v1277, %v1368
          %1370 = vdwg.mxu0
          %1371 = vmatprep.subr.mxu0 %v664
          %1372 = vmatpush1.xpose.msra.mxu0 %v663
          %1373 = vmatprep.subr.mxu0 %v670
          %1374 = vmatpush1.xpose.msra.mxu0 %v669
          %1375 = vmatprep.subr.mxu0 %v676
          %1376 = vmatpush1.xpose.msra.mxu0 %v675
          %1377 = vmatprep.subr.mxu0 %v682
          %1378 = vmatpush1.xpose.msra.mxu0 %v681
          %1379 = vmatprep.subr.mxu0 %v688
          %1380 = vmatpush1.xpose.msra.mxu0 %v687
          %1381 = vmatprep.subr.mxu0 %v694
          %1382 = vmatpush1.xpose.msra.mxu0 %v693
          %1383 = vmatprep.subr.mxu0 %v700
          %1384 = vmatpush1.xpose.msra.mxu0 %v699
          %1385 = vmatprep.subr.mxu0 %v706
          %1386 = vmatpush1.xpose.msra.mxu0 %v705
          %1387 = vmatprep.subr.mxu0 %v712
          %1388 = vmatpush1.xpose.msra.mxu0 %v711
          %1389 = vmatprep.subr.mxu0 %v718
          %1390 = vmatpush1.xpose.msra.mxu0 %v717
          %1391 = vmatprep.subr.mxu0 %v724
          %1392 = vmatpush1.xpose.msra.mxu0 %v723
          %1393 = vmatprep.subr.mxu0 %v730
          %1394 = vmatpush1.xpose.msra.mxu0 %v729
          %1395 = vmatprep.subr.mxu0 %v736
          %1396 = vmatpush1.xpose.msra.mxu0 %v735
          %1397 = vmatprep.subr.mxu0 %v742
          %1398 = vmatpush1.xpose.msra.mxu0 %v741
          %1399 = vmatprep.subr.mxu0 %v748
          %1400 = vmatpush1.xpose.msra.mxu0 %v747
          %1401 = vmatprep.subr.mxu0 %v754
          %1402 = vmatpush1.xpose.msra.mxu0 %v753
          %1403 = vmatprep.subr.mxu0 %v760
          %1404 = vmatpush1.xpose.msra.mxu0 %v759
          %1405 = vmatprep.subr.mxu0 %v766
          %1406 = vmatpush1.xpose.msra.mxu0 %v765
          %1407 = vmatprep.subr.mxu0 %v772
          %1408 = vmatpush1.xpose.msra.mxu0 %v771
          %1409 = vmatprep.subr.mxu0 %v778
          %1410 = vmatpush1.xpose.msra.mxu0 %v777
          %1411 = vmatprep.subr.mxu0 %v784
          %1412 = vmatpush1.xpose.msra.mxu0 %v783
          %1413 = vmatprep.subr.mxu0 %v790
          %1414 = vmatpush1.xpose.msra.mxu0 %v789
          %1415 = vmatprep.subr.mxu0 %v796
          %1416 = vmatpush1.xpose.msra.mxu0 %v795
          %1417 = vmatprep.subr.mxu0 %v802
          %1418 = vmatpush1.xpose.msra.mxu0 %v801
          %1419 = vmatprep.subr.mxu0 %v808
          %1420 = vmatpush1.xpose.msra.mxu0 %v807
          %1421 = vmatprep.subr.mxu0 %v814
          %1422 = vmatpush1.xpose.msra.mxu0 %v813
          %1423 = vmatprep.subr.mxu0 %v820
          %1424 = vmatpush1.xpose.msra.mxu0 %v819
          %1425 = vmatprep.subr.mxu0 %v826
          %1426 = vmatpush1.xpose.msra.mxu0 %v825
          %1427 = vmatprep.subr.mxu0 %v832
          %1428 = vmatpush1.xpose.msra.mxu0 %v831
          %1429 = vmatprep.subr.mxu0 %v838
          %1430 = vmatpush1.xpose.msra.mxu0 %v837
          %1431 = vmatprep.subr.mxu0 %v844
          %1432 = vmatpush1.xpose.msra.mxu0 %v843
          %1433 = vmatprep.subr.mxu0 %v850
          %1434 = vmatpush1.xpose.msra.mxu0 %v849
          %1435 = vmatprep.mubr.f32.mxu0 %v1254
          %1436 = vmatmul.mubr.f32.gmra.mrb[0].mxu0 %v1250
          %v1437 = vpop.f32.mrb[0].mxu0
          %v1438 = vadd.f32 %v1367, %v1437
          %v1439 = vpop.f32.mrb[0].mxu0
          %v1440 = vadd.f32 %v1369, %v1439
          %1441 = vdwg.mxu0
          %1442 = vmatprep.subr.mxu0 %v666
          %1443 = vmatpush1.xpose.msra.mxu0 %v665
          %1444 = vmatprep.subr.mxu0 %v672
          %1445 = vmatpush1.xpose.msra.mxu0 %v671
          %1446 = vmatprep.subr.mxu0 %v678
          %1447 = vmatpush1.xpose.msra.mxu0 %v677
          %1448 = vmatprep.subr.mxu0 %v684
          %1449 = vmatpush1.xpose.msra.mxu0 %v683
          %1450 = vmatprep.subr.mxu0 %v690
          %1451 = vmatpush1.xpose.msra.mxu0 %v689
          %1452 = vmatprep.subr.mxu0 %v696
          %1453 = vmatpush1.xpose.msra.mxu0 %v695
          %1454 = vmatprep.subr.mxu0 %v702
          %1455 = vmatpush1.xpose.msra.mxu0 %v701
          %1456 = vmatprep.subr.mxu0 %v708
          %1457 = vmatpush1.xpose.msra.mxu0 %v707
          %1458 = vmatprep.subr.mxu0 %v714
          %1459 = vmatpush1.xpose.msra.mxu0 %v713
          %1460 = vmatprep.subr.mxu0 %v720
          %1461 = vmatpush1.xpose.msra.mxu0 %v719
          %1462 = vmatprep.subr.mxu0 %v726
          %1463 = vmatpush1.xpose.msra.mxu0 %v725
          %1464 = vmatprep.subr.mxu0 %v732
          %1465 = vmatpush1.xpose.msra.mxu0 %v731
          %1466 = vmatprep.subr.mxu0 %v738
          %1467 = vmatpush1.xpose.msra.mxu0 %v737
          %1468 = vmatprep.subr.mxu0 %v744
          %1469 = vmatpush1.xpose.msra.mxu0 %v743
          %1470 = vmatprep.subr.mxu0 %v750
          %1471 = vmatpush1.xpose.msra.mxu0 %v749
          %1472 = vmatprep.subr.mxu0 %v756
          %1473 = vmatpush1.xpose.msra.mxu0 %v755
          %1474 = vmatprep.subr.mxu0 %v762
          %1475 = vmatpush1.xpose.msra.mxu0 %v761
          %1476 = vmatprep.subr.mxu0 %v768
          %1477 = vmatpush1.xpose.msra.mxu0 %v767
          %1478 = vmatprep.subr.mxu0 %v774
          %1479 = vmatpush1.xpose.msra.mxu0 %v773
          %1480 = vmatprep.subr.mxu0 %v780
          %1481 = vmatpush1.xpose.msra.mxu0 %v779
          %1482 = vmatprep.subr.mxu0 %v786
          %1483 = vmatpush1.xpose.msra.mxu0 %v785
          %1484 = vmatprep.subr.mxu0 %v792
          %1485 = vmatpush1.xpose.msra.mxu0 %v791
          %1486 = vmatprep.subr.mxu0 %v798
          %1487 = vmatpush1.xpose.msra.mxu0 %v797
          %1488 = vmatprep.subr.mxu0 %v804
          %1489 = vmatpush1.xpose.msra.mxu0 %v803
          %1490 = vmatprep.subr.mxu0 %v810
          %1491 = vmatpush1.xpose.msra.mxu0 %v809
          %1492 = vmatprep.subr.mxu0 %v816
          %1493 = vmatpush1.xpose.msra.mxu0 %v815
          %1494 = vmatprep.subr.mxu0 %v822
          %1495 = vmatpush1.xpose.msra.mxu0 %v821
          %1496 = vmatprep.subr.mxu0 %v828
          %1497 = vmatpush1.xpose.msra.mxu0 %v827
          %1498 = vmatprep.subr.mxu0 %v834
          %1499 = vmatpush1.xpose.msra.mxu0 %v833
          %1500 = vmatprep.subr.mxu0 %v840
          %1501 = vmatpush1.xpose.msra.mxu0 %v839
          %1502 = vmatprep.subr.mxu0 %v846
          %1503 = vmatpush1.xpose.msra.mxu0 %v845
          %1504 = vmatprep.subr.mxu0 %v852
          %1505 = vmatpush1.xpose.msra.mxu0 %v851
          %1506 = vmatprep.mubr.f32.mxu0 %v1262
          %1507 = vmatmul.mubr.f32.gmra.mrb[0].mxu0 %v1258
          %v1508 = vpop.f32.mrb[0].mxu0
          %v1509 = vadd.f32 %v1438, %v1508
          %v1510 = vpop.f32.mrb[0].mxu0
          %v1511 = vadd.f32 %v1440, %v1510
          %1512 = vdwg.mxu0
          %1513 = vmatprep.subr.mxu0 %v854
          %1514 = vmatpush1.xpose.msra.mxu0 %v853
          %1515 = vmatprep.subr.mxu0 %v860
          %1516 = vmatpush1.xpose.msra.mxu0 %v859
          %1517 = vmatprep.subr.mxu0 %v866
          %1518 = vmatpush1.xpose.msra.mxu0 %v865
          %1519 = vmatprep.subr.mxu0 %v872
          %1520 = vmatpush1.xpose.msra.mxu0 %v871
          %1521 = vmatprep.subr.mxu0 %v878
          %1522 = vmatpush1.xpose.msra.mxu0 %v877
          %1523 = vmatprep.subr.mxu0 %v884
          %1524 = vmatpush1.xpose.msra.mxu0 %v883
          %1525 = vmatprep.subr.mxu0 %v890
          %1526 = vmatpush1.xpose.msra.mxu0 %v889
          %1527 = vmatprep.subr.mxu0 %v896
          %1528 = vmatpush1.xpose.msra.mxu0 %v895
          %1529 = vmatprep.subr.mxu0 %v902
          %1530 = vmatpush1.xpose.msra.mxu0 %v901
          %1531 = vmatprep.subr.mxu0 %v908
          %1532 = vmatpush1.xpose.msra.mxu0 %v907
          %1533 = vmatprep.subr.mxu0 %v914
          %1534 = vmatpush1.xpose.msra.mxu0 %v913
          %1535 = vmatprep.subr.mxu0 %v920
          %1536 = vmatpush1.xpose.msra.mxu0 %v919
          %1537 = vmatprep.subr.mxu0 %v926
          %1538 = vmatpush1.xpose.msra.mxu0 %v925
          %1539 = vmatprep.subr.mxu0 %v932
          %1540 = vmatpush1.xpose.msra.mxu0 %v931
          %1541 = vmatprep.subr.mxu0 %v938
          %1542 = vmatpush1.xpose.msra.mxu0 %v937
          %1543 = vmatprep.subr.mxu0 %v944
          %1544 = vmatpush1.xpose.msra.mxu0 %v943
          %1545 = vmatprep.subr.mxu0 %v950
          %1546 = vmatpush1.xpose.msra.mxu0 %v949
          %1547 = vmatprep.subr.mxu0 %v956
          %1548 = vmatpush1.xpose.msra.mxu0 %v955
          %1549 = vmatprep.subr.mxu0 %v962
          %1550 = vmatpush1.xpose.msra.mxu0 %v961
          %1551 = vmatprep.subr.mxu0 %v968
          %1552 = vmatpush1.xpose.msra.mxu0 %v967
          %1553 = vmatprep.subr.mxu0 %v974
          %1554 = vmatpush1.xpose.msra.mxu0 %v973
          %1555 = vmatprep.subr.mxu0 %v980
          %1556 = vmatpush1.xpose.msra.mxu0 %v979
          %1557 = vmatprep.subr.mxu0 %v986
          %1558 = vmatpush1.xpose.msra.mxu0 %v985
          %1559 = vmatprep.subr.mxu0 %v992
          %1560 = vmatpush1.xpose.msra.mxu0 %v991
          %1561 = vmatprep.subr.mxu0 %v998
          %1562 = vmatpush1.xpose.msra.mxu0 %v997
          %1563 = vmatprep.subr.mxu0 %v1004
          %1564 = vmatpush1.xpose.msra.mxu0 %v1003
          %1565 = vmatprep.subr.mxu0 %v1010
          %1566 = vmatpush1.xpose.msra.mxu0 %v1009
          %1567 = vmatprep.subr.mxu0 %v1016
          %1568 = vmatpush1.xpose.msra.mxu0 %v1015
          %1569 = vmatprep.subr.mxu0 %v1022
          %1570 = vmatpush1.xpose.msra.mxu0 %v1021
          %1571 = vmatprep.subr.mxu0 %v1028
          %1572 = vmatpush1.xpose.msra.mxu0 %v1027
          %1573 = vmatprep.subr.mxu0 %v1034
          %1574 = vmatpush1.xpose.msra.mxu0 %v1033
          %1575 = vmatprep.subr.mxu0 %v1040
          %1576 = vmatpush1.xpose.msra.mxu0 %v1039
          %1577 = vmatprep.mubr.f32.mxu0 %v1246
          %1578 = vmatmul.mubr.f32.gmra.mrb[0].mxu0 %v1242
          %v1579 = vpop.f32.mrb[0].mxu0
          %v1580 = vadd.f32 %v1281, %v1579
          %v1581 = vpop.f32.mrb[0].mxu0
          %v1582 = vadd.f32 %v1285, %v1581
          %1583 = vdwg.mxu0
          %1584 = vmatprep.subr.mxu0 %v856
          %1585 = vmatpush1.xpose.msra.mxu0 %v855
          %1586 = vmatprep.subr.mxu0 %v862
          %1587 = vmatpush1.xpose.msra.mxu0 %v861
          %1588 = vmatprep.subr.mxu0 %v868
          %1589 = vmatpush1.xpose.msra.mxu0 %v867
          %1590 = vmatprep.subr.mxu0 %v874
          %1591 = vmatpush1.xpose.msra.mxu0 %v873
          %1592 = vmatprep.subr.mxu0 %v880
          %1593 = vmatpush1.xpose.msra.mxu0 %v879
          %1594 = vmatprep.subr.mxu0 %v886
          %1595 = vmatpush1.xpose.msra.mxu0 %v885
          %1596 = vmatprep.subr.mxu0 %v892
          %1597 = vmatpush1.xpose.msra.mxu0 %v891
          %1598 = vmatprep.subr.mxu0 %v898
          %1599 = vmatpush1.xpose.msra.mxu0 %v897
          %1600 = vmatprep.subr.mxu0 %v904
          %1601 = vmatpush1.xpose.msra.mxu0 %v903
          %1602 = vmatprep.subr.mxu0 %v910
          %1603 = vmatpush1.xpose.msra.mxu0 %v909
          %1604 = vmatprep.subr.mxu0 %v916
          %1605 = vmatpush1.xpose.msra.mxu0 %v915
          %1606 = vmatprep.subr.mxu0 %v922
          %1607 = vmatpush1.xpose.msra.mxu0 %v921
          %1608 = vmatprep.subr.mxu0 %v928
          %1609 = vmatpush1.xpose.msra.mxu0 %v927
          %1610 = vmatprep.subr.mxu0 %v934
          %1611 = vmatpush1.xpose.msra.mxu0 %v933
          %1612 = vmatprep.subr.mxu0 %v940
          %1613 = vmatpush1.xpose.msra.mxu0 %v939
          %1614 = vmatprep.subr.mxu0 %v946
          %1615 = vmatpush1.xpose.msra.mxu0 %v945
          %1616 = vmatprep.subr.mxu0 %v952
          %1617 = vmatpush1.xpose.msra.mxu0 %v951
          %1618 = vmatprep.subr.mxu0 %v958
          %1619 = vmatpush1.xpose.msra.mxu0 %v957
          %1620 = vmatprep.subr.mxu0 %v964
          %1621 = vmatpush1.xpose.msra.mxu0 %v963
          %1622 = vmatprep.subr.mxu0 %v970
          %1623 = vmatpush1.xpose.msra.mxu0 %v969
          %1624 = vmatprep.subr.mxu0 %v976
          %1625 = vmatpush1.xpose.msra.mxu0 %v975
          %1626 = vmatprep.subr.mxu0 %v982
          %1627 = vmatpush1.xpose.msra.mxu0 %v981
          %1628 = vmatprep.subr.mxu0 %v988
          %1629 = vmatpush1.xpose.msra.mxu0 %v987
          %1630 = vmatprep.subr.mxu0 %v994
          %1631 = vmatpush1.xpose.msra.mxu0 %v993
          %1632 = vmatprep.subr.mxu0 %v1000
          %1633 = vmatpush1.xpose.msra.mxu0 %v999
          %1634 = vmatprep.subr.mxu0 %v1006
          %1635 = vmatpush1.xpose.msra.mxu0 %v1005
          %1636 = vmatprep.subr.mxu0 %v1012
          %1637 = vmatpush1.xpose.msra.mxu0 %v1011
          %1638 = vmatprep.subr.mxu0 %v1018
          %1639 = vmatpush1.xpose.msra.mxu0 %v1017
          %1640 = vmatprep.subr.mxu0 %v1024
          %1641 = vmatpush1.xpose.msra.mxu0 %v1023
          %1642 = vmatprep.subr.mxu0 %v1030
          %1643 = vmatpush1.xpose.msra.mxu0 %v1029
          %1644 = vmatprep.subr.mxu0 %v1036
          %1645 = vmatpush1.xpose.msra.mxu0 %v1035
          %1646 = vmatprep.subr.mxu0 %v1042
          %1647 = vmatpush1.xpose.msra.mxu0 %v1041
          %1648 = vmatprep.mubr.f32.mxu0 %v1254
          %1649 = vmatmul.mubr.f32.gmra.mrb[0].mxu0 %v1250
          %v1650 = vpop.f32.mrb[0].mxu0
          %v1651 = vadd.f32 %v1580, %v1650
          %v1652 = vpop.f32.mrb[0].mxu0
          %v1653 = vadd.f32 %v1582, %v1652
          %1654 = vdwg.mxu0
          %1655 = vmatprep.subr.mxu0 %v858
          %1656 = vmatpush1.xpose.msra.mxu0 %v857
          %1657 = vmatprep.subr.mxu0 %v864
          %1658 = vmatpush1.xpose.msra.mxu0 %v863
          %1659 = vmatprep.subr.mxu0 %v870
          %1660 = vmatpush1.xpose.msra.mxu0 %v869
          %1661 = vmatprep.subr.mxu0 %v876
          %1662 = vmatpush1.xpose.msra.mxu0 %v875
          %1663 = vmatprep.subr.mxu0 %v882
          %1664 = vmatpush1.xpose.msra.mxu0 %v881
          %1665 = vmatprep.subr.mxu0 %v888
          %1666 = vmatpush1.xpose.msra.mxu0 %v887
          %1667 = vmatprep.subr.mxu0 %v894
          %1668 = vmatpush1.xpose.msra.mxu0 %v893
          %1669 = vmatprep.subr.mxu0 %v900
          %1670 = vmatpush1.xpose.msra.mxu0 %v899
          %1671 = vmatprep.subr.mxu0 %v906
          %1672 = vmatpush1.xpose.msra.mxu0 %v905
          %1673 = vmatprep.subr.mxu0 %v912
          %1674 = vmatpush1.xpose.msra.mxu0 %v911
          %1675 = vmatprep.subr.mxu0 %v918
          %1676 = vmatpush1.xpose.msra.mxu0 %v917
          %1677 = vmatprep.subr.mxu0 %v924
          %1678 = vmatpush1.xpose.msra.mxu0 %v923
          %1679 = vmatprep.subr.mxu0 %v930
          %1680 = vmatpush1.xpose.msra.mxu0 %v929
          %1681 = vmatprep.subr.mxu0 %v936
          %1682 = vmatpush1.xpose.msra.mxu0 %v935
          %1683 = vmatprep.subr.mxu0 %v942
          %1684 = vmatpush1.xpose.msra.mxu0 %v941
          %1685 = vmatprep.subr.mxu0 %v948
          %1686 = vmatpush1.xpose.msra.mxu0 %v947
          %1687 = vmatprep.subr.mxu0 %v954
          %1688 = vmatpush1.xpose.msra.mxu0 %v953
          %1689 = vmatprep.subr.mxu0 %v960
          %1690 = vmatpush1.xpose.msra.mxu0 %v959
          %1691 = vmatprep.subr.mxu0 %v966
          %1692 = vmatpush1.xpose.msra.mxu0 %v965
          %1693 = vmatprep.subr.mxu0 %v972
          %1694 = vmatpush1.xpose.msra.mxu0 %v971
          %1695 = vmatprep.subr.mxu0 %v978
          %1696 = vmatpush1.xpose.msra.mxu0 %v977
          %1697 = vmatprep.subr.mxu0 %v984
          %1698 = vmatpush1.xpose.msra.mxu0 %v983
          %1699 = vmatprep.subr.mxu0 %v990
          %1700 = vmatpush1.xpose.msra.mxu0 %v989
          %1701 = vmatprep.subr.mxu0 %v996
          %1702 = vmatpush1.xpose.msra.mxu0 %v995
          %1703 = vmatprep.subr.mxu0 %v1002
          %1704 = vmatpush1.xpose.msra.mxu0 %v1001
          %1705 = vmatprep.subr.mxu0 %v1008
          %1706 = vmatpush1.xpose.msra.mxu0 %v1007
          %1707 = vmatprep.subr.mxu0 %v1014
          %1708 = vmatpush1.xpose.msra.mxu0 %v1013
          %1709 = vmatprep.subr.mxu0 %v1020
          %1710 = vmatpush1.xpose.msra.mxu0 %v1019
          %1711 = vmatprep.subr.mxu0 %v1026
          %1712 = vmatpush1.xpose.msra.mxu0 %v1025
          %1713 = vmatprep.subr.mxu0 %v1032
          %1714 = vmatpush1.xpose.msra.mxu0 %v1031
          %1715 = vmatprep.subr.mxu0 %v1038
          %1716 = vmatpush1.xpose.msra.mxu0 %v1037
          %1717 = vmatprep.subr.mxu0 %v1044
          %1718 = vmatpush1.xpose.msra.mxu0 %v1043
          %1719 = vmatprep.mubr.f32.mxu0 %v1262
          %1720 = vmatmul.mubr.f32.gmra.mrb[0].mxu0 %v1258
          %v1721 = vpop.f32.mrb[0].mxu0
          %v1722 = vadd.f32 %v1651, %v1721
          %v1723 = vpop.f32.mrb[0].mxu0
          %v1724 = vadd.f32 %v1653, %v1723
          %1725 = vdwg.mxu0
          %1726 = vmatprep.subr.mxu0 %v1046
          %1727 = vmatpush1.xpose.msra.mxu0 %v1045
          %1728 = vmatprep.subr.mxu0 %v1052
          %1729 = vmatpush1.xpose.msra.mxu0 %v1051
          %1730 = vmatprep.subr.mxu0 %v1058
          %1731 = vmatpush1.xpose.msra.mxu0 %v1057
          %1732 = vmatprep.subr.mxu0 %v1064
          %1733 = vmatpush1.xpose.msra.mxu0 %v1063
          %1734 = vmatprep.subr.mxu0 %v1070
          %1735 = vmatpush1.xpose.msra.mxu0 %v1069
          %1736 = vmatprep.subr.mxu0 %v1076
          %1737 = vmatpush1.xpose.msra.mxu0 %v1075
          %1738 = vmatprep.subr.mxu0 %v1082
          %1739 = vmatpush1.xpose.msra.mxu0 %v1081
          %1740 = vmatprep.subr.mxu0 %v1088
          %1741 = vmatpush1.xpose.msra.mxu0 %v1087
          %1742 = vmatprep.subr.mxu0 %v1094
          %1743 = vmatpush1.xpose.msra.mxu0 %v1093
          %1744 = vmatprep.subr.mxu0 %v1100
          %1745 = vmatpush1.xpose.msra.mxu0 %v1099
          %1746 = vmatprep.subr.mxu0 %v1106
          %1747 = vmatpush1.xpose.msra.mxu0 %v1105
          %1748 = vmatprep.subr.mxu0 %v1112
          %1749 = vmatpush1.xpose.msra.mxu0 %v1111
          %1750 = vmatprep.subr.mxu0 %v1118
          %1751 = vmatpush1.xpose.msra.mxu0 %v1117
          %1752 = vmatprep.subr.mxu0 %v1124
          %1753 = vmatpush1.xpose.msra.mxu0 %v1123
          %1754 = vmatprep.subr.mxu0 %v1130
          %1755 = vmatpush1.xpose.msra.mxu0 %v1129
          %1756 = vmatprep.subr.mxu0 %v1136
          %1757 = vmatpush1.xpose.msra.mxu0 %v1135
          %1758 = vmatprep.subr.mxu0 %v1142
          %1759 = vmatpush1.xpose.msra.mxu0 %v1141
          %1760 = vmatprep.subr.mxu0 %v1148
          %1761 = vmatpush1.xpose.msra.mxu0 %v1147
          %1762 = vmatprep.subr.mxu0 %v1154
          %1763 = vmatpush1.xpose.msra.mxu0 %v1153
          %1764 = vmatprep.subr.mxu0 %v1160
          %1765 = vmatpush1.xpose.msra.mxu0 %v1159
          %1766 = vmatprep.subr.mxu0 %v1166
          %1767 = vmatpush1.xpose.msra.mxu0 %v1165
          %1768 = vmatprep.subr.mxu0 %v1172
          %1769 = vmatpush1.xpose.msra.mxu0 %v1171
          %1770 = vmatprep.subr.mxu0 %v1178
          %1771 = vmatpush1.xpose.msra.mxu0 %v1177
          %1772 = vmatprep.subr.mxu0 %v1184
          %1773 = vmatpush1.xpose.msra.mxu0 %v1183
          %1774 = vmatprep.subr.mxu0 %v1190
          %1775 = vmatpush1.xpose.msra.mxu0 %v1189
          %1776 = vmatprep.subr.mxu0 %v1196
          %1777 = vmatpush1.xpose.msra.mxu0 %v1195
          %1778 = vmatprep.subr.mxu0 %v1202
          %1779 = vmatpush1.xpose.msra.mxu0 %v1201
          %1780 = vmatprep.subr.mxu0 %v1208
          %1781 = vmatpush1.xpose.msra.mxu0 %v1207
          %1782 = vmatprep.subr.mxu0 %v1214
          %1783 = vmatpush1.xpose.msra.mxu0 %v1213
          %1784 = vmatprep.subr.mxu0 %v1220
          %1785 = vmatpush1.xpose.msra.mxu0 %v1219
          %1786 = vmatprep.subr.mxu0 %v1226
          %1787 = vmatpush1.xpose.msra.mxu0 %v1225
          %1788 = vmatprep.subr.mxu0 %v1232
          %1789 = vmatpush1.xpose.msra.mxu0 %v1231
          %1790 = vmatprep.mubr.f32.mxu0 %v1246
          %1791 = vmatmul.mubr.f32.gmra.mrb[0].mxu0 %v1242
          %v1792 = vpop.f32.mrb[0].mxu0
          %v1793 = vadd.f32 %v1289, %v1792
          %v1794 = vpop.f32.mrb[0].mxu0
          %v1795 = vadd.f32 %v1293, %v1794
          %1796 = vdwg.mxu0
          %1797 = vmatprep.subr.mxu0 %v1048
          %1798 = vmatpush1.xpose.msra.mxu0 %v1047
          %1799 = vmatprep.subr.mxu0 %v1054
          %1800 = vmatpush1.xpose.msra.mxu0 %v1053
          %1801 = vmatprep.subr.mxu0 %v1060
          %1802 = vmatpush1.xpose.msra.mxu0 %v1059
          %1803 = vmatprep.subr.mxu0 %v1066
          %1804 = vmatpush1.xpose.msra.mxu0 %v1065
          %1805 = vmatprep.subr.mxu0 %v1072
          %1806 = vmatpush1.xpose.msra.mxu0 %v1071
          %1807 = vmatprep.subr.mxu0 %v1078
          %1808 = vmatpush1.xpose.msra.mxu0 %v1077
          %1809 = vmatprep.subr.mxu0 %v1084
          %1810 = vmatpush1.xpose.msra.mxu0 %v1083
          %1811 = vmatprep.subr.mxu0 %v1090
          %1812 = vmatpush1.xpose.msra.mxu0 %v1089
          %1813 = vmatprep.subr.mxu0 %v1096
          %1814 = vmatpush1.xpose.msra.mxu0 %v1095
          %1815 = vmatprep.subr.mxu0 %v1102
          %1816 = vmatpush1.xpose.msra.mxu0 %v1101
          %1817 = vmatprep.subr.mxu0 %v1108
          %1818 = vmatpush1.xpose.msra.mxu0 %v1107
          %1819 = vmatprep.subr.mxu0 %v1114
          %1820 = vmatpush1.xpose.msra.mxu0 %v1113
          %1821 = vmatprep.subr.mxu0 %v1120
          %1822 = vmatpush1.xpose.msra.mxu0 %v1119
          %1823 = vmatprep.subr.mxu0 %v1126
          %1824 = vmatpush1.xpose.msra.mxu0 %v1125
          %1825 = vmatprep.subr.mxu0 %v1132
          %1826 = vmatpush1.xpose.msra.mxu0 %v1131
          %1827 = vmatprep.subr.mxu0 %v1138
          %1828 = vmatpush1.xpose.msra.mxu0 %v1137
          %1829 = vmatprep.subr.mxu0 %v1144
          %1830 = vmatpush1.xpose.msra.mxu0 %v1143
          %1831 = vmatprep.subr.mxu0 %v1150
          %1832 = vmatpush1.xpose.msra.mxu0 %v1149
          %1833 = vmatprep.subr.mxu0 %v1156
          %1834 = vmatpush1.xpose.msra.mxu0 %v1155
          %1835 = vmatprep.subr.mxu0 %v1162
          %1836 = vmatpush1.xpose.msra.mxu0 %v1161
          %1837 = vmatprep.subr.mxu0 %v1168
          %1838 = vmatpush1.xpose.msra.mxu0 %v1167
          %1839 = vmatprep.subr.mxu0 %v1174
          %1840 = vmatpush1.xpose.msra.mxu0 %v1173
          %1841 = vmatprep.subr.mxu0 %v1180
          %1842 = vmatpush1.xpose.msra.mxu0 %v1179
          %1843 = vmatprep.subr.mxu0 %v1186
          %1844 = vmatpush1.xpose.msra.mxu0 %v1185
          %1845 = vmatprep.subr.mxu0 %v1192
          %1846 = vmatpush1.xpose.msra.mxu0 %v1191
          %1847 = vmatprep.subr.mxu0 %v1198
          %1848 = vmatpush1.xpose.msra.mxu0 %v1197
          %1849 = vmatprep.subr.mxu0 %v1204
          %1850 = vmatpush1.xpose.msra.mxu0 %v1203
          %1851 = vmatprep.subr.mxu0 %v1210
          %1852 = vmatpush1.xpose.msra.mxu0 %v1209
          %1853 = vmatprep.subr.mxu0 %v1216
          %1854 = vmatpush1.xpose.msra.mxu0 %v1215
          %1855 = vmatprep.subr.mxu0 %v1222
          %1856 = vmatpush1.xpose.msra.mxu0 %v1221
          %1857 = vmatprep.subr.mxu0 %v1228
          %1858 = vmatpush1.xpose.msra.mxu0 %v1227
          %1859 = vmatprep.subr.mxu0 %v1234
          %1860 = vmatpush1.xpose.msra.mxu0 %v1233
          %1861 = vmatprep.mubr.f32.mxu0 %v1254
          %1862 = vmatmul.mubr.f32.gmra.mrb[0].mxu0 %v1250
          %v1863 = vpop.f32.mrb[0].mxu0
          %v1864 = vadd.f32 %v1793, %v1863
          %v1865 = vpop.f32.mrb[0].mxu0
          %v1866 = vadd.f32 %v1795, %v1865
          %1867 = vdwg.mxu0
          %1868 = vmatprep.subr.mxu0 %v1050
          %1869 = vmatpush1.xpose.msra.mxu0 %v1049
          %1870 = vmatprep.subr.mxu0 %v1056
          %1871 = vmatpush1.xpose.msra.mxu0 %v1055
          %1872 = vmatprep.subr.mxu0 %v1062
          %1873 = vmatpush1.xpose.msra.mxu0 %v1061
          %1874 = vmatprep.subr.mxu0 %v1068
          %1875 = vmatpush1.xpose.msra.mxu0 %v1067
          %1876 = vmatprep.subr.mxu0 %v1074
          %1877 = vmatpush1.xpose.msra.mxu0 %v1073
          %1878 = vmatprep.subr.mxu0 %v1080
          %1879 = vmatpush1.xpose.msra.mxu0 %v1079
          %1880 = vmatprep.subr.mxu0 %v1086
          %1881 = vmatpush1.xpose.msra.mxu0 %v1085
          %1882 = vmatprep.subr.mxu0 %v1092
          %1883 = vmatpush1.xpose.msra.mxu0 %v1091
          %1884 = vmatprep.subr.mxu0 %v1098
          %1885 = vmatpush1.xpose.msra.mxu0 %v1097
          %1886 = vmatprep.subr.mxu0 %v1104
          %1887 = vmatpush1.xpose.msra.mxu0 %v1103
          %1888 = vmatprep.subr.mxu0 %v1110
          %1889 = vmatpush1.xpose.msra.mxu0 %v1109
          %1890 = vmatprep.subr.mxu0 %v1116
          %1891 = vmatpush1.xpose.msra.mxu0 %v1115
          %1892 = vmatprep.subr.mxu0 %v1122
          %1893 = vmatpush1.xpose.msra.mxu0 %v1121
          %1894 = vmatprep.subr.mxu0 %v1128
          %1895 = vmatpush1.xpose.msra.mxu0 %v1127
          %1896 = vmatprep.subr.mxu0 %v1134
          %1897 = vmatpush1.xpose.msra.mxu0 %v1133
          %1898 = vmatprep.subr.mxu0 %v1140
          %1899 = vmatpush1.xpose.msra.mxu0 %v1139
          %1900 = vmatprep.subr.mxu0 %v1146
          %1901 = vmatpush1.xpose.msra.mxu0 %v1145
          %1902 = vmatprep.subr.mxu0 %v1152
          %1903 = vmatpush1.xpose.msra.mxu0 %v1151
          %1904 = vmatprep.subr.mxu0 %v1158
          %1905 = vmatpush1.xpose.msra.mxu0 %v1157
          %1906 = vmatprep.subr.mxu0 %v1164
          %1907 = vmatpush1.xpose.msra.mxu0 %v1163
          %1908 = vmatprep.subr.mxu0 %v1170
          %1909 = vmatpush1.xpose.msra.mxu0 %v1169
          %1910 = vmatprep.subr.mxu0 %v1176
          %1911 = vmatpush1.xpose.msra.mxu0 %v1175
          %1912 = vmatprep.subr.mxu0 %v1182
          %1913 = vmatpush1.xpose.msra.mxu0 %v1181
          %1914 = vmatprep.subr.mxu0 %v1188
          %1915 = vmatpush1.xpose.msra.mxu0 %v1187
          %1916 = vmatprep.subr.mxu0 %v1194
          %1917 = vmatpush1.xpose.msra.mxu0 %v1193
          %1918 = vmatprep.subr.mxu0 %v1200
          %1919 = vmatpush1.xpose.msra.mxu0 %v1199
          %1920 = vmatprep.subr.mxu0 %v1206
          %1921 = vmatpush1.xpose.msra.mxu0 %v1205
          %1922 = vmatprep.subr.mxu0 %v1212
          %1923 = vmatpush1.xpose.msra.mxu0 %v1211
          %1924 = vmatprep.subr.mxu0 %v1218
          %1925 = vmatpush1.xpose.msra.mxu0 %v1217
          %1926 = vmatprep.subr.mxu0 %v1224
          %1927 = vmatpush1.xpose.msra.mxu0 %v1223
          %1928 = vmatprep.subr.mxu0 %v1230
          %1929 = vmatpush1.xpose.msra.mxu0 %v1229
          %1930 = vmatprep.subr.mxu0 %v1236
          %1931 = vmatpush1.xpose.msra.mxu0 %v1235
          %1932 = vmatprep.mubr.f32.mxu0 %v1262
          %1933 = vmatmul.mubr.f32.gmra.mrb[0].mxu0 %v1258
          %v1934 = vpop.f32.mrb[0].mxu0
          %v1935 = vadd.f32 %v1864, %v1934
          %v1936 = vpop.f32.mrb[0].mxu0
          %v1937 = vadd.f32 %v1866, %v1936
          %1938 = vdwg.mxu0
          %v1939 = vld [vmem:[%s639] sm:$0xff]
          %v1940 = vld [vmem:[%s639 + $0x8] sm:$0xff]
          %v1941 = vld [vmem:[%s639 + $0x10] sm:$0xff]
          %v1942 = vld [vmem:[%s4] sm:$0xff]
          %v1943 = vld [vmem:[%s4 + $0x8] sm:$0xff]
          %v1944 = vld [vmem:[%s4 + $0x10] sm:$0xff]
          %v1945 = vld [vmem:[%s4 + $0x18] sm:$0xff]
          %v1946 = vld [vmem:[%s4 + $0x20] sm:$0xff]
          %v1947 = vld [vmem:[%s4 + $0x28] sm:$0xff]
          %v1948 = vld [vmem:[%s4 + $0x30] sm:$0xff]
          %v1949 = vld [vmem:[%s4 + $0x38] sm:$0xff]
          %v1950 = vld [vmem:[%s4 + $0x40] sm:$0xff]
          %v1951 = vld [vmem:[%s4 + $0x48] sm:$0xff]
          %v1952 = vld [vmem:[%s4 + $0x50] sm:$0xff]
          %v1953 = vld [vmem:[%s4 + $0x58] sm:$0xff]
          %v1954 = vld [vmem:[%s4 + $0x60] sm:$0xff]
          %v1955 = vld [vmem:[%s4 + $0x68] sm:$0xff]
          %v1956 = vld [vmem:[%s4 + $0x70] sm:$0xff]
          %v1957 = vld [vmem:[%s4 + $0x78] sm:$0xff]
          %v1958 = vld [vmem:[%s4 + $0x80] sm:$0xff]
          %v1959 = vld [vmem:[%s4 + $0x88] sm:$0xff]
          %v1960 = vld [vmem:[%s4 + $0x90] sm:$0xff]
          %v1961 = vld [vmem:[%s4 + $0x98] sm:$0xff]
          %v1962 = vld [vmem:[%s4 + $0xa0] sm:$0xff]
          %v1963 = vld [vmem:[%s4 + $0xa8] sm:$0xff]
          %v1964 = vld [vmem:[%s4 + $0xb0] sm:$0xff]
          %v1965 = vld [vmem:[%s4 + $0xb8] sm:$0xff]
          %v1966 = vld [vmem:[%s4 + $0xc0] sm:$0xff]
          %v1967 = vld [vmem:[%s4 + $0xc8] sm:$0xff]
          %v1968 = vld [vmem:[%s4 + $0xd0] sm:$0xff]
          %v1969 = vld [vmem:[%s4 + $0xd8] sm:$0xff]
          %v1970 = vld [vmem:[%s4 + $0xe0] sm:$0xff]
          %v1971 = vld [vmem:[%s4 + $0xe8] sm:$0xff]
          %v1972 = vld [vmem:[%s4 + $0xf0] sm:$0xff]
          %v1973 = vld [vmem:[%s4 + $0xf8] sm:$0xff]
          %v1974 = vld [vmem:[%s4 + $0x100] sm:$0xff]
          %v1975 = vld [vmem:[%s4 + $0x108] sm:$0xff]
          %v1976 = vld [vmem:[%s4 + $0x110] sm:$0xff]
          %v1977 = vld [vmem:[%s4 + $0x118] sm:$0xff]
          %v1978 = vld [vmem:[%s4 + $0x120] sm:$0xff]
          %v1979 = vld [vmem:[%s4 + $0x128] sm:$0xff]
          %v1980 = vld [vmem:[%s4 + $0x130] sm:$0xff]
          %v1981 = vld [vmem:[%s4 + $0x138] sm:$0xff]
          %v1982 = vld [vmem:[%s4 + $0x140] sm:$0xff]
          %v1983 = vld [vmem:[%s4 + $0x148] sm:$0xff]
          %v1984 = vld [vmem:[%s4 + $0x150] sm:$0xff]
          %v1985 = vld [vmem:[%s4 + $0x158] sm:$0xff]
          %v1986 = vld [vmem:[%s4 + $0x160] sm:$0xff]
          %v1987 = vld [vmem:[%s4 + $0x168] sm:$0xff]
          %v1988 = vld [vmem:[%s4 + $0x170] sm:$0xff]
          %v1989 = vld [vmem:[%s4 + $0x178] sm:$0xff]
          %v1990 = vld [vmem:[%s4 + $0x180] sm:$0xff]
          %v1991 = vld [vmem:[%s4 + $0x188] sm:$0xff]
          %v1992 = vld [vmem:[%s4 + $0x190] sm:$0xff]
          %v1993 = vld [vmem:[%s4 + $0x198] sm:$0xff]
          %v1994 = vld [vmem:[%s4 + $0x1a0] sm:$0xff]
          %v1995 = vld [vmem:[%s4 + $0x1a8] sm:$0xff]
          %v1996 = vld [vmem:[%s4 + $0x1b0] sm:$0xff]
          %v1997 = vld [vmem:[%s4 + $0x1b8] sm:$0xff]
          %v1998 = vld [vmem:[%s4 + $0x1c0] sm:$0xff]
          %v1999 = vld [vmem:[%s4 + $0x1c8] sm:$0xff]
          %v2000 = vld [vmem:[%s4 + $0x1d0] sm:$0xff]
          %v2001 = vld [vmem:[%s4 + $0x1d8] sm:$0xff]
          %v2002 = vld [vmem:[%s4 + $0x1e0] sm:$0xff]
          %v2003 = vld [vmem:[%s4 + $0x1e8] sm:$0xff]
          %v2004 = vld [vmem:[%s4 + $0x1f0] sm:$0xff]
          %v2005 = vld [vmem:[%s4 + $0x1f8] sm:$0xff]
          %v2006 = vld [vmem:[%s4 + $0x200] sm:$0xff]
          %v2007 = vld [vmem:[%s4 + $0x208] sm:$0xff]
          %v2008 = vld [vmem:[%s4 + $0x210] sm:$0xff]
          %v2009 = vld [vmem:[%s4 + $0x218] sm:$0xff]
          %v2010 = vld [vmem:[%s4 + $0x220] sm:$0xff]
          %v2011 = vld [vmem:[%s4 + $0x228] sm:$0xff]
          %v2012 = vld [vmem:[%s4 + $0x230] sm:$0xff]
          %v2013 = vld [vmem:[%s4 + $0x238] sm:$0xff]
          %v2014 = vld [vmem:[%s4 + $0x240] sm:$0xff]
          %v2015 = vld [vmem:[%s4 + $0x248] sm:$0xff]
          %v2016 = vld [vmem:[%s4 + $0x250] sm:$0xff]
          %v2017 = vld [vmem:[%s4 + $0x258] sm:$0xff]
          %v2018 = vld [vmem:[%s4 + $0x260] sm:$0xff]
          %v2019 = vld [vmem:[%s4 + $0x268] sm:$0xff]
          %v2020 = vld [vmem:[%s4 + $0x270] sm:$0xff]
          %v2021 = vld [vmem:[%s4 + $0x278] sm:$0xff]
          %v2022 = vld [vmem:[%s4 + $0x280] sm:$0xff]
          %v2023 = vld [vmem:[%s4 + $0x288] sm:$0xff]
          %v2024 = vld [vmem:[%s4 + $0x290] sm:$0xff]
          %v2025 = vld [vmem:[%s4 + $0x298] sm:$0xff]
          %v2026 = vld [vmem:[%s4 + $0x2a0] sm:$0xff]
          %v2027 = vld [vmem:[%s4 + $0x2a8] sm:$0xff]
          %v2028 = vld [vmem:[%s4 + $0x2b0] sm:$0xff]
          %v2029 = vld [vmem:[%s4 + $0x2b8] sm:$0xff]
          %v2030 = vld [vmem:[%s4 + $0x2c0] sm:$0xff]
          %v2031 = vld [vmem:[%s4 + $0x2c8] sm:$0xff]
          %v2032 = vld [vmem:[%s4 + $0x2d0] sm:$0xff]
          %v2033 = vld [vmem:[%s4 + $0x2d8] sm:$0xff]
          %v2034 = vld [vmem:[%s4 + $0x2e0] sm:$0xff]
          %v2035 = vld [vmem:[%s4 + $0x2e8] sm:$0xff]
          %v2036 = vld [vmem:[%s4 + $0x2f0] sm:$0xff]
          %v2037 = vld [vmem:[%s4 + $0x2f8] sm:$0xff]
          %v2038 = vld [vmem:[%s4 + $0x300] sm:$0xff]
          %v2039 = vld [vmem:[%s4 + $0x308] sm:$0xff]
          %v2040 = vld [vmem:[%s4 + $0x310] sm:$0xff]
          %v2041 = vld [vmem:[%s4 + $0x318] sm:$0xff]
          %v2042 = vld [vmem:[%s4 + $0x320] sm:$0xff]
          %v2043 = vld [vmem:[%s4 + $0x328] sm:$0xff]
          %v2044 = vld [vmem:[%s4 + $0x330] sm:$0xff]
          %v2045 = vld [vmem:[%s4 + $0x338] sm:$0xff]
          %v2046 = vld [vmem:[%s4 + $0x340] sm:$0xff]
          %v2047 = vld [vmem:[%s4 + $0x348] sm:$0xff]
          %v2048 = vld [vmem:[%s4 + $0x350] sm:$0xff]
          %v2049 = vld [vmem:[%s4 + $0x358] sm:$0xff]
          %v2050 = vld [vmem:[%s4 + $0x360] sm:$0xff]
          %v2051 = vld [vmem:[%s4 + $0x368] sm:$0xff]
          %v2052 = vld [vmem:[%s4 + $0x370] sm:$0xff]
          %v2053 = vld [vmem:[%s4 + $0x378] sm:$0xff]
          %v2054 = vld [vmem:[%s4 + $0x380] sm:$0xff]
          %v2055 = vld [vmem:[%s4 + $0x388] sm:$0xff]
          %v2056 = vld [vmem:[%s4 + $0x390] sm:$0xff]
          %v2057 = vld [vmem:[%s4 + $0x398] sm:$0xff]
          %v2058 = vld [vmem:[%s4 + $0x3a0] sm:$0xff]
          %v2059 = vld [vmem:[%s4 + $0x3a8] sm:$0xff]
          %v2060 = vld [vmem:[%s4 + $0x3b0] sm:$0xff]
          %v2061 = vld [vmem:[%s4 + $0x3b8] sm:$0xff]
          %v2062 = vld [vmem:[%s4 + $0x3c0] sm:$0xff]
          %v2063 = vld [vmem:[%s4 + $0x3c8] sm:$0xff]
          %v2064 = vld [vmem:[%s4 + $0x3d0] sm:$0xff]
          %v2065 = vld [vmem:[%s4 + $0x3d8] sm:$0xff]
          %v2066 = vld [vmem:[%s4 + $0x3e0] sm:$0xff]
          %v2067 = vld [vmem:[%s4 + $0x3e8] sm:$0xff]
          %v2068 = vld [vmem:[%s4 + $0x3f0] sm:$0xff]
          %v2069 = vld [vmem:[%s4 + $0x3f8] sm:$0xff]
          %v2070 = vld [vmem:[%s4 + $0x400] sm:$0xff]
          %v2071 = vld [vmem:[%s4 + $0x408] sm:$0xff]
          %v2072 = vld [vmem:[%s4 + $0x410] sm:$0xff]
          %v2073 = vld [vmem:[%s4 + $0x418] sm:$0xff]
          %v2074 = vld [vmem:[%s4 + $0x420] sm:$0xff]
          %v2075 = vld [vmem:[%s4 + $0x428] sm:$0xff]
          %v2076 = vld [vmem:[%s4 + $0x430] sm:$0xff]
          %v2077 = vld [vmem:[%s4 + $0x438] sm:$0xff]
          %v2078 = vld [vmem:[%s4 + $0x440] sm:$0xff]
          %v2079 = vld [vmem:[%s4 + $0x448] sm:$0xff]
          %v2080 = vld [vmem:[%s4 + $0x450] sm:$0xff]
          %v2081 = vld [vmem:[%s4 + $0x458] sm:$0xff]
          %v2082 = vld [vmem:[%s4 + $0x460] sm:$0xff]
          %v2083 = vld [vmem:[%s4 + $0x468] sm:$0xff]
          %v2084 = vld [vmem:[%s4 + $0x470] sm:$0xff]
          %v2085 = vld [vmem:[%s4 + $0x478] sm:$0xff]
          %v2086 = vld [vmem:[%s4 + $0x480] sm:$0xff]
          %v2087 = vld [vmem:[%s4 + $0x488] sm:$0xff]
          %v2088 = vld [vmem:[%s4 + $0x490] sm:$0xff]
          %v2089 = vld [vmem:[%s4 + $0x498] sm:$0xff]
          %v2090 = vld [vmem:[%s4 + $0x4a0] sm:$0xff]
          %v2091 = vld [vmem:[%s4 + $0x4a8] sm:$0xff]
          %v2092 = vld [vmem:[%s4 + $0x4b0] sm:$0xff]
          %v2093 = vld [vmem:[%s4 + $0x4b8] sm:$0xff]
          %v2094 = vld [vmem:[%s4 + $0x4c0] sm:$0xff]
          %v2095 = vld [vmem:[%s4 + $0x4c8] sm:$0xff]
          %v2096 = vld [vmem:[%s4 + $0x4d0] sm:$0xff]
          %v2097 = vld [vmem:[%s4 + $0x4d8] sm:$0xff]
          %v2098 = vld [vmem:[%s4 + $0x4e0] sm:$0xff]
          %v2099 = vld [vmem:[%s4 + $0x4e8] sm:$0xff]
          %v2100 = vld [vmem:[%s4 + $0x4f0] sm:$0xff]
          %v2101 = vld [vmem:[%s4 + $0x4f8] sm:$0xff]
          %v2102 = vld [vmem:[%s4 + $0x500] sm:$0xff]
          %v2103 = vld [vmem:[%s4 + $0x508] sm:$0xff]
          %v2104 = vld [vmem:[%s4 + $0x510] sm:$0xff]
          %v2105 = vld [vmem:[%s4 + $0x518] sm:$0xff]
          %v2106 = vld [vmem:[%s4 + $0x520] sm:$0xff]
          %v2107 = vld [vmem:[%s4 + $0x528] sm:$0xff]
          %v2108 = vld [vmem:[%s4 + $0x530] sm:$0xff]
          %v2109 = vld [vmem:[%s4 + $0x538] sm:$0xff]
          %v2110 = vld [vmem:[%s4 + $0x540] sm:$0xff]
          %v2111 = vld [vmem:[%s4 + $0x548] sm:$0xff]
          %v2112 = vld [vmem:[%s4 + $0x550] sm:$0xff]
          %v2113 = vld [vmem:[%s4 + $0x558] sm:$0xff]
          %v2114 = vld [vmem:[%s4 + $0x560] sm:$0xff]
          %v2115 = vld [vmem:[%s4 + $0x568] sm:$0xff]
          %v2116 = vld [vmem:[%s4 + $0x570] sm:$0xff]
          %v2117 = vld [vmem:[%s4 + $0x578] sm:$0xff]
          %v2118 = vld [vmem:[%s4 + $0x580] sm:$0xff]
          %v2119 = vld [vmem:[%s4 + $0x588] sm:$0xff]
          %v2120 = vld [vmem:[%s4 + $0x590] sm:$0xff]
          %v2121 = vld [vmem:[%s4 + $0x598] sm:$0xff]
          %v2122 = vld [vmem:[%s4 + $0x5a0] sm:$0xff]
          %v2123 = vld [vmem:[%s4 + $0x5a8] sm:$0xff]
          %v2124 = vld [vmem:[%s4 + $0x5b0] sm:$0xff]
          %v2125 = vld [vmem:[%s4 + $0x5b8] sm:$0xff]
          %v2126 = vld [vmem:[%s4 + $0x5c0] sm:$0xff]
          %v2127 = vld [vmem:[%s4 + $0x5c8] sm:$0xff]
          %v2128 = vld [vmem:[%s4 + $0x5d0] sm:$0xff]
          %v2129 = vld [vmem:[%s4 + $0x5d8] sm:$0xff]
          %v2130 = vld [vmem:[%s4 + $0x5e0] sm:$0xff]
          %v2131 = vld [vmem:[%s4 + $0x5e8] sm:$0xff]
          %v2132 = vld [vmem:[%s4 + $0x5f0] sm:$0xff]
          %v2133 = vld [vmem:[%s4 + $0x5f8] sm:$0xff]
          %v2134 = vld [vmem:[%s4 + $0x600] sm:$0xff]
          %v2135 = vld [vmem:[%s4 + $0x608] sm:$0xff]
          %v2136 = vld [vmem:[%s4 + $0x610] sm:$0xff]
          %v2137 = vld [vmem:[%s4 + $0x618] sm:$0xff]
          %v2138 = vld [vmem:[%s4 + $0x620] sm:$0xff]
          %v2139 = vld [vmem:[%s4 + $0x628] sm:$0xff]
          %v2140 = vld [vmem:[%s4 + $0x630] sm:$0xff]
          %v2141 = vld [vmem:[%s4 + $0x638] sm:$0xff]
          %v2142 = vld [vmem:[%s4 + $0x640] sm:$0xff]
          %v2143 = vld [vmem:[%s4 + $0x648] sm:$0xff]
          %v2144 = vld [vmem:[%s4 + $0x650] sm:$0xff]
          %v2145 = vld [vmem:[%s4 + $0x658] sm:$0xff]
          %v2146 = vld [vmem:[%s4 + $0x660] sm:$0xff]
          %v2147 = vld [vmem:[%s4 + $0x668] sm:$0xff]
          %v2148 = vld [vmem:[%s4 + $0x670] sm:$0xff]
          %v2149 = vld [vmem:[%s4 + $0x678] sm:$0xff]
          %v2150 = vld [vmem:[%s4 + $0x680] sm:$0xff]
          %v2151 = vld [vmem:[%s4 + $0x688] sm:$0xff]
          %v2152 = vld [vmem:[%s4 + $0x690] sm:$0xff]
          %v2153 = vld [vmem:[%s4 + $0x698] sm:$0xff]
          %v2154 = vld [vmem:[%s4 + $0x6a0] sm:$0xff]
          %v2155 = vld [vmem:[%s4 + $0x6a8] sm:$0xff]
          %v2156 = vld [vmem:[%s4 + $0x6b0] sm:$0xff]
          %v2157 = vld [vmem:[%s4 + $0x6b8] sm:$0xff]
          %v2158 = vld [vmem:[%s4 + $0x6c0] sm:$0xff]
          %v2159 = vld [vmem:[%s4 + $0x6c8] sm:$0xff]
          %v2160 = vld [vmem:[%s4 + $0x6d0] sm:$0xff]
          %v2161 = vld [vmem:[%s4 + $0x6d8] sm:$0xff]
          %v2162 = vld [vmem:[%s4 + $0x6e0] sm:$0xff]
          %v2163 = vld [vmem:[%s4 + $0x6e8] sm:$0xff]
          %v2164 = vld [vmem:[%s4 + $0x6f0] sm:$0xff]
          %v2165 = vld [vmem:[%s4 + $0x6f8] sm:$0xff]
          %v2166 = vld [vmem:[%s4 + $0x700] sm:$0xff]
          %v2167 = vld [vmem:[%s4 + $0x708] sm:$0xff]
          %v2168 = vld [vmem:[%s4 + $0x710] sm:$0xff]
          %v2169 = vld [vmem:[%s4 + $0x718] sm:$0xff]
          %v2170 = vld [vmem:[%s4 + $0x720] sm:$0xff]
          %v2171 = vld [vmem:[%s4 + $0x728] sm:$0xff]
          %v2172 = vld [vmem:[%s4 + $0x730] sm:$0xff]
          %v2173 = vld [vmem:[%s4 + $0x738] sm:$0xff]
          %v2174 = vld [vmem:[%s4 + $0x740] sm:$0xff]
          %v2175 = vld [vmem:[%s4 + $0x748] sm:$0xff]
          %v2176 = vld [vmem:[%s4 + $0x750] sm:$0xff]
          %v2177 = vld [vmem:[%s4 + $0x758] sm:$0xff]
          %v2178 = vld [vmem:[%s4 + $0x760] sm:$0xff]
          %v2179 = vld [vmem:[%s4 + $0x768] sm:$0xff]
          %v2180 = vld [vmem:[%s4 + $0x770] sm:$0xff]
          %v2181 = vld [vmem:[%s4 + $0x778] sm:$0xff]
          %v2182 = vld [vmem:[%s4 + $0x780] sm:$0xff]
          %v2183 = vld [vmem:[%s4 + $0x788] sm:$0xff]
          %v2184 = vld [vmem:[%s4 + $0x790] sm:$0xff]
          %v2185 = vld [vmem:[%s4 + $0x798] sm:$0xff]
          %v2186 = vld [vmem:[%s4 + $0x7a0] sm:$0xff]
          %v2187 = vld [vmem:[%s4 + $0x7a8] sm:$0xff]
          %v2188 = vld [vmem:[%s4 + $0x7b0] sm:$0xff]
          %v2189 = vld [vmem:[%s4 + $0x7b8] sm:$0xff]
          %v2190 = vld [vmem:[%s4 + $0x7c0] sm:$0xff]
          %v2191 = vld [vmem:[%s4 + $0x7c8] sm:$0xff]
          %v2192 = vld [vmem:[%s4 + $0x7d0] sm:$0xff]
          %v2193 = vld [vmem:[%s4 + $0x7d8] sm:$0xff]
          %v2194 = vld [vmem:[%s4 + $0x7e0] sm:$0xff]
          %v2195 = vld [vmem:[%s4 + $0x7e8] sm:$0xff]
          %v2196 = vld [vmem:[%s4 + $0x7f0] sm:$0xff]
          %v2197 = vld [vmem:[%s4 + $0x7f8] sm:$0xff]
          %v2198 = vld [vmem:[%s4 + $0x800] sm:$0xff]
          %v2199 = vld [vmem:[%s4 + $0x808] sm:$0xff]
          %v2200 = vld [vmem:[%s4 + $0x810] sm:$0xff]
          %v2201 = vld [vmem:[%s4 + $0x818] sm:$0xff]
          %v2202 = vld [vmem:[%s4 + $0x820] sm:$0xff]
          %v2203 = vld [vmem:[%s4 + $0x828] sm:$0xff]
          %v2204 = vld [vmem:[%s4 + $0x830] sm:$0xff]
          %v2205 = vld [vmem:[%s4 + $0x838] sm:$0xff]
          %v2206 = vld [vmem:[%s4 + $0x840] sm:$0xff]
          %v2207 = vld [vmem:[%s4 + $0x848] sm:$0xff]
          %v2208 = vld [vmem:[%s4 + $0x850] sm:$0xff]
          %v2209 = vld [vmem:[%s4 + $0x858] sm:$0xff]
          %v2210 = vld [vmem:[%s4 + $0x860] sm:$0xff]
          %v2211 = vld [vmem:[%s4 + $0x868] sm:$0xff]
          %v2212 = vld [vmem:[%s4 + $0x870] sm:$0xff]
          %v2213 = vld [vmem:[%s4 + $0x878] sm:$0xff]
          %v2214 = vld [vmem:[%s4 + $0x880] sm:$0xff]
          %v2215 = vld [vmem:[%s4 + $0x888] sm:$0xff]
          %v2216 = vld [vmem:[%s4 + $0x890] sm:$0xff]
          %v2217 = vld [vmem:[%s4 + $0x898] sm:$0xff]
          %v2218 = vld [vmem:[%s4 + $0x8a0] sm:$0xff]
          %v2219 = vld [vmem:[%s4 + $0x8a8] sm:$0xff]
          %v2220 = vld [vmem:[%s4 + $0x8b0] sm:$0xff]
          %v2221 = vld [vmem:[%s4 + $0x8b8] sm:$0xff]
          %v2222 = vld [vmem:[%s4 + $0x8c0] sm:$0xff]
          %v2223 = vld [vmem:[%s4 + $0x8c8] sm:$0xff]
          %v2224 = vld [vmem:[%s4 + $0x8d0] sm:$0xff]
          %v2225 = vld [vmem:[%s4 + $0x8d8] sm:$0xff]
          %v2226 = vld [vmem:[%s4 + $0x8e0] sm:$0xff]
          %v2227 = vld [vmem:[%s4 + $0x8e8] sm:$0xff]
          %v2228 = vld [vmem:[%s4 + $0x8f0] sm:$0xff]
          %v2229 = vld [vmem:[%s4 + $0x8f8] sm:$0xff]
          %v2230 = vld [vmem:[%s4 + $0x900] sm:$0xff]
          %v2231 = vld [vmem:[%s4 + $0x908] sm:$0xff]
          %v2232 = vld [vmem:[%s4 + $0x910] sm:$0xff]
          %v2233 = vld [vmem:[%s4 + $0x918] sm:$0xff]
          %v2234 = vld [vmem:[%s4 + $0x920] sm:$0xff]
          %v2235 = vld [vmem:[%s4 + $0x928] sm:$0xff]
          %v2236 = vld [vmem:[%s4 + $0x930] sm:$0xff]
          %v2237 = vld [vmem:[%s4 + $0x938] sm:$0xff]
          %v2238 = vld [vmem:[%s4 + $0x940] sm:$0xff]
          %v2239 = vld [vmem:[%s4 + $0x948] sm:$0xff]
          %v2240 = vld [vmem:[%s4 + $0x950] sm:$0xff]
          %v2241 = vld [vmem:[%s4 + $0x958] sm:$0xff]
          %v2242 = vld [vmem:[%s4 + $0x960] sm:$0xff]
          %v2243 = vld [vmem:[%s4 + $0x968] sm:$0xff]
          %v2244 = vld [vmem:[%s4 + $0x970] sm:$0xff]
          %v2245 = vld [vmem:[%s4 + $0x978] sm:$0xff]
          %v2246 = vld [vmem:[%s4 + $0x980] sm:$0xff]
          %v2247 = vld [vmem:[%s4 + $0x988] sm:$0xff]
          %v2248 = vld [vmem:[%s4 + $0x990] sm:$0xff]
          %v2249 = vld [vmem:[%s4 + $0x998] sm:$0xff]
          %v2250 = vld [vmem:[%s4 + $0x9a0] sm:$0xff]
          %v2251 = vld [vmem:[%s4 + $0x9a8] sm:$0xff]
          %v2252 = vld [vmem:[%s4 + $0x9b0] sm:$0xff]
          %v2253 = vld [vmem:[%s4 + $0x9b8] sm:$0xff]
          %v2254 = vld [vmem:[%s4 + $0x9c0] sm:$0xff]
          %v2255 = vld [vmem:[%s4 + $0x9c8] sm:$0xff]
          %v2256 = vld [vmem:[%s4 + $0x9d0] sm:$0xff]
          %v2257 = vld [vmem:[%s4 + $0x9d8] sm:$0xff]
          %v2258 = vld [vmem:[%s4 + $0x9e0] sm:$0xff]
          %v2259 = vld [vmem:[%s4 + $0x9e8] sm:$0xff]
          %v2260 = vld [vmem:[%s4 + $0x9f0] sm:$0xff]
          %v2261 = vld [vmem:[%s4 + $0x9f8] sm:$0xff]
          %v2262 = vld [vmem:[%s4 + $0xa00] sm:$0xff]
          %v2263 = vld [vmem:[%s4 + $0xa08] sm:$0xff]
          %v2264 = vld [vmem:[%s4 + $0xa10] sm:$0xff]
          %v2265 = vld [vmem:[%s4 + $0xa18] sm:$0xff]
          %v2266 = vld [vmem:[%s4 + $0xa20] sm:$0xff]
          %v2267 = vld [vmem:[%s4 + $0xa28] sm:$0xff]
          %v2268 = vld [vmem:[%s4 + $0xa30] sm:$0xff]
          %v2269 = vld [vmem:[%s4 + $0xa38] sm:$0xff]
          %v2270 = vld [vmem:[%s4 + $0xa40] sm:$0xff]
          %v2271 = vld [vmem:[%s4 + $0xa48] sm:$0xff]
          %v2272 = vld [vmem:[%s4 + $0xa50] sm:$0xff]
          %v2273 = vld [vmem:[%s4 + $0xa58] sm:$0xff]
          %v2274 = vld [vmem:[%s4 + $0xa60] sm:$0xff]
          %v2275 = vld [vmem:[%s4 + $0xa68] sm:$0xff]
          %v2276 = vld [vmem:[%s4 + $0xa70] sm:$0xff]
          %v2277 = vld [vmem:[%s4 + $0xa78] sm:$0xff]
          %v2278 = vld [vmem:[%s4 + $0xa80] sm:$0xff]
          %v2279 = vld [vmem:[%s4 + $0xa88] sm:$0xff]
          %v2280 = vld [vmem:[%s4 + $0xa90] sm:$0xff]
          %v2281 = vld [vmem:[%s4 + $0xa98] sm:$0xff]
          %v2282 = vld [vmem:[%s4 + $0xaa0] sm:$0xff]
          %v2283 = vld [vmem:[%s4 + $0xaa8] sm:$0xff]
          %v2284 = vld [vmem:[%s4 + $0xab0] sm:$0xff]
          %v2285 = vld [vmem:[%s4 + $0xab8] sm:$0xff]
          %v2286 = vld [vmem:[%s4 + $0xac0] sm:$0xff]
          %v2287 = vld [vmem:[%s4 + $0xac8] sm:$0xff]
          %v2288 = vld [vmem:[%s4 + $0xad0] sm:$0xff]
          %v2289 = vld [vmem:[%s4 + $0xad8] sm:$0xff]
          %v2290 = vld [vmem:[%s4 + $0xae0] sm:$0xff]
          %v2291 = vld [vmem:[%s4 + $0xae8] sm:$0xff]
          %v2292 = vld [vmem:[%s4 + $0xaf0] sm:$0xff]
          %v2293 = vld [vmem:[%s4 + $0xaf8] sm:$0xff]
          %v2294 = vld [vmem:[%s4 + $0xb00] sm:$0xff]
          %v2295 = vld [vmem:[%s4 + $0xb08] sm:$0xff]
          %v2296 = vld [vmem:[%s4 + $0xb10] sm:$0xff]
          %v2297 = vld [vmem:[%s4 + $0xb18] sm:$0xff]
          %v2298 = vld [vmem:[%s4 + $0xb20] sm:$0xff]
          %v2299 = vld [vmem:[%s4 + $0xb28] sm:$0xff]
          %v2300 = vld [vmem:[%s4 + $0xb30] sm:$0xff]
          %v2301 = vld [vmem:[%s4 + $0xb38] sm:$0xff]
          %v2302 = vld [vmem:[%s4 + $0xb40] sm:$0xff]
          %v2303 = vld [vmem:[%s4 + $0xb48] sm:$0xff]
          %v2304 = vld [vmem:[%s4 + $0xb50] sm:$0xff]
          %v2305 = vld [vmem:[%s4 + $0xb58] sm:$0xff]
          %v2306 = vld [vmem:[%s4 + $0xb60] sm:$0xff]
          %v2307 = vld [vmem:[%s4 + $0xb68] sm:$0xff]
          %v2308 = vld [vmem:[%s4 + $0xb70] sm:$0xff]
          %v2309 = vld [vmem:[%s4 + $0xb78] sm:$0xff]
          %v2310 = vld [vmem:[%s4 + $0xb80] sm:$0xff]
          %v2311 = vld [vmem:[%s4 + $0xb88] sm:$0xff]
          %v2312 = vld [vmem:[%s4 + $0xb90] sm:$0xff]
          %v2313 = vld [vmem:[%s4 + $0xb98] sm:$0xff]
          %v2314 = vld [vmem:[%s4 + $0xba0] sm:$0xff]
          %v2315 = vld [vmem:[%s4 + $0xba8] sm:$0xff]
          %v2316 = vld [vmem:[%s4 + $0xbb0] sm:$0xff]
          %v2317 = vld [vmem:[%s4 + $0xbb8] sm:$0xff]
          %v2318 = vld [vmem:[%s4 + $0xbc0] sm:$0xff]
          %v2319 = vld [vmem:[%s4 + $0xbc8] sm:$0xff]
          %v2320 = vld [vmem:[%s4 + $0xbd0] sm:$0xff]
          %v2321 = vld [vmem:[%s4 + $0xbd8] sm:$0xff]
          %v2322 = vld [vmem:[%s4 + $0xbe0] sm:$0xff]
          %v2323 = vld [vmem:[%s4 + $0xbe8] sm:$0xff]
          %v2324 = vld [vmem:[%s4 + $0xbf0] sm:$0xff]
          %v2325 = vld [vmem:[%s4 + $0xbf8] sm:$0xff]
          %v2326 = vld [vmem:[%s4 + $0xc00] sm:$0xff]
          %v2327 = vld [vmem:[%s4 + $0xc08] sm:$0xff]
          %v2328 = vld [vmem:[%s4 + $0xc10] sm:$0xff]
          %v2329 = vld [vmem:[%s4 + $0xc18] sm:$0xff]
          %v2330 = vld [vmem:[%s4 + $0xc20] sm:$0xff]
          %v2331 = vld [vmem:[%s4 + $0xc28] sm:$0xff]
          %v2332 = vld [vmem:[%s4 + $0xc30] sm:$0xff]
          %v2333 = vld [vmem:[%s4 + $0xc38] sm:$0xff]
          %v2334 = vld [vmem:[%s4 + $0xc40] sm:$0xff]
          %v2335 = vld [vmem:[%s4 + $0xc48] sm:$0xff]
          %v2336 = vld [vmem:[%s4 + $0xc50] sm:$0xff]
          %v2337 = vld [vmem:[%s4 + $0xc58] sm:$0xff]
          %v2338 = vld [vmem:[%s4 + $0xc60] sm:$0xff]
          %v2339 = vld [vmem:[%s4 + $0xc68] sm:$0xff]
          %v2340 = vld [vmem:[%s4 + $0xc70] sm:$0xff]
          %v2341 = vld [vmem:[%s4 + $0xc78] sm:$0xff]
          %v2342 = vld [vmem:[%s4 + $0xc80] sm:$0xff]
          %v2343 = vld [vmem:[%s4 + $0xc88] sm:$0xff]
          %v2344 = vld [vmem:[%s4 + $0xc90] sm:$0xff]
          %v2345 = vld [vmem:[%s4 + $0xc98] sm:$0xff]
          %v2346 = vld [vmem:[%s4 + $0xca0] sm:$0xff]
          %v2347 = vld [vmem:[%s4 + $0xca8] sm:$0xff]
          %v2348 = vld [vmem:[%s4 + $0xcb0] sm:$0xff]
          %v2349 = vld [vmem:[%s4 + $0xcb8] sm:$0xff]
          %v2350 = vld [vmem:[%s4 + $0xcc0] sm:$0xff]
          %v2351 = vld [vmem:[%s4 + $0xcc8] sm:$0xff]
          %v2352 = vld [vmem:[%s4 + $0xcd0] sm:$0xff]
          %v2353 = vld [vmem:[%s4 + $0xcd8] sm:$0xff]
          %v2354 = vld [vmem:[%s4 + $0xce0] sm:$0xff]
          %v2355 = vld [vmem:[%s4 + $0xce8] sm:$0xff]
          %v2356 = vld [vmem:[%s4 + $0xcf0] sm:$0xff]
          %v2357 = vld [vmem:[%s4 + $0xcf8] sm:$0xff]
          %v2358 = vld [vmem:[%s4 + $0xd00] sm:$0xff]
          %v2359 = vld [vmem:[%s4 + $0xd08] sm:$0xff]
          %v2360 = vld [vmem:[%s4 + $0xd10] sm:$0xff]
          %v2361 = vld [vmem:[%s4 + $0xd18] sm:$0xff]
          %v2362 = vld [vmem:[%s4 + $0xd20] sm:$0xff]
          %v2363 = vld [vmem:[%s4 + $0xd28] sm:$0xff]
          %v2364 = vld [vmem:[%s4 + $0xd30] sm:$0xff]
          %v2365 = vld [vmem:[%s4 + $0xd38] sm:$0xff]
          %v2366 = vld [vmem:[%s4 + $0xd40] sm:$0xff]
          %v2367 = vld [vmem:[%s4 + $0xd48] sm:$0xff]
          %v2368 = vld [vmem:[%s4 + $0xd50] sm:$0xff]
          %v2369 = vld [vmem:[%s4 + $0xd58] sm:$0xff]
          %v2370 = vld [vmem:[%s4 + $0xd60] sm:$0xff]
          %v2371 = vld [vmem:[%s4 + $0xd68] sm:$0xff]
          %v2372 = vld [vmem:[%s4 + $0xd70] sm:$0xff]
          %v2373 = vld [vmem:[%s4 + $0xd78] sm:$0xff]
          %v2374 = vld [vmem:[%s4 + $0xd80] sm:$0xff]
          %v2375 = vld [vmem:[%s4 + $0xd88] sm:$0xff]
          %v2376 = vld [vmem:[%s4 + $0xd90] sm:$0xff]
          %v2377 = vld [vmem:[%s4 + $0xd98] sm:$0xff]
          %v2378 = vld [vmem:[%s4 + $0xda0] sm:$0xff]
          %v2379 = vld [vmem:[%s4 + $0xda8] sm:$0xff]
          %v2380 = vld [vmem:[%s4 + $0xdb0] sm:$0xff]
          %v2381 = vld [vmem:[%s4 + $0xdb8] sm:$0xff]
          %v2382 = vld [vmem:[%s4 + $0xdc0] sm:$0xff]
          %v2383 = vld [vmem:[%s4 + $0xdc8] sm:$0xff]
          %v2384 = vld [vmem:[%s4 + $0xdd0] sm:$0xff]
          %v2385 = vld [vmem:[%s4 + $0xdd8] sm:$0xff]
          %v2386 = vld [vmem:[%s4 + $0xde0] sm:$0xff]
          %v2387 = vld [vmem:[%s4 + $0xde8] sm:$0xff]
          %v2388 = vld [vmem:[%s4 + $0xdf0] sm:$0xff]
          %v2389 = vld [vmem:[%s4 + $0xdf8] sm:$0xff]
          %v2390 = vld [vmem:[%s4 + $0xe00] sm:$0xff]
          %v2391 = vld [vmem:[%s4 + $0xe08] sm:$0xff]
          %v2392 = vld [vmem:[%s4 + $0xe10] sm:$0xff]
          %v2393 = vld [vmem:[%s4 + $0xe18] sm:$0xff]
          %v2394 = vld [vmem:[%s4 + $0xe20] sm:$0xff]
          %v2395 = vld [vmem:[%s4 + $0xe28] sm:$0xff]
          %v2396 = vld [vmem:[%s4 + $0xe30] sm:$0xff]
          %v2397 = vld [vmem:[%s4 + $0xe38] sm:$0xff]
          %v2398 = vld [vmem:[%s4 + $0xe40] sm:$0xff]
          %v2399 = vld [vmem:[%s4 + $0xe48] sm:$0xff]
          %v2400 = vld [vmem:[%s4 + $0xe50] sm:$0xff]
          %v2401 = vld [vmem:[%s4 + $0xe58] sm:$0xff]
          %v2402 = vld [vmem:[%s4 + $0xe60] sm:$0xff]
          %v2403 = vld [vmem:[%s4 + $0xe68] sm:$0xff]
          %v2404 = vld [vmem:[%s4 + $0xe70] sm:$0xff]
          %v2405 = vld [vmem:[%s4 + $0xe78] sm:$0xff]
          %v2406 = vld [vmem:[%s4 + $0xe80] sm:$0xff]
          %v2407 = vld [vmem:[%s4 + $0xe88] sm:$0xff]
          %v2408 = vld [vmem:[%s4 + $0xe90] sm:$0xff]
          %v2409 = vld [vmem:[%s4 + $0xe98] sm:$0xff]
          %v2410 = vld [vmem:[%s4 + $0xea0] sm:$0xff]
          %v2411 = vld [vmem:[%s4 + $0xea8] sm:$0xff]
          %v2412 = vld [vmem:[%s4 + $0xeb0] sm:$0xff]
          %v2413 = vld [vmem:[%s4 + $0xeb8] sm:$0xff]
          %v2414 = vld [vmem:[%s4 + $0xec0] sm:$0xff]
          %v2415 = vld [vmem:[%s4 + $0xec8] sm:$0xff]
          %v2416 = vld [vmem:[%s4 + $0xed0] sm:$0xff]
          %v2417 = vld [vmem:[%s4 + $0xed8] sm:$0xff]
          %v2418 = vld [vmem:[%s4 + $0xee0] sm:$0xff]
          %v2419 = vld [vmem:[%s4 + $0xee8] sm:$0xff]
          %v2420 = vld [vmem:[%s4 + $0xef0] sm:$0xff]
          %v2421 = vld [vmem:[%s4 + $0xef8] sm:$0xff]
          %v2422 = vld [vmem:[%s4 + $0xf00] sm:$0xff]
          %v2423 = vld [vmem:[%s4 + $0xf08] sm:$0xff]
          %v2424 = vld [vmem:[%s4 + $0xf10] sm:$0xff]
          %v2425 = vld [vmem:[%s4 + $0xf18] sm:$0xff]
          %v2426 = vld [vmem:[%s4 + $0xf20] sm:$0xff]
          %v2427 = vld [vmem:[%s4 + $0xf28] sm:$0xff]
          %v2428 = vld [vmem:[%s4 + $0xf30] sm:$0xff]
          %v2429 = vld [vmem:[%s4 + $0xf38] sm:$0xff]
          %v2430 = vld [vmem:[%s4 + $0xf40] sm:$0xff]
          %v2431 = vld [vmem:[%s4 + $0xf48] sm:$0xff]
          %v2432 = vld [vmem:[%s4 + $0xf50] sm:$0xff]
          %v2433 = vld [vmem:[%s4 + $0xf58] sm:$0xff]
          %v2434 = vld [vmem:[%s4 + $0xf60] sm:$0xff]
          %v2435 = vld [vmem:[%s4 + $0xf68] sm:$0xff]
          %v2436 = vld [vmem:[%s4 + $0xf70] sm:$0xff]
          %v2437 = vld [vmem:[%s4 + $0xf78] sm:$0xff]
          %v2438 = vld [vmem:[%s4 + $0xf80] sm:$0xff]
          %v2439 = vld [vmem:[%s4 + $0xf88] sm:$0xff]
          %v2440 = vld [vmem:[%s4 + $0xf90] sm:$0xff]
          %v2441 = vld [vmem:[%s4 + $0xf98] sm:$0xff]
          %v2442 = vld [vmem:[%s4 + $0xfa0] sm:$0xff]
          %v2443 = vld [vmem:[%s4 + $0xfa8] sm:$0xff]
          %v2444 = vld [vmem:[%s4 + $0xfb0] sm:$0xff]
          %v2445 = vld [vmem:[%s4 + $0xfb8] sm:$0xff]
          %v2446 = vld [vmem:[%s4 + $0xfc0] sm:$0xff]
          %v2447 = vld [vmem:[%s4 + $0xfc8] sm:$0xff]
          %v2448 = vld [vmem:[%s4 + $0xfd0] sm:$0xff]
          %v2449 = vld [vmem:[%s4 + $0xfd8] sm:$0xff]
          %v2450 = vld [vmem:[%s4 + $0xfe0] sm:$0xff]
          %v2451 = vld [vmem:[%s4 + $0xfe8] sm:$0xff]
          %v2452 = vld [vmem:[%s4 + $0xff0] sm:$0xff]
          %v2453 = vld [vmem:[%s4 + $0xff8] sm:$0xff]
          %v2454 = vld [vmem:[%s4 + $0x1000] sm:$0xff]
          %v2455 = vld [vmem:[%s4 + $0x1008] sm:$0xff]
          %v2456 = vld [vmem:[%s4 + $0x1010] sm:$0xff]
          %v2457 = vld [vmem:[%s4 + $0x1018] sm:$0xff]
          %v2458 = vld [vmem:[%s4 + $0x1020] sm:$0xff]
          %v2459 = vld [vmem:[%s4 + $0x1028] sm:$0xff]
          %v2460 = vld [vmem:[%s4 + $0x1030] sm:$0xff]
          %v2461 = vld [vmem:[%s4 + $0x1038] sm:$0xff]
          %v2462 = vld [vmem:[%s4 + $0x1040] sm:$0xff]
          %v2463 = vld [vmem:[%s4 + $0x1048] sm:$0xff]
          %v2464 = vld [vmem:[%s4 + $0x1050] sm:$0xff]
          %v2465 = vld [vmem:[%s4 + $0x1058] sm:$0xff]
          %v2466 = vld [vmem:[%s4 + $0x1060] sm:$0xff]
          %v2467 = vld [vmem:[%s4 + $0x1068] sm:$0xff]
          %v2468 = vld [vmem:[%s4 + $0x1070] sm:$0xff]
          %v2469 = vld [vmem:[%s4 + $0x1078] sm:$0xff]
          %v2470 = vld [vmem:[%s4 + $0x1080] sm:$0xff]
          %v2471 = vld [vmem:[%s4 + $0x1088] sm:$0xff]
          %v2472 = vld [vmem:[%s4 + $0x1090] sm:$0xff]
          %v2473 = vld [vmem:[%s4 + $0x1098] sm:$0xff]
          %v2474 = vld [vmem:[%s4 + $0x10a0] sm:$0xff]
          %v2475 = vld [vmem:[%s4 + $0x10a8] sm:$0xff]
          %v2476 = vld [vmem:[%s4 + $0x10b0] sm:$0xff]
          %v2477 = vld [vmem:[%s4 + $0x10b8] sm:$0xff]
          %v2478 = vld [vmem:[%s4 + $0x10c0] sm:$0xff]
          %v2479 = vld [vmem:[%s4 + $0x10c8] sm:$0xff]
          %v2480 = vld [vmem:[%s4 + $0x10d0] sm:$0xff]
          %v2481 = vld [vmem:[%s4 + $0x10d8] sm:$0xff]
          %v2482 = vld [vmem:[%s4 + $0x10e0] sm:$0xff]
          %v2483 = vld [vmem:[%s4 + $0x10e8] sm:$0xff]
          %v2484 = vld [vmem:[%s4 + $0x10f0] sm:$0xff]
          %v2485 = vld [vmem:[%s4 + $0x10f8] sm:$0xff]
          %v2486 = vld [vmem:[%s4 + $0x1100] sm:$0xff]
          %v2487 = vld [vmem:[%s4 + $0x1108] sm:$0xff]
          %v2488 = vld [vmem:[%s4 + $0x1110] sm:$0xff]
          %v2489 = vld [vmem:[%s4 + $0x1118] sm:$0xff]
          %v2490 = vld [vmem:[%s4 + $0x1120] sm:$0xff]
          %v2491 = vld [vmem:[%s4 + $0x1128] sm:$0xff]
          %v2492 = vld [vmem:[%s4 + $0x1130] sm:$0xff]
          %v2493 = vld [vmem:[%s4 + $0x1138] sm:$0xff]
          %v2494 = vld [vmem:[%s4 + $0x1140] sm:$0xff]
          %v2495 = vld [vmem:[%s4 + $0x1148] sm:$0xff]
          %v2496 = vld [vmem:[%s4 + $0x1150] sm:$0xff]
          %v2497 = vld [vmem:[%s4 + $0x1158] sm:$0xff]
          %v2498 = vld [vmem:[%s4 + $0x1160] sm:$0xff]
          %v2499 = vld [vmem:[%s4 + $0x1168] sm:$0xff]
          %v2500 = vld [vmem:[%s4 + $0x1170] sm:$0xff]
          %v2501 = vld [vmem:[%s4 + $0x1178] sm:$0xff]
          %v2502 = vld [vmem:[%s4 + $0x1180] sm:$0xff]
          %v2503 = vld [vmem:[%s4 + $0x1188] sm:$0xff]
          %v2504 = vld [vmem:[%s4 + $0x1190] sm:$0xff]
          %v2505 = vld [vmem:[%s4 + $0x1198] sm:$0xff]
          %v2506 = vld [vmem:[%s4 + $0x11a0] sm:$0xff]
          %v2507 = vld [vmem:[%s4 + $0x11a8] sm:$0xff]
          %v2508 = vld [vmem:[%s4 + $0x11b0] sm:$0xff]
          %v2509 = vld [vmem:[%s4 + $0x11b8] sm:$0xff]
          %v2510 = vld [vmem:[%s4 + $0x11c0] sm:$0xff]
          %v2511 = vld [vmem:[%s4 + $0x11c8] sm:$0xff]
          %v2512 = vld [vmem:[%s4 + $0x11d0] sm:$0xff]
          %v2513 = vld [vmem:[%s4 + $0x11d8] sm:$0xff]
          %v2514 = vld [vmem:[%s4 + $0x11e0] sm:$0xff]
          %v2515 = vld [vmem:[%s4 + $0x11e8] sm:$0xff]
          %v2516 = vld [vmem:[%s4 + $0x11f0] sm:$0xff]
          %v2517 = vld [vmem:[%s4 + $0x11f8] sm:$0xff]
          %v2518 = vld [vmem:[%s5] sm:$0x3f]
          %v2520 = vlaneseq
          %v2521 = vshrl.u32 %v2520, 7
          %v2522 = vsub.s32 0, %v2521
          %v2523 = vrot.slane %v2518, %v2522
          %v2524 = vlaneseq
          %v2525 = vshrl.u32 %v2524, 7
          %v2526 = vsub.s32 1, %v2525
          %v2527 = vrot.slane %v2518, %v2526
          %v2528 = vlaneseq
          %v2529 = vshrl.u32 %v2528, 7
          %v2530 = vsub.s32 2, %v2529
          %v2531 = vrot.slane %v2518, %v2530
          %v2532 = vlaneseq
          %v2533 = vshrl.u32 %v2532, 7
          %v2534 = vsub.s32 3, %v2533
          %v2535 = vrot.slane %v2518, %v2534
          %v2536 = vlaneseq
          %v2537 = vshrl.u32 %v2536, 7
          %v2538 = vsub.s32 4, %v2537
          %v2539 = vrot.slane %v2518, %v2538
          %v2540 = vlaneseq
          %v2541 = vshrl.u32 %v2540, 7
          %v2542 = vsub.s32 5, %v2541
          %v2543 = vrot.slane %v2518, %v2542
          %v2553 = vcombine.high %v1939, %v1939
          %v2554 = vcombine.high %v1940, %v1940
          %v2555 = vcombine.high %v1941, %v1941
          %2559 = vmatprep.subr.mxu0 %v1943
          %2560 = vmatpush1.xpose.msra.mxu0 %v1942
          %2561 = vmatprep.subr.mxu0 %v1949
          %2562 = vmatpush1.xpose.msra.mxu0 %v1948
          %2563 = vmatprep.subr.mxu0 %v1955
          %2564 = vmatpush1.xpose.msra.mxu0 %v1954
          %2565 = vmatprep.subr.mxu0 %v1961
          %2566 = vmatpush1.xpose.msra.mxu0 %v1960
          %2567 = vmatprep.subr.mxu0 %v1967
          %2568 = vmatpush1.xpose.msra.mxu0 %v1966
          %2569 = vmatprep.subr.mxu0 %v1973
          %2570 = vmatpush1.xpose.msra.mxu0 %v1972
          %2571 = vmatprep.subr.mxu0 %v1979
          %2572 = vmatpush1.xpose.msra.mxu0 %v1978
          %2573 = vmatprep.subr.mxu0 %v1985
          %2574 = vmatpush1.xpose.msra.mxu0 %v1984
          %2575 = vmatprep.subr.mxu0 %v1991
          %2576 = vmatpush1.xpose.msra.mxu0 %v1990
          %2577 = vmatprep.subr.mxu0 %v1997
          %2578 = vmatpush1.xpose.msra.mxu0 %v1996
          %2579 = vmatprep.subr.mxu0 %v2003
          %2580 = vmatpush1.xpose.msra.mxu0 %v2002
          %2581 = vmatprep.subr.mxu0 %v2009
          %2582 = vmatpush1.xpose.msra.mxu0 %v2008
          %2583 = vmatprep.subr.mxu0 %v2015
          %2584 = vmatpush1.xpose.msra.mxu0 %v2014
          %2585 = vmatprep.subr.mxu0 %v2021
          %2586 = vmatpush1.xpose.msra.mxu0 %v2020
          %2587 = vmatprep.subr.mxu0 %v2027
          %2588 = vmatpush1.xpose.msra.mxu0 %v2026
          %2589 = vmatprep.subr.mxu0 %v2033
          %2590 = vmatpush1.xpose.msra.mxu0 %v2032
          %2591 = vmatprep.subr.mxu0 %v2039
          %2592 = vmatpush1.xpose.msra.mxu0 %v2038
          %2593 = vmatprep.subr.mxu0 %v2045
          %2594 = vmatpush1.xpose.msra.mxu0 %v2044
          %2595 = vmatprep.subr.mxu0 %v2051
          %2596 = vmatpush1.xpose.msra.mxu0 %v2050
          %2597 = vmatprep.subr.mxu0 %v2057
          %2598 = vmatpush1.xpose.msra.mxu0 %v2056
          %2599 = vmatprep.subr.mxu0 %v2063
          %2600 = vmatpush1.xpose.msra.mxu0 %v2062
          %2601 = vmatprep.subr.mxu0 %v2069
          %2602 = vmatpush1.xpose.msra.mxu0 %v2068
          %2603 = vmatprep.subr.mxu0 %v2075
          %2604 = vmatpush1.xpose.msra.mxu0 %v2074
          %2605 = vmatprep.subr.mxu0 %v2081
          %2606 = vmatpush1.xpose.msra.mxu0 %v2080
          %2607 = vmatprep.subr.mxu0 %v2087
          %2608 = vmatpush1.xpose.msra.mxu0 %v2086
          %2609 = vmatprep.subr.mxu0 %v2093
          %2610 = vmatpush1.xpose.msra.mxu0 %v2092
          %2611 = vmatprep.subr.mxu0 %v2099
          %2612 = vmatpush1.xpose.msra.mxu0 %v2098
          %2613 = vmatprep.subr.mxu0 %v2105
          %2614 = vmatpush1.xpose.msra.mxu0 %v2104
          %2615 = vmatprep.subr.mxu0 %v2111
          %2616 = vmatpush1.xpose.msra.mxu0 %v2110
          %2617 = vmatprep.subr.mxu0 %v2117
          %2618 = vmatpush1.xpose.msra.mxu0 %v2116
          %2619 = vmatprep.subr.mxu0 %v2123
          %2620 = vmatpush1.xpose.msra.mxu0 %v2122
          %2621 = vmatprep.subr.mxu0 %v2129
          %2622 = vmatpush1.xpose.msra.mxu0 %v2128
          %2623 = vmatprep.mubr.f32.mxu0 %v2553
          %2624 = vmatmul.mubr.f32.gmra.mrb[0].mxu0 %v1939
          %v2625 = vpop.f32.mrb[0].mxu0
          %v2626 = vadd.f32 %v2523, %v2625
          %v2627 = vpop.f32.mrb[0].mxu0
          %v2628 = vadd.f32 %v2527, %v2627
          %2629 = vdwg.mxu0
          %2630 = vmatprep.subr.mxu0 %v1945
          %2631 = vmatpush1.xpose.msra.mxu0 %v1944
          %2632 = vmatprep.subr.mxu0 %v1951
          %2633 = vmatpush1.xpose.msra.mxu0 %v1950
          %2634 = vmatprep.subr.mxu0 %v1957
          %2635 = vmatpush1.xpose.msra.mxu0 %v1956
          %2636 = vmatprep.subr.mxu0 %v1963
          %2637 = vmatpush1.xpose.msra.mxu0 %v1962
          %2638 = vmatprep.subr.mxu0 %v1969
          %2639 = vmatpush1.xpose.msra.mxu0 %v1968
          %2640 = vmatprep.subr.mxu0 %v1975
          %2641 = vmatpush1.xpose.msra.mxu0 %v1974
          %2642 = vmatprep.subr.mxu0 %v1981
          %2643 = vmatpush1.xpose.msra.mxu0 %v1980
          %2644 = vmatprep.subr.mxu0 %v1987
          %2645 = vmatpush1.xpose.msra.mxu0 %v1986
          %2646 = vmatprep.subr.mxu0 %v1993
          %2647 = vmatpush1.xpose.msra.mxu0 %v1992
          %2648 = vmatprep.subr.mxu0 %v1999
          %2649 = vmatpush1.xpose.msra.mxu0 %v1998
          %2650 = vmatprep.subr.mxu0 %v2005
          %2651 = vmatpush1.xpose.msra.mxu0 %v2004
          %2652 = vmatprep.subr.mxu0 %v2011
          %2653 = vmatpush1.xpose.msra.mxu0 %v2010
          %2654 = vmatprep.subr.mxu0 %v2017
          %2655 = vmatpush1.xpose.msra.mxu0 %v2016
          %2656 = vmatprep.subr.mxu0 %v2023
          %2657 = vmatpush1.xpose.msra.mxu0 %v2022
          %2658 = vmatprep.subr.mxu0 %v2029
          %2659 = vmatpush1.xpose.msra.mxu0 %v2028
          %2660 = vmatprep.subr.mxu0 %v2035
          %2661 = vmatpush1.xpose.msra.mxu0 %v2034
          %2662 = vmatprep.subr.mxu0 %v2041
          %2663 = vmatpush1.xpose.msra.mxu0 %v2040
          %2664 = vmatprep.subr.mxu0 %v2047
          %2665 = vmatpush1.xpose.msra.mxu0 %v2046
          %2666 = vmatprep.subr.mxu0 %v2053
          %2667 = vmatpush1.xpose.msra.mxu0 %v2052
          %2668 = vmatprep.subr.mxu0 %v2059
          %2669 = vmatpush1.xpose.msra.mxu0 %v2058
          %2670 = vmatprep.subr.mxu0 %v2065
          %2671 = vmatpush1.xpose.msra.mxu0 %v2064
          %2672 = vmatprep.subr.mxu0 %v2071
          %2673 = vmatpush1.xpose.msra.mxu0 %v2070
          %2674 = vmatprep.subr.mxu0 %v2077
          %2675 = vmatpush1.xpose.msra.mxu0 %v2076
          %2676 = vmatprep.subr.mxu0 %v2083
          %2677 = vmatpush1.xpose.msra.mxu0 %v2082
          %2678 = vmatprep.subr.mxu0 %v2089
          %2679 = vmatpush1.xpose.msra.mxu0 %v2088
          %2680 = vmatprep.subr.mxu0 %v2095
          %2681 = vmatpush1.xpose.msra.mxu0 %v2094
          %2682 = vmatprep.subr.mxu0 %v2101
          %2683 = vmatpush1.xpose.msra.mxu0 %v2100
          %2684 = vmatprep.subr.mxu0 %v2107
          %2685 = vmatpush1.xpose.msra.mxu0 %v2106
          %2686 = vmatprep.subr.mxu0 %v2113
          %2687 = vmatpush1.xpose.msra.mxu0 %v2112
          %2688 = vmatprep.subr.mxu0 %v2119
          %2689 = vmatpush1.xpose.msra.mxu0 %v2118
          %2690 = vmatprep.subr.mxu0 %v2125
          %2691 = vmatpush1.xpose.msra.mxu0 %v2124
          %2692 = vmatprep.subr.mxu0 %v2131
          %2693 = vmatpush1.xpose.msra.mxu0 %v2130
          %2694 = vmatprep.mubr.f32.mxu0 %v2554
          %2695 = vmatmul.mubr.f32.gmra.mrb[0].mxu0 %v1940
          %v2696 = vpop.f32.mrb[0].mxu0
          %v2697 = vadd.f32 %v2626, %v2696
          %v2698 = vpop.f32.mrb[0].mxu0
          %v2699 = vadd.f32 %v2628, %v2698
          %2700 = vdwg.mxu0
          %2701 = vmatprep.subr.mxu0 %v1947
          %2702 = vmatpush1.xpose.msra.mxu0 %v1946
          %2703 = vmatprep.subr.mxu0 %v1953
          %2704 = vmatpush1.xpose.msra.mxu0 %v1952
          %2705 = vmatprep.subr.mxu0 %v1959
          %2706 = vmatpush1.xpose.msra.mxu0 %v1958
          %2707 = vmatprep.subr.mxu0 %v1965
          %2708 = vmatpush1.xpose.msra.mxu0 %v1964
          %2709 = vmatprep.subr.mxu0 %v1971
          %2710 = vmatpush1.xpose.msra.mxu0 %v1970
          %2711 = vmatprep.subr.mxu0 %v1977
          %2712 = vmatpush1.xpose.msra.mxu0 %v1976
          %2713 = vmatprep.subr.mxu0 %v1983
          %2714 = vmatpush1.xpose.msra.mxu0 %v1982
          %2715 = vmatprep.subr.mxu0 %v1989
          %2716 = vmatpush1.xpose.msra.mxu0 %v1988
          %2717 = vmatprep.subr.mxu0 %v1995
          %2718 = vmatpush1.xpose.msra.mxu0 %v1994
          %2719 = vmatprep.subr.mxu0 %v2001
          %2720 = vmatpush1.xpose.msra.mxu0 %v2000
          %2721 = vmatprep.subr.mxu0 %v2007
          %2722 = vmatpush1.xpose.msra.mxu0 %v2006
          %2723 = vmatprep.subr.mxu0 %v2013
          %2724 = vmatpush1.xpose.msra.mxu0 %v2012
          %2725 = vmatprep.subr.mxu0 %v2019
          %2726 = vmatpush1.xpose.msra.mxu0 %v2018
          %2727 = vmatprep.subr.mxu0 %v2025
          %2728 = vmatpush1.xpose.msra.mxu0 %v2024
          %2729 = vmatprep.subr.mxu0 %v2031
          %2730 = vmatpush1.xpose.msra.mxu0 %v2030
          %2731 = vmatprep.subr.mxu0 %v2037
          %2732 = vmatpush1.xpose.msra.mxu0 %v2036
          %2733 = vmatprep.subr.mxu0 %v2043
          %2734 = vmatpush1.xpose.msra.mxu0 %v2042
          %2735 = vmatprep.subr.mxu0 %v2049
          %2736 = vmatpush1.xpose.msra.mxu0 %v2048
          %2737 = vmatprep.subr.mxu0 %v2055
          %2738 = vmatpush1.xpose.msra.mxu0 %v2054
          %2739 = vmatprep.subr.mxu0 %v2061
          %2740 = vmatpush1.xpose.msra.mxu0 %v2060
          %2741 = vmatprep.subr.mxu0 %v2067
          %2742 = vmatpush1.xpose.msra.mxu0 %v2066
          %2743 = vmatprep.subr.mxu0 %v2073
          %2744 = vmatpush1.xpose.msra.mxu0 %v2072
          %2745 = vmatprep.subr.mxu0 %v2079
          %2746 = vmatpush1.xpose.msra.mxu0 %v2078
          %2747 = vmatprep.subr.mxu0 %v2085
          %2748 = vmatpush1.xpose.msra.mxu0 %v2084
          %2749 = vmatprep.subr.mxu0 %v2091
          %2750 = vmatpush1.xpose.msra.mxu0 %v2090
          %2751 = vmatprep.subr.mxu0 %v2097
          %2752 = vmatpush1.xpose.msra.mxu0 %v2096
          %2753 = vmatprep.subr.mxu0 %v2103
          %2754 = vmatpush1.xpose.msra.mxu0 %v2102
          %2755 = vmatprep.subr.mxu0 %v2109
          %2756 = vmatpush1.xpose.msra.mxu0 %v2108
          %2757 = vmatprep.subr.mxu0 %v2115
          %2758 = vmatpush1.xpose.msra.mxu0 %v2114
          %2759 = vmatprep.subr.mxu0 %v2121
          %2760 = vmatpush1.xpose.msra.mxu0 %v2120
          %2761 = vmatprep.subr.mxu0 %v2127
          %2762 = vmatpush1.xpose.msra.mxu0 %v2126
          %2763 = vmatprep.subr.mxu0 %v2133
          %2764 = vmatpush1.xpose.msra.mxu0 %v2132
          %2765 = vmatprep.mubr.f32.mxu0 %v2555
          %2766 = vmatmul.mubr.f32.gmra.mrb[0].mxu0 %v1941
          %v2767 = vpop.f32.mrb[0].mxu0
          %v2768 = vadd.f32 %v2697, %v2767
          %v2769 = vpop.f32.mrb[0].mxu0
          %v2770 = vadd.f32 %v2699, %v2769
          %2771 = vdwg.mxu0
          %2772 = vmatprep.subr.mxu0 %v2135
          %2773 = vmatpush1.xpose.msra.mxu0 %v2134
          %2774 = vmatprep.subr.mxu0 %v2141
          %2775 = vmatpush1.xpose.msra.mxu0 %v2140
          %2776 = vmatprep.subr.mxu0 %v2147
          %2777 = vmatpush1.xpose.msra.mxu0 %v2146
          %2778 = vmatprep.subr.mxu0 %v2153
          %2779 = vmatpush1.xpose.msra.mxu0 %v2152
          %2780 = vmatprep.subr.mxu0 %v2159
          %2781 = vmatpush1.xpose.msra.mxu0 %v2158
          %2782 = vmatprep.subr.mxu0 %v2165
          %2783 = vmatpush1.xpose.msra.mxu0 %v2164
          %2784 = vmatprep.subr.mxu0 %v2171
          %2785 = vmatpush1.xpose.msra.mxu0 %v2170
          %2786 = vmatprep.subr.mxu0 %v2177
          %2787 = vmatpush1.xpose.msra.mxu0 %v2176
          %2788 = vmatprep.subr.mxu0 %v2183
          %2789 = vmatpush1.xpose.msra.mxu0 %v2182
          %2790 = vmatprep.subr.mxu0 %v2189
          %2791 = vmatpush1.xpose.msra.mxu0 %v2188
          %2792 = vmatprep.subr.mxu0 %v2195
          %2793 = vmatpush1.xpose.msra.mxu0 %v2194
          %2794 = vmatprep.subr.mxu0 %v2201
          %2795 = vmatpush1.xpose.msra.mxu0 %v2200
          %2796 = vmatprep.subr.mxu0 %v2207
          %2797 = vmatpush1.xpose.msra.mxu0 %v2206
          %2798 = vmatprep.subr.mxu0 %v2213
          %2799 = vmatpush1.xpose.msra.mxu0 %v2212
          %2800 = vmatprep.subr.mxu0 %v2219
          %2801 = vmatpush1.xpose.msra.mxu0 %v2218
          %2802 = vmatprep.subr.mxu0 %v2225
          %2803 = vmatpush1.xpose.msra.mxu0 %v2224
          %2804 = vmatprep.subr.mxu0 %v2231
          %2805 = vmatpush1.xpose.msra.mxu0 %v2230
          %2806 = vmatprep.subr.mxu0 %v2237
          %2807 = vmatpush1.xpose.msra.mxu0 %v2236
          %2808 = vmatprep.subr.mxu0 %v2243
          %2809 = vmatpush1.xpose.msra.mxu0 %v2242
          %2810 = vmatprep.subr.mxu0 %v2249
          %2811 = vmatpush1.xpose.msra.mxu0 %v2248
          %2812 = vmatprep.subr.mxu0 %v2255
          %2813 = vmatpush1.xpose.msra.mxu0 %v2254
          %2814 = vmatprep.subr.mxu0 %v2261
          %2815 = vmatpush1.xpose.msra.mxu0 %v2260
          %2816 = vmatprep.subr.mxu0 %v2267
          %2817 = vmatpush1.xpose.msra.mxu0 %v2266
          %2818 = vmatprep.subr.mxu0 %v2273
          %2819 = vmatpush1.xpose.msra.mxu0 %v2272
          %2820 = vmatprep.subr.mxu0 %v2279
          %2821 = vmatpush1.xpose.msra.mxu0 %v2278
          %2822 = vmatprep.subr.mxu0 %v2285
          %2823 = vmatpush1.xpose.msra.mxu0 %v2284
          %2824 = vmatprep.subr.mxu0 %v2291
          %2825 = vmatpush1.xpose.msra.mxu0 %v2290
          %2826 = vmatprep.subr.mxu0 %v2297
          %2827 = vmatpush1.xpose.msra.mxu0 %v2296
          %2828 = vmatprep.subr.mxu0 %v2303
          %2829 = vmatpush1.xpose.msra.mxu0 %v2302
          %2830 = vmatprep.subr.mxu0 %v2309
          %2831 = vmatpush1.xpose.msra.mxu0 %v2308
          %2832 = vmatprep.subr.mxu0 %v2315
          %2833 = vmatpush1.xpose.msra.mxu0 %v2314
          %2834 = vmatprep.subr.mxu0 %v2321
          %2835 = vmatpush1.xpose.msra.mxu0 %v2320
          %2836 = vmatprep.mubr.f32.mxu0 %v2553
          %2837 = vmatmul.mubr.f32.gmra.mrb[0].mxu0 %v1939
          %v2838 = vpop.f32.mrb[0].mxu0
          %v2839 = vadd.f32 %v2531, %v2838
          %v2840 = vpop.f32.mrb[0].mxu0
          %v2841 = vadd.f32 %v2535, %v2840
          %2842 = vdwg.mxu0
          %2843 = vmatprep.subr.mxu0 %v2137
          %2844 = vmatpush1.xpose.msra.mxu0 %v2136
          %2845 = vmatprep.subr.mxu0 %v2143
          %2846 = vmatpush1.xpose.msra.mxu0 %v2142
          %2847 = vmatprep.subr.mxu0 %v2149
          %2848 = vmatpush1.xpose.msra.mxu0 %v2148
          %2849 = vmatprep.subr.mxu0 %v2155
          %2850 = vmatpush1.xpose.msra.mxu0 %v2154
          %2851 = vmatprep.subr.mxu0 %v2161
          %2852 = vmatpush1.xpose.msra.mxu0 %v2160
          %2853 = vmatprep.subr.mxu0 %v2167
          %2854 = vmatpush1.xpose.msra.mxu0 %v2166
          %2855 = vmatprep.subr.mxu0 %v2173
          %2856 = vmatpush1.xpose.msra.mxu0 %v2172
          %2857 = vmatprep.subr.mxu0 %v2179
          %2858 = vmatpush1.xpose.msra.mxu0 %v2178
          %2859 = vmatprep.subr.mxu0 %v2185
          %2860 = vmatpush1.xpose.msra.mxu0 %v2184
          %2861 = vmatprep.subr.mxu0 %v2191
          %2862 = vmatpush1.xpose.msra.mxu0 %v2190
          %2863 = vmatprep.subr.mxu0 %v2197
          %2864 = vmatpush1.xpose.msra.mxu0 %v2196
          %2865 = vmatprep.subr.mxu0 %v2203
          %2866 = vmatpush1.xpose.msra.mxu0 %v2202
          %2867 = vmatprep.subr.mxu0 %v2209
          %2868 = vmatpush1.xpose.msra.mxu0 %v2208
          %2869 = vmatprep.subr.mxu0 %v2215
          %2870 = vmatpush1.xpose.msra.mxu0 %v2214
          %2871 = vmatprep.subr.mxu0 %v2221
          %2872 = vmatpush1.xpose.msra.mxu0 %v2220
          %2873 = vmatprep.subr.mxu0 %v2227
          %2874 = vmatpush1.xpose.msra.mxu0 %v2226
          %2875 = vmatprep.subr.mxu0 %v2233
          %2876 = vmatpush1.xpose.msra.mxu0 %v2232
          %2877 = vmatprep.subr.mxu0 %v2239
          %2878 = vmatpush1.xpose.msra.mxu0 %v2238
          %2879 = vmatprep.subr.mxu0 %v2245
          %2880 = vmatpush1.xpose.msra.mxu0 %v2244
          %2881 = vmatprep.subr.mxu0 %v2251
          %2882 = vmatpush1.xpose.msra.mxu0 %v2250
          %2883 = vmatprep.subr.mxu0 %v2257
          %2884 = vmatpush1.xpose.msra.mxu0 %v2256
          %2885 = vmatprep.subr.mxu0 %v2263
          %2886 = vmatpush1.xpose.msra.mxu0 %v2262
          %2887 = vmatprep.subr.mxu0 %v2269
          %2888 = vmatpush1.xpose.msra.mxu0 %v2268
          %2889 = vmatprep.subr.mxu0 %v2275
          %2890 = vmatpush1.xpose.msra.mxu0 %v2274
          %2891 = vmatprep.subr.mxu0 %v2281
          %2892 = vmatpush1.xpose.msra.mxu0 %v2280
          %2893 = vmatprep.subr.mxu0 %v2287
          %2894 = vmatpush1.xpose.msra.mxu0 %v2286
          %2895 = vmatprep.subr.mxu0 %v2293
          %2896 = vmatpush1.xpose.msra.mxu0 %v2292
          %2897 = vmatprep.subr.mxu0 %v2299
          %2898 = vmatpush1.xpose.msra.mxu0 %v2298
          %2899 = vmatprep.subr.mxu0 %v2305
          %2900 = vmatpush1.xpose.msra.mxu0 %v2304
          %2901 = vmatprep.subr.mxu0 %v2311
          %2902 = vmatpush1.xpose.msra.mxu0 %v2310
          %2903 = vmatprep.subr.mxu0 %v2317
          %2904 = vmatpush1.xpose.msra.mxu0 %v2316
          %2905 = vmatprep.subr.mxu0 %v2323
          %2906 = vmatpush1.xpose.msra.mxu0 %v2322
          %2907 = vmatprep.mubr.f32.mxu0 %v2554
          %2908 = vmatmul.mubr.f32.gmra.mrb[0].mxu0 %v1940
          %v2909 = vpop.f32.mrb[0].mxu0
          %v2910 = vadd.f32 %v2839, %v2909
          %v2911 = vpop.f32.mrb[0].mxu0
          %v2912 = vadd.f32 %v2841, %v2911
          %2913 = vdwg.mxu0
          %2914 = vmatprep.subr.mxu0 %v2139
          %2915 = vmatpush1.xpose.msra.mxu0 %v2138
          %2916 = vmatprep.subr.mxu0 %v2145
          %2917 = vmatpush1.xpose.msra.mxu0 %v2144
          %2918 = vmatprep.subr.mxu0 %v2151
          %2919 = vmatpush1.xpose.msra.mxu0 %v2150
          %2920 = vmatprep.subr.mxu0 %v2157
          %2921 = vmatpush1.xpose.msra.mxu0 %v2156
          %2922 = vmatprep.subr.mxu0 %v2163
          %2923 = vmatpush1.xpose.msra.mxu0 %v2162
          %2924 = vmatprep.subr.mxu0 %v2169
          %2925 = vmatpush1.xpose.msra.mxu0 %v2168
          %2926 = vmatprep.subr.mxu0 %v2175
          %2927 = vmatpush1.xpose.msra.mxu0 %v2174
          %2928 = vmatprep.subr.mxu0 %v2181
          %2929 = vmatpush1.xpose.msra.mxu0 %v2180
          %2930 = vmatprep.subr.mxu0 %v2187
          %2931 = vmatpush1.xpose.msra.mxu0 %v2186
          %2932 = vmatprep.subr.mxu0 %v2193
          %2933 = vmatpush1.xpose.msra.mxu0 %v2192
          %2934 = vmatprep.subr.mxu0 %v2199
          %2935 = vmatpush1.xpose.msra.mxu0 %v2198
          %2936 = vmatprep.subr.mxu0 %v2205
          %2937 = vmatpush1.xpose.msra.mxu0 %v2204
          %2938 = vmatprep.subr.mxu0 %v2211
          %2939 = vmatpush1.xpose.msra.mxu0 %v2210
          %2940 = vmatprep.subr.mxu0 %v2217
          %2941 = vmatpush1.xpose.msra.mxu0 %v2216
          %2942 = vmatprep.subr.mxu0 %v2223
          %2943 = vmatpush1.xpose.msra.mxu0 %v2222
          %2944 = vmatprep.subr.mxu0 %v2229
          %2945 = vmatpush1.xpose.msra.mxu0 %v2228
          %2946 = vmatprep.subr.mxu0 %v2235
          %2947 = vmatpush1.xpose.msra.mxu0 %v2234
          %2948 = vmatprep.subr.mxu0 %v2241
          %2949 = vmatpush1.xpose.msra.mxu0 %v2240
          %2950 = vmatprep.subr.mxu0 %v2247
          %2951 = vmatpush1.xpose.msra.mxu0 %v2246
          %2952 = vmatprep.subr.mxu0 %v2253
          %2953 = vmatpush1.xpose.msra.mxu0 %v2252
          %2954 = vmatprep.subr.mxu0 %v2259
          %2955 = vmatpush1.xpose.msra.mxu0 %v2258
          %2956 = vmatprep.subr.mxu0 %v2265
          %2957 = vmatpush1.xpose.msra.mxu0 %v2264
          %2958 = vmatprep.subr.mxu0 %v2271
          %2959 = vmatpush1.xpose.msra.mxu0 %v2270
          %2960 = vmatprep.subr.mxu0 %v2277
          %2961 = vmatpush1.xpose.msra.mxu0 %v2276
          %2962 = vmatprep.subr.mxu0 %v2283
          %2963 = vmatpush1.xpose.msra.mxu0 %v2282
          %2964 = vmatprep.subr.mxu0 %v2289
          %2965 = vmatpush1.xpose.msra.mxu0 %v2288
          %2966 = vmatprep.subr.mxu0 %v2295
          %2967 = vmatpush1.xpose.msra.mxu0 %v2294
          %2968 = vmatprep.subr.mxu0 %v2301
          %2969 = vmatpush1.xpose.msra.mxu0 %v2300
          %2970 = vmatprep.subr.mxu0 %v2307
          %2971 = vmatpush1.xpose.msra.mxu0 %v2306
          %2972 = vmatprep.subr.mxu0 %v2313
          %2973 = vmatpush1.xpose.msra.mxu0 %v2312
          %2974 = vmatprep.subr.mxu0 %v2319
          %2975 = vmatpush1.xpose.msra.mxu0 %v2318
          %2976 = vmatprep.subr.mxu0 %v2325
          %2977 = vmatpush1.xpose.msra.mxu0 %v2324
          %2978 = vmatprep.mubr.f32.mxu0 %v2555
          %2979 = vmatmul.mubr.f32.gmra.mrb[0].mxu0 %v1941
          %v2980 = vpop.f32.mrb[0].mxu0
          %v2981 = vadd.f32 %v2910, %v2980
          %v2982 = vpop.f32.mrb[0].mxu0
          %v2983 = vadd.f32 %v2912, %v2982
          %2984 = vdwg.mxu0
          %2985 = vmatprep.subr.mxu0 %v2327
          %2986 = vmatpush1.xpose.msra.mxu0 %v2326
          %2987 = vmatprep.subr.mxu0 %v2333
          %2988 = vmatpush1.xpose.msra.mxu0 %v2332
          %2989 = vmatprep.subr.mxu0 %v2339
          %2990 = vmatpush1.xpose.msra.mxu0 %v2338
          %2991 = vmatprep.subr.mxu0 %v2345
          %2992 = vmatpush1.xpose.msra.mxu0 %v2344
          %2993 = vmatprep.subr.mxu0 %v2351
          %2994 = vmatpush1.xpose.msra.mxu0 %v2350
          %2995 = vmatprep.subr.mxu0 %v2357
          %2996 = vmatpush1.xpose.msra.mxu0 %v2356
          %2997 = vmatprep.subr.mxu0 %v2363
          %2998 = vmatpush1.xpose.msra.mxu0 %v2362
          %2999 = vmatprep.subr.mxu0 %v2369
          %3000 = vmatpush1.xpose.msra.mxu0 %v2368
          %3001 = vmatprep.subr.mxu0 %v2375
          %3002 = vmatpush1.xpose.msra.mxu0 %v2374
          %3003 = vmatprep.subr.mxu0 %v2381
          %3004 = vmatpush1.xpose.msra.mxu0 %v2380
          %3005 = vmatprep.subr.mxu0 %v2387
          %3006 = vmatpush1.xpose.msra.mxu0 %v2386
          %3007 = vmatprep.subr.mxu0 %v2393
          %3008 = vmatpush1.xpose.msra.mxu0 %v2392
          %3009 = vmatprep.subr.mxu0 %v2399
          %3010 = vmatpush1.xpose.msra.mxu0 %v2398
          %3011 = vmatprep.subr.mxu0 %v2405
          %3012 = vmatpush1.xpose.msra.mxu0 %v2404
          %3013 = vmatprep.subr.mxu0 %v2411
          %3014 = vmatpush1.xpose.msra.mxu0 %v2410
          %3015 = vmatprep.subr.mxu0 %v2417
          %3016 = vmatpush1.xpose.msra.mxu0 %v2416
          %3017 = vmatprep.subr.mxu0 %v2423
          %3018 = vmatpush1.xpose.msra.mxu0 %v2422
          %3019 = vmatprep.subr.mxu0 %v2429
          %3020 = vmatpush1.xpose.msra.mxu0 %v2428
          %3021 = vmatprep.subr.mxu0 %v2435
          %3022 = vmatpush1.xpose.msra.mxu0 %v2434
          %3023 = vmatprep.subr.mxu0 %v2441
          %3024 = vmatpush1.xpose.msra.mxu0 %v2440
          %3025 = vmatprep.subr.mxu0 %v2447
          %3026 = vmatpush1.xpose.msra.mxu0 %v2446
          %3027 = vmatprep.subr.mxu0 %v2453
          %3028 = vmatpush1.xpose.msra.mxu0 %v2452
          %3029 = vmatprep.subr.mxu0 %v2459
          %3030 = vmatpush1.xpose.msra.mxu0 %v2458
          %3031 = vmatprep.subr.mxu0 %v2465
          %3032 = vmatpush1.xpose.msra.mxu0 %v2464
          %3033 = vmatprep.subr.mxu0 %v2471
          %3034 = vmatpush1.xpose.msra.mxu0 %v2470
          %3035 = vmatprep.subr.mxu0 %v2477
          %3036 = vmatpush1.xpose.msra.mxu0 %v2476
          %3037 = vmatprep.subr.mxu0 %v2483
          %3038 = vmatpush1.xpose.msra.mxu0 %v2482
          %3039 = vmatprep.subr.mxu0 %v2489
          %3040 = vmatpush1.xpose.msra.mxu0 %v2488
          %3041 = vmatprep.subr.mxu0 %v2495
          %3042 = vmatpush1.xpose.msra.mxu0 %v2494
          %3043 = vmatprep.subr.mxu0 %v2501
          %3044 = vmatpush1.xpose.msra.mxu0 %v2500
          %3045 = vmatprep.subr.mxu0 %v2507
          %3046 = vmatpush1.xpose.msra.mxu0 %v2506
          %3047 = vmatprep.subr.mxu0 %v2513
          %3048 = vmatpush1.xpose.msra.mxu0 %v2512
          %3049 = vmatprep.mubr.f32.mxu0 %v2553
          %3050 = vmatmul.mubr.f32.gmra.mrb[0].mxu0 %v1939
          %v3051 = vpop.f32.mrb[0].mxu0
          %v3052 = vadd.f32 %v2539, %v3051
          %v3053 = vpop.f32.mrb[0].mxu0
          %v3054 = vadd.f32 %v2543, %v3053
          %3055 = vdwg.mxu0
          %3056 = vmatprep.subr.mxu0 %v2329
          %3057 = vmatpush1.xpose.msra.mxu0 %v2328
          %3058 = vmatprep.subr.mxu0 %v2335
          %3059 = vmatpush1.xpose.msra.mxu0 %v2334
          %3060 = vmatprep.subr.mxu0 %v2341
          %3061 = vmatpush1.xpose.msra.mxu0 %v2340
          %3062 = vmatprep.subr.mxu0 %v2347
          %3063 = vmatpush1.xpose.msra.mxu0 %v2346
          %3064 = vmatprep.subr.mxu0 %v2353
          %3065 = vmatpush1.xpose.msra.mxu0 %v2352
          %3066 = vmatprep.subr.mxu0 %v2359
          %3067 = vmatpush1.xpose.msra.mxu0 %v2358
          %3068 = vmatprep.subr.mxu0 %v2365
          %3069 = vmatpush1.xpose.msra.mxu0 %v2364
          %3070 = vmatprep.subr.mxu0 %v2371
          %3071 = vmatpush1.xpose.msra.mxu0 %v2370
          %3072 = vmatprep.subr.mxu0 %v2377
          %3073 = vmatpush1.xpose.msra.mxu0 %v2376
          %3074 = vmatprep.subr.mxu0 %v2383
          %3075 = vmatpush1.xpose.msra.mxu0 %v2382
          %3076 = vmatprep.subr.mxu0 %v2389
          %3077 = vmatpush1.xpose.msra.mxu0 %v2388
          %3078 = vmatprep.subr.mxu0 %v2395
          %3079 = vmatpush1.xpose.msra.mxu0 %v2394
          %3080 = vmatprep.subr.mxu0 %v2401
          %3081 = vmatpush1.xpose.msra.mxu0 %v2400
          %3082 = vmatprep.subr.mxu0 %v2407
          %3083 = vmatpush1.xpose.msra.mxu0 %v2406
          %3084 = vmatprep.subr.mxu0 %v2413
          %3085 = vmatpush1.xpose.msra.mxu0 %v2412
          %3086 = vmatprep.subr.mxu0 %v2419
          %3087 = vmatpush1.xpose.msra.mxu0 %v2418
          %3088 = vmatprep.subr.mxu0 %v2425
          %3089 = vmatpush1.xpose.msra.mxu0 %v2424
          %3090 = vmatprep.subr.mxu0 %v2431
          %3091 = vmatpush1.xpose.msra.mxu0 %v2430
          %3092 = vmatprep.subr.mxu0 %v2437
          %3093 = vmatpush1.xpose.msra.mxu0 %v2436
          %3094 = vmatprep.subr.mxu0 %v2443
          %3095 = vmatpush1.xpose.msra.mxu0 %v2442
          %3096 = vmatprep.subr.mxu0 %v2449
          %3097 = vmatpush1.xpose.msra.mxu0 %v2448
          %3098 = vmatprep.subr.mxu0 %v2455
          %3099 = vmatpush1.xpose.msra.mxu0 %v2454
          %3100 = vmatprep.subr.mxu0 %v2461
          %3101 = vmatpush1.xpose.msra.mxu0 %v2460
          %3102 = vmatprep.subr.mxu0 %v2467
          %3103 = vmatpush1.xpose.msra.mxu0 %v2466
          %3104 = vmatprep.subr.mxu0 %v2473
          %3105 = vmatpush1.xpose.msra.mxu0 %v2472
          %3106 = vmatprep.subr.mxu0 %v2479
          %3107 = vmatpush1.xpose.msra.mxu0 %v2478
          %3108 = vmatprep.subr.mxu0 %v2485
          %3109 = vmatpush1.xpose.msra.mxu0 %v2484
          %3110 = vmatprep.subr.mxu0 %v2491
          %3111 = vmatpush1.xpose.msra.mxu0 %v2490
          %3112 = vmatprep.subr.mxu0 %v2497
          %3113 = vmatpush1.xpose.msra.mxu0 %v2496
          %3114 = vmatprep.subr.mxu0 %v2503
          %3115 = vmatpush1.xpose.msra.mxu0 %v2502
          %3116 = vmatprep.subr.mxu0 %v2509
          %3117 = vmatpush1.xpose.msra.mxu0 %v2508
          %3118 = vmatprep.subr.mxu0 %v2515
          %3119 = vmatpush1.xpose.msra.mxu0 %v2514
          %3120 = vmatprep.mubr.f32.mxu0 %v2554
          %3121 = vmatmul.mubr.f32.gmra.mrb[0].mxu0 %v1940
          %v3122 = vpop.f32.mrb[0].mxu0
          %v3123 = vadd.f32 %v3052, %v3122
          %v3124 = vpop.f32.mrb[0].mxu0
          %v3125 = vadd.f32 %v3054, %v3124
          %3126 = vdwg.mxu0
          %3127 = vmatprep.subr.mxu0 %v2331
          %3128 = vmatpush1.xpose.msra.mxu0 %v2330
          %3129 = vmatprep.subr.mxu0 %v2337
          %3130 = vmatpush1.xpose.msra.mxu0 %v2336
          %3131 = vmatprep.subr.mxu0 %v2343
          %3132 = vmatpush1.xpose.msra.mxu0 %v2342
          %3133 = vmatprep.subr.mxu0 %v2349
          %3134 = vmatpush1.xpose.msra.mxu0 %v2348
          %3135 = vmatprep.subr.mxu0 %v2355
          %3136 = vmatpush1.xpose.msra.mxu0 %v2354
          %3137 = vmatprep.subr.mxu0 %v2361
          %3138 = vmatpush1.xpose.msra.mxu0 %v2360
          %3139 = vmatprep.subr.mxu0 %v2367
          %3140 = vmatpush1.xpose.msra.mxu0 %v2366
          %3141 = vmatprep.subr.mxu0 %v2373
          %3142 = vmatpush1.xpose.msra.mxu0 %v2372
          %3143 = vmatprep.subr.mxu0 %v2379
          %3144 = vmatpush1.xpose.msra.mxu0 %v2378
          %3145 = vmatprep.subr.mxu0 %v2385
          %3146 = vmatpush1.xpose.msra.mxu0 %v2384
          %3147 = vmatprep.subr.mxu0 %v2391
          %3148 = vmatpush1.xpose.msra.mxu0 %v2390
          %3149 = vmatprep.subr.mxu0 %v2397
          %3150 = vmatpush1.xpose.msra.mxu0 %v2396
          %3151 = vmatprep.subr.mxu0 %v2403
          %3152 = vmatpush1.xpose.msra.mxu0 %v2402
          %3153 = vmatprep.subr.mxu0 %v2409
          %3154 = vmatpush1.xpose.msra.mxu0 %v2408
          %3155 = vmatprep.subr.mxu0 %v2415
          %3156 = vmatpush1.xpose.msra.mxu0 %v2414
          %3157 = vmatprep.subr.mxu0 %v2421
          %3158 = vmatpush1.xpose.msra.mxu0 %v2420
          %3159 = vmatprep.subr.mxu0 %v2427
          %3160 = vmatpush1.xpose.msra.mxu0 %v2426
          %3161 = vmatprep.subr.mxu0 %v2433
          %3162 = vmatpush1.xpose.msra.mxu0 %v2432
          %3163 = vmatprep.subr.mxu0 %v2439
          %3164 = vmatpush1.xpose.msra.mxu0 %v2438
          %3165 = vmatprep.subr.mxu0 %v2445
          %3166 = vmatpush1.xpose.msra.mxu0 %v2444
          %3167 = vmatprep.subr.mxu0 %v2451
          %3168 = vmatpush1.xpose.msra.mxu0 %v2450
          %3169 = vmatprep.subr.mxu0 %v2457
          %3170 = vmatpush1.xpose.msra.mxu0 %v2456
          %3171 = vmatprep.subr.mxu0 %v2463
          %3172 = vmatpush1.xpose.msra.mxu0 %v2462
          %3173 = vmatprep.subr.mxu0 %v2469
          %3174 = vmatpush1.xpose.msra.mxu0 %v2468
          %3175 = vmatprep.subr.mxu0 %v2475
          %3176 = vmatpush1.xpose.msra.mxu0 %v2474
          %3177 = vmatprep.subr.mxu0 %v2481
          %3178 = vmatpush1.xpose.msra.mxu0 %v2480
          %3179 = vmatprep.subr.mxu0 %v2487
          %3180 = vmatpush1.xpose.msra.mxu0 %v2486
          %3181 = vmatprep.subr.mxu0 %v2493
          %3182 = vmatpush1.xpose.msra.mxu0 %v2492
          %3183 = vmatprep.subr.mxu0 %v2499
          %3184 = vmatpush1.xpose.msra.mxu0 %v2498
          %3185 = vmatprep.subr.mxu0 %v2505
          %3186 = vmatpush1.xpose.msra.mxu0 %v2504
          %3187 = vmatprep.subr.mxu0 %v2511
          %3188 = vmatpush1.xpose.msra.mxu0 %v2510
          %3189 = vmatprep.subr.mxu0 %v2517
          %3190 = vmatpush1.xpose.msra.mxu0 %v2516
          %3191 = vmatprep.mubr.f32.mxu0 %v2555
          %3192 = vmatmul.mubr.f32.gmra.mrb[0].mxu0 %v1941
          %v3193 = vpop.f32.mrb[0].mxu0
          %v3194 = vadd.f32 %v3123, %v3193
          %v3195 = vpop.f32.mrb[0].mxu0
          %v3196 = vadd.f32 %v3125, %v3195
          %3197 = vdwg.mxu0
          %v3198 = vld [vmem:[%s6] sm:$0xff]
          %v3199 = vld [vmem:[%s6 + $0x8] sm:$0xff]
          %v3200 = vld [vmem:[%s6 + $0x10] sm:$0xff]
          %v3201 = vld [vmem:[%s6 + $0x18] sm:$0xff]
          %v3202 = vld [vmem:[%s6 + $0x20] sm:$0xff]
          %v3203 = vld [vmem:[%s6 + $0x28] sm:$0xff]
          %v3204 = vld [vmem:[%s6 + $0x30] sm:$0xf]
          %v3205 = vld [vmem:[%s6 + $0x38] sm:$0xf]
          %v3206 = vld [vmem:[%s6 + $0x40] sm:$0xf]
          %v3207 = vld [vmem:[%s6 + $0x48] sm:$0xf]
          %v3208 = vld [vmem:[%s6 + $0x50] sm:$0xf]
          %v3209 = vld [vmem:[%s6 + $0x58] sm:$0xf]
          %v3210 = vlaneseq
          %v3211 = vshrl.u32 %v3210, 7
          %v3212 = vsub.s32 0, %v3211
          %v3213 = vrot.slane %v1509, %v3212
          %v3214 = vlaneseq
          %v3215 = vshrl.u32 %v3214, 7
          %v3216 = vsub.s32 0, %v3215
          %v3217 = vrot.slane %v1511, %v3216
          %v3218 = vlaneseq
          %v3219 = vshrl.u32 %v3218, 7
          %v3220 = vsub.s32 0, %v3219
          %v3221 = vrot.slane %v1722, %v3220
          %v3222 = vlaneseq
          %v3223 = vshrl.u32 %v3222, 7
          %v3224 = vsub.s32 0, %v3223
          %v3225 = vrot.slane %v1724, %v3224
          %v3226 = vlaneseq
          %v3227 = vshrl.u32 %v3226, 7
          %v3228 = vsub.s32 0, %v3227
          %v3229 = vrot.slane %v1935, %v3228
          %v3230 = vlaneseq
          %v3231 = vshrl.u32 %v3230, 7
          %v3232 = vsub.s32 0, %v3231
          %v3233 = vrot.slane %v1937, %v3232
          %v3234 = vmul.f32 %v3198, %v3213
          %v3235 = vmul.f32 %v3199, %v3217
          %v3236 = vmul.f32 %v3200, %v3221
          %v3237 = vmul.f32 %v3201, %v3225
          %v3238 = vmul.f32 %v3202, %v3229
          %v3239 = vmul.f32 %v3203, %v3233
          %v3240 = vmul.f32 %v3204, %v3213
          %v3241 = vmul.f32 %v3205, %v3217
          %v3242 = vmul.f32 %v3206, %v3221
          %v3243 = vmul.f32 %v3207, %v3225
          %v3244 = vmul.f32 %v3208, %v3229
          %v3245 = vmul.f32 %v3209, %v3233
          %3246 = vmatprep.subr.mxu0 %v3235
          %3247 = vmatpush1.xpose.msra.mxu0 %v3234
          %3248 = vmatprep.subr.mxu0 %v3241
          %3249 = vmatpush1.xpose.msra.mxu0 %v3240
          %3250 = vmatprep.subr.mxu0 0.0
          %3251 = vmatpush1.xpose.msra.mxu0 0.0
          %3252 = vmatprep.subr.mxu0 0.0
          %3253 = vmatpush1.xpose.msra.mxu0 0.0
          %3254 = vmatprep.subr.mxu0 0.0
          %3255 = vmatpush1.xpose.msra.mxu0 0.0
          %3256 = vmatprep.subr.mxu0 0.0
          %3257 = vmatpush1.xpose.msra.mxu0 0.0
          %3258 = vmatprep.subr.mxu0 0.0
          %3259 = vmatpush1.xpose.msra.mxu0 0.0
          %3260 = vmatprep.subr.mxu0 0.0
          %3261 = vmatpush1.xpose.msra.mxu0 0.0
          %3262 = vmatprep.subr.mxu0 0.0
          %3263 = vmatpush1.xpose.msra.mxu0 0.0
          %3264 = vmatprep.subr.mxu0 0.0
          %3265 = vmatpush1.xpose.msra.mxu0 0.0
          %3266 = vmatprep.subr.mxu0 0.0
          %3267 = vmatpush1.xpose.msra.mxu0 0.0
          %3268 = vmatprep.subr.mxu0 0.0
          %3269 = vmatpush1.xpose.msra.mxu0 0.0
          %3270 = vmatprep.subr.mxu0 0.0
          %3271 = vmatpush1.xpose.msra.mxu0 0.0
          %3272 = vmatprep.subr.mxu0 0.0
          %3273 = vmatpush1.xpose.msra.mxu0 0.0
          %3274 = vmatprep.subr.mxu0 0.0
          %3275 = vmatpush1.xpose.msra.mxu0 0.0
          %3276 = vmatprep.subr.mxu0 0.0
          %3277 = vmatpush1.xpose.msra.mxu0 0.0
          %3278 = vmatprep.subr.mxu0 0.0
          %3279 = vmatpush1.xpose.msra.mxu0 0.0
          %3280 = vmatprep.subr.mxu0 0.0
          %3281 = vmatpush1.xpose.msra.mxu0 0.0
          %3282 = vmatprep.subr.mxu0 0.0
          %3283 = vmatpush1.xpose.msra.mxu0 0.0
          %3284 = vmatprep.subr.mxu0 0.0
          %3285 = vmatpush1.xpose.msra.mxu0 0.0
          %3286 = vmatprep.subr.mxu0 0.0
          %3287 = vmatpush1.xpose.msra.mxu0 0.0
          %3288 = vmatprep.subr.mxu0 0.0
          %3289 = vmatpush1.xpose.msra.mxu0 0.0
          %3290 = vmatprep.subr.mxu0 0.0
          %3291 = vmatpush1.xpose.msra.mxu0 0.0
          %3292 = vmatprep.subr.mxu0 0.0
          %3293 = vmatpush1.xpose.msra.mxu0 0.0
          %3294 = vmatprep.subr.mxu0 0.0
          %3295 = vmatpush1.xpose.msra.mxu0 0.0
          %3296 = vmatprep.subr.mxu0 0.0
          %3297 = vmatpush1.xpose.msra.mxu0 0.0
          %3298 = vmatprep.subr.mxu0 0.0
          %3299 = vmatpush1.xpose.msra.mxu0 0.0
          %3300 = vmatprep.subr.mxu0 0.0
          %3301 = vmatpush1.xpose.msra.mxu0 0.0
          %3302 = vmatprep.subr.mxu0 0.0
          %3303 = vmatpush1.xpose.msra.mxu0 0.0
          %3304 = vmatprep.subr.mxu0 0.0
          %3305 = vmatpush1.xpose.msra.mxu0 0.0
          %3306 = vmatprep.subr.mxu0 0.0
          %3307 = vmatpush1.xpose.msra.mxu0 0.0
          %3308 = vmatprep.subr.mxu0 0.0
          %3309 = vmatpush1.xpose.msra.mxu0 0.0
          %3310 = vmatprep.mubr.f32.mxu0 %v2770
          %3311 = vmatmul.mubr.f32.gmra.mrb[0].mxu0 %v2768
          %v3312 = vpop.f32.mrb[0].mxu0
          %v3313 = vadd.f32 0.0, %v3312
          %v3314 = vpop.f32.mrb[0].mxu0
          %3315 = vdwg.mxu0
          %3316 = vmatprep.subr.mxu0 %v3237
          %3317 = vmatpush1.xpose.msra.mxu0 %v3236
          %3318 = vmatprep.subr.mxu0 %v3243
          %3319 = vmatpush1.xpose.msra.mxu0 %v3242
          %3320 = vmatprep.subr.mxu0 0.0
          %3321 = vmatpush1.xpose.msra.mxu0 0.0
          %3322 = vmatprep.subr.mxu0 0.0
          %3323 = vmatpush1.xpose.msra.mxu0 0.0
          %3324 = vmatprep.subr.mxu0 0.0
          %3325 = vmatpush1.xpose.msra.mxu0 0.0
          %3326 = vmatprep.subr.mxu0 0.0
          %3327 = vmatpush1.xpose.msra.mxu0 0.0
          %3328 = vmatprep.subr.mxu0 0.0
          %3329 = vmatpush1.xpose.msra.mxu0 0.0
          %3330 = vmatprep.subr.mxu0 0.0
          %3331 = vmatpush1.xpose.msra.mxu0 0.0
          %3332 = vmatprep.subr.mxu0 0.0
          %3333 = vmatpush1.xpose.msra.mxu0 0.0
          %3334 = vmatprep.subr.mxu0 0.0
          %3335 = vmatpush1.xpose.msra.mxu0 0.0
          %3336 = vmatprep.subr.mxu0 0.0
          %3337 = vmatpush1.xpose.msra.mxu0 0.0
          %3338 = vmatprep.subr.mxu0 0.0
          %3339 = vmatpush1.xpose.msra.mxu0 0.0
          %3340 = vmatprep.subr.mxu0 0.0
          %3341 = vmatpush1.xpose.msra.mxu0 0.0
          %3342 = vmatprep.subr.mxu0 0.0
          %3343 = vmatpush1.xpose.msra.mxu0 0.0
          %3344 = vmatprep.subr.mxu0 0.0
          %3345 = vmatpush1.xpose.msra.mxu0 0.0
          %3346 = vmatprep.subr.mxu0 0.0
          %3347 = vmatpush1.xpose.msra.mxu0 0.0
          %3348 = vmatprep.subr.mxu0 0.0
          %3349 = vmatpush1.xpose.msra.mxu0 0.0
          %3350 = vmatprep.subr.mxu0 0.0
          %3351 = vmatpush1.xpose.msra.mxu0 0.0
          %3352 = vmatprep.subr.mxu0 0.0
          %3353 = vmatpush1.xpose.msra.mxu0 0.0
          %3354 = vmatprep.subr.mxu0 0.0
          %3355 = vmatpush1.xpose.msra.mxu0 0.0
          %3356 = vmatprep.subr.mxu0 0.0
          %3357 = vmatpush1.xpose.msra.mxu0 0.0
          %3358 = vmatprep.subr.mxu0 0.0
          %3359 = vmatpush1.xpose.msra.mxu0 0.0
          %3360 = vmatprep.subr.mxu0 0.0
          %3361 = vmatpush1.xpose.msra.mxu0 0.0
          %3362 = vmatprep.subr.mxu0 0.0
          %3363 = vmatpush1.xpose.msra.mxu0 0.0
          %3364 = vmatprep.subr.mxu0 0.0
          %3365 = vmatpush1.xpose.msra.mxu0 0.0
          %3366 = vmatprep.subr.mxu0 0.0
          %3367 = vmatpush1.xpose.msra.mxu0 0.0
          %3368 = vmatprep.subr.mxu0 0.0
          %3369 = vmatpush1.xpose.msra.mxu0 0.0
          %3370 = vmatprep.subr.mxu0 0.0
          %3371 = vmatpush1.xpose.msra.mxu0 0.0
          %3372 = vmatprep.subr.mxu0 0.0
          %3373 = vmatpush1.xpose.msra.mxu0 0.0
          %3374 = vmatprep.subr.mxu0 0.0
          %3375 = vmatpush1.xpose.msra.mxu0 0.0
          %3376 = vmatprep.subr.mxu0 0.0
          %3377 = vmatpush1.xpose.msra.mxu0 0.0
          %3378 = vmatprep.subr.mxu0 0.0
          %3379 = vmatpush1.xpose.msra.mxu0 0.0
          %3380 = vmatprep.mubr.f32.mxu0 %v2983
          %3381 = vmatmul.mubr.f32.gmra.mrb[0].mxu0 %v2981
          %v3382 = vpop.f32.mrb[0].mxu0
          %v3383 = vadd.f32 %v3313, %v3382
          %v3384 = vpop.f32.mrb[0].mxu0
          %3385 = vdwg.mxu0
          %3386 = vmatprep.subr.mxu0 %v3239
          %3387 = vmatpush1.xpose.msra.mxu0 %v3238
          %3388 = vmatprep.subr.mxu0 %v3245
          %3389 = vmatpush1.xpose.msra.mxu0 %v3244
          %3390 = vmatprep.subr.mxu0 0.0
          %3391 = vmatpush1.xpose.msra.mxu0 0.0
          %3392 = vmatprep.subr.mxu0 0.0
          %3393 = vmatpush1.xpose.msra.mxu0 0.0
          %3394 = vmatprep.subr.mxu0 0.0
          %3395 = vmatpush1.xpose.msra.mxu0 0.0
          %3396 = vmatprep.subr.mxu0 0.0
          %3397 = vmatpush1.xpose.msra.mxu0 0.0
          %3398 = vmatprep.subr.mxu0 0.0
          %3399 = vmatpush1.xpose.msra.mxu0 0.0
          %3400 = vmatprep.subr.mxu0 0.0
          %3401 = vmatpush1.xpose.msra.mxu0 0.0
          %3402 = vmatprep.subr.mxu0 0.0
          %3403 = vmatpush1.xpose.msra.mxu0 0.0
          %3404 = vmatprep.subr.mxu0 0.0
          %3405 = vmatpush1.xpose.msra.mxu0 0.0
          %3406 = vmatprep.subr.mxu0 0.0
          %3407 = vmatpush1.xpose.msra.mxu0 0.0
          %3408 = vmatprep.subr.mxu0 0.0
          %3409 = vmatpush1.xpose.msra.mxu0 0.0
          %3410 = vmatprep.subr.mxu0 0.0
          %3411 = vmatpush1.xpose.msra.mxu0 0.0
          %3412 = vmatprep.subr.mxu0 0.0
          %3413 = vmatpush1.xpose.msra.mxu0 0.0
          %3414 = vmatprep.subr.mxu0 0.0
          %3415 = vmatpush1.xpose.msra.mxu0 0.0
          %3416 = vmatprep.subr.mxu0 0.0
          %3417 = vmatpush1.xpose.msra.mxu0 0.0
          %3418 = vmatprep.subr.mxu0 0.0
          %3419 = vmatpush1.xpose.msra.mxu0 0.0
          %3420 = vmatprep.subr.mxu0 0.0
          %3421 = vmatpush1.xpose.msra.mxu0 0.0
          %3422 = vmatprep.subr.mxu0 0.0
          %3423 = vmatpush1.xpose.msra.mxu0 0.0
          %3424 = vmatprep.subr.mxu0 0.0
          %3425 = vmatpush1.xpose.msra.mxu0 0.0
          %3426 = vmatprep.subr.mxu0 0.0
          %3427 = vmatpush1.xpose.msra.mxu0 0.0
          %3428 = vmatprep.subr.mxu0 0.0
          %3429 = vmatpush1.xpose.msra.mxu0 0.0
          %3430 = vmatprep.subr.mxu0 0.0
          %3431 = vmatpush1.xpose.msra.mxu0 0.0
          %3432 = vmatprep.subr.mxu0 0.0
          %3433 = vmatpush1.xpose.msra.mxu0 0.0
          %3434 = vmatprep.subr.mxu0 0.0
          %3435 = vmatpush1.xpose.msra.mxu0 0.0
          %3436 = vmatprep.subr.mxu0 0.0
          %3437 = vmatpush1.xpose.msra.mxu0 0.0
          %3438 = vmatprep.subr.mxu0 0.0
          %3439 = vmatpush1.xpose.msra.mxu0 0.0
          %3440 = vmatprep.subr.mxu0 0.0
          %3441 = vmatpush1.xpose.msra.mxu0 0.0
          %3442 = vmatprep.subr.mxu0 0.0
          %3443 = vmatpush1.xpose.msra.mxu0 0.0
          %3444 = vmatprep.subr.mxu0 0.0
          %3445 = vmatpush1.xpose.msra.mxu0 0.0
          %3446 = vmatprep.subr.mxu0 0.0
          %3447 = vmatpush1.xpose.msra.mxu0 0.0
          %3448 = vmatprep.subr.mxu0 0.0
          %3449 = vmatpush1.xpose.msra.mxu0 0.0
          %3450 = vmatprep.mubr.f32.mxu0 %v3196
          %3451 = vmatmul.mubr.f32.gmra.mrb[0].mxu0 %v3194
          %v3452 = vpop.f32.mrb[0].mxu0
          %v3453 = vadd.f32 %v3383, %v3452
          %v3454 = vpop.f32.mrb[0].mxu0
          %3455 = vdwg.mxu0
          %v3456 = vmul.f32 %v3453, 0.125
          %vm3457 = vcmask 93184
          %v3458 = vsel %vm3457, %v3456, -inf
          %v3459 = vrot.slane %v3458, 4
          %v3460 = vmax.f32 %v3458, %v3459
          %v3461 = vrot.slane %v3460, 2
          %v3462 = vmax.f32 %v3460, %v3461
          %v3463 = vrot.slane %v3462, 1
          %v3464 = vmax.f32 %v3462, %v3463
          %v3465 = vsub.f32 %v3456, %v3464
          %v3466 = vmul.f32 %v3465, 1.442695
          %v3467 = vpow.pop %v3466
          %v3468 = vsel %vm3457, %v3467, 0.0
          %v3469 = vrot.slane %v3468, 4
          %v3470 = vadd.f32 %v3468, %v3469
          %v3471 = vrot.slane %v3470, 2
          %v3472 = vadd.f32 %v3470, %v3471
          %v3473 = vrot.slane %v3472, 1
          %v3474 = vadd.f32 %v3472, %v3473
          %v3475 = vrcp.pop %v3474
          %v3476 = vmul.f32 %v3467, %v3475
          %v3477 = vsel %vm3457, %v3476, 0.0
          %3478 = vadd.xlane.f32.xlu0 %v3477
          %v3479 = vpop.xlane.xlu0 %3478
          %v3480 = vrcp.pop 12.0
          %v3481 = vmul.f32 %v3479, %v3480
          %vm3482 = vcmask 3072
          %3483 = vst.msk [vmem:[%s649] sm:$0xf] %vm3482, %v3481
          %v3486 = vunpack.c.l.s4 839922192
          %v3487 = vunpack.c.0.s8 %v3486
          %v3488 = vlaneseq
          %v3489 = vshrl.u32 %v3488, 7
          %v3490 = vsub.s32 %v3487, %v3489
          %v3491 = vrot.slane %v3481, %v3490
          %3493 = vst [vmem:[#allocation2] sm:$0xff] %v3491
          %3494 = vst [vmem:[#allocation2 + $0x8] sm:$0xff] %v3491
          %3495 = vst [vmem:[#allocation2 + $0x10] sm:$0xff] %v3491
        $region86: #{image_set_question_attention.1} parent=77 // pred_fallthru
          _
        %v3496 = vld [vmem:[%s586] sm:$0xff]
        %v3497 = vld [vmem:[%s586 + $0x8] sm:$0xff]
        %v3498 = vld [vmem:[%s586 + $0x10] sm:$0xff]
        %v3499 = vld [vmem:[%s586 + $0x18] sm:$0xff]
        %v3500 = vld [vmem:[%s586 + $0x20] sm:$0xff]
        %v3501 = vld [vmem:[%s586 + $0x28] sm:$0xff]
        %v3502 = vld [vmem:[%s586 + $0x30] sm:$0xff]
        %v3503 = vld [vmem:[%s586 + $0x38] sm:$0xff]
        %v3504 = vld [vmem:[%s586 + $0x40] sm:$0xff]
        %v3505 = vld [vmem:[%s586 + $0x48] sm:$0xff]
        %v3506 = vld [vmem:[%s586 + $0x50] sm:$0xff]
        %v3507 = vld [vmem:[%s586 + $0x58] sm:$0xff]
        %v3508 = vld [vmem:[%s586 + $0x60] sm:$0xff]
        %v3509 = vld [vmem:[%s586 + $0x68] sm:$0xff]
        %v3510 = vld [vmem:[%s586 + $0x70] sm:$0xff]
        %v3511 = vld [vmem:[%s586 + $0x78] sm:$0xff]
        %v3512 = vld [vmem:[%s586 + $0x80] sm:$0xff]
        %v3513 = vld [vmem:[%s586 + $0x88] sm:$0xff]
        %v3514 = vld [vmem:[%s586 + $0x90] sm:$0xff]
        %v3515 = vld [vmem:[%s586 + $0x98] sm:$0xff]
        %v3516 = vld [vmem:[%s586 + $0xa0] sm:$0xff]
        %v3517 = vld [vmem:[%s586 + $0xa8] sm:$0xff]
        %v3518 = vld [vmem:[%s586 + $0xb0] sm:$0xff]
        %v3519 = vld [vmem:[%s586 + $0xb8] sm:$0xff]
        %v3520 = vld [vmem:[%s586 + $0xc0] sm:$0xff]
        %v3521 = vld [vmem:[%s586 + $0xc8] sm:$0xff]
        %v3522 = vld [vmem:[%s586 + $0xd0] sm:$0xff]
        %v3523 = vld [vmem:[%s586 + $0xd8] sm:$0xff]
        %v3524 = vld [vmem:[%s586 + $0xe0] sm:$0xff]
        %v3525 = vld [vmem:[%s586 + $0xe8] sm:$0xff]
        %v3526 = vld [vmem:[%s586 + $0xf0] sm:$0xff]
        %v3527 = vld [vmem:[%s586 + $0xf8] sm:$0xff]
        %v3528 = vld [vmem:[%s586 + $0x100] sm:$0xff]
        %v3529 = vld [vmem:[%s586 + $0x108] sm:$0xff]
        %v3530 = vld [vmem:[%s586 + $0x110] sm:$0xff]
        %v3531 = vld [vmem:[%s586 + $0x118] sm:$0xff]
        %v3532 = vld [vmem:[%s586 + $0x120] sm:$0xff]
        %v3533 = vld [vmem:[%s586 + $0x128] sm:$0xff]
        %v3534 = vld [vmem:[%s586 + $0x130] sm:$0xff]
        %v3535 = vld [vmem:[%s586 + $0x138] sm:$0xff]
        %v3536 = vld [vmem:[%s586 + $0x140] sm:$0xff]
        %v3537 = vld [vmem:[%s586 + $0x148] sm:$0xff]
        %v3538 = vld [vmem:[%s586 + $0x150] sm:$0xff]
        %v3539 = vld [vmem:[%s586 + $0x158] sm:$0xff]
        %v3540 = vld [vmem:[%s586 + $0x160] sm:$0xff]
        %v3541 = vld [vmem:[%s586 + $0x168] sm:$0xff]
        %v3542 = vld [vmem:[%s586 + $0x170] sm:$0xff]
        %v3543 = vld [vmem:[%s586 + $0x178] sm:$0xff]
        %v3544 = vld [vmem:[#allocation2] ss:$4 sm:$0x3f]
        %v3546 = vlaneseq
        %v3547 = vshrl.u32 %v3546, 7
        %v3548 = vsub.s32 0, %v3547
        %v3549 = vrot.slane %v3544, %v3548
        %v3550 = vlaneseq
        %v3551 = vshrl.u32 %v3550, 7
        %v3552 = vsub.s32 1, %v3551
        %v3553 = vrot.slane %v3544, %v3552
        %v3554 = vlaneseq
        %v3555 = vshrl.u32 %v3554, 7
        %v3556 = vsub.s32 2, %v3555
        %v3557 = vrot.slane %v3544, %v3556
        %v3558 = vlaneseq
        %v3559 = vshrl.u32 %v3558, 7
        %v3560 = vsub.s32 3, %v3559
        %v3561 = vrot.slane %v3544, %v3560
        %v3562 = vlaneseq
        %v3563 = vshrl.u32 %v3562, 7
        %v3564 = vsub.s32 4, %v3563
        %v3565 = vrot.slane %v3544, %v3564
        %v3566 = vlaneseq
        %v3567 = vshrl.u32 %v3566, 7
        %v3568 = vsub.s32 5, %v3567
        %v3569 = vrot.slane %v3544, %v3568
        %v3576 = vmul.f32 %v3496, %v3549
        %v3577 = vmul.f32 %v3497, %v3553
        %v3578 = vmul.f32 %v3498, %v3557
        %v3579 = vmul.f32 %v3499, %v3561
        %v3580 = vmul.f32 %v3500, %v3565
        %v3581 = vmul.f32 %v3501, %v3569
        %v3582 = vmul.f32 %v3502, %v3549
        %v3583 = vmul.f32 %v3503, %v3553
        %v3584 = vmul.f32 %v3504, %v3557
        %v3585 = vmul.f32 %v3505, %v3561
        %v3586 = vmul.f32 %v3506, %v3565
        %v3587 = vmul.f32 %v3507, %v3569
        %v3588 = vmul.f32 %v3508, %v3549
        %v3589 = vmul.f32 %v3509, %v3553
        %v3590 = vmul.f32 %v3510, %v3557
        %v3591 = vmul.f32 %v3511, %v3561
        %v3592 = vmul.f32 %v3512, %v3565
        %v3593 = vmul.f32 %v3513, %v3569
        %v3594 = vmul.f32 %v3514, %v3549
        %v3595 = vmul.f32 %v3515, %v3553
        %v3596 = vmul.f32 %v3516, %v3557
        %v3597 = vmul.f32 %v3517, %v3561
        %v3598 = vmul.f32 %v3518, %v3565
        %v3599 = vmul.f32 %v3519, %v3569
        %v3600 = vmul.f32 %v3520, %v3549
        %v3601 = vmul.f32 %v3521, %v3553
        %v3602 = vmul.f32 %v3522, %v3557
        %v3603 = vmul.f32 %v3523, %v3561
        %v3604 = vmul.f32 %v3524, %v3565
        %v3605 = vmul.f32 %v3525, %v3569
        %v3606 = vmul.f32 %v3526, %v3549
        %v3607 = vmul.f32 %v3527, %v3553
        %v3608 = vmul.f32 %v3528, %v3557
        %v3609 = vmul.f32 %v3529, %v3561
        %v3610 = vmul.f32 %v3530, %v3565
        %v3611 = vmul.f32 %v3531, %v3569
        %v3612 = vmul.f32 %v3532, %v3549
        %v3613 = vmul.f32 %v3533, %v3553
        %v3614 = vmul.f32 %v3534, %v3557
        %v3615 = vmul.f32 %v3535, %v3561
        %v3616 = vmul.f32 %v3536, %v3565
        %v3617 = vmul.f32 %v3537, %v3569
        %v3618 = vmul.f32 %v3538, %v3549
        %v3619 = vmul.f32 %v3539, %v3553
        %v3620 = vmul.f32 %v3540, %v3557
        %v3621 = vmul.f32 %v3541, %v3561
        %v3622 = vmul.f32 %v3542, %v3565
        %v3623 = vmul.f32 %v3543, %v3569
        %s3624 = scalar_lea.vmem %s586, 384 [#allocation3]
        %v3625 = vld [vmem:[%s3624] sm:$0xff]
        %v3626 = vld [vmem:[%s3624 + $0x8] sm:$0xff]
        %v3627 = vld [vmem:[%s3624 + $0x10] sm:$0xff]
        %v3628 = vld [vmem:[%s3624 + $0x18] sm:$0xff]
        %v3629 = vld [vmem:[%s3624 + $0x20] sm:$0xff]
        %v3630 = vld [vmem:[%s3624 + $0x28] sm:$0xff]
        %v3631 = vld [vmem:[%s3624 + $0x30] sm:$0xff]
        %v3632 = vld [vmem:[%s3624 + $0x38] sm:$0xff]
        %v3633 = vld [vmem:[%s3624 + $0x40] sm:$0xff]
        %v3634 = vld [vmem:[%s3624 + $0x48] sm:$0xff]
        %v3635 = vld [vmem:[%s3624 + $0x50] sm:$0xff]
        %v3636 = vld [vmem:[%s3624 + $0x58] sm:$0xff]
        %v3637 = vld [vmem:[%s3624 + $0x60] sm:$0xff]
        %v3638 = vld [vmem:[%s3624 + $0x68] sm:$0xff]
        %v3639 = vld [vmem:[%s3624 + $0x70] sm:$0xff]
        %v3640 = vld [vmem:[%s3624 + $0x78] sm:$0xff]
        %v3641 = vld [vmem:[%s3624 + $0x80] sm:$0xff]
        %v3642 = vld [vmem:[%s3624 + $0x88] sm:$0xff]
        %v3643 = vld [vmem:[%s3624 + $0x90] sm:$0xff]
        %v3644 = vld [vmem:[%s3624 + $0x98] sm:$0xff]
        %v3645 = vld [vmem:[%s3624 + $0xa0] sm:$0xff]
        %v3646 = vld [vmem:[%s3624 + $0xa8] sm:$0xff]
        %v3647 = vld [vmem:[%s3624 + $0xb0] sm:$0xff]
        %v3648 = vld [vmem:[%s3624 + $0xb8] sm:$0xff]
        %v3649 = vld [vmem:[%s3624 + $0xc0] sm:$0xff]
        %v3650 = vld [vmem:[%s3624 + $0xc8] sm:$0xff]
        %v3651 = vld [vmem:[%s3624 + $0xd0] sm:$0xff]
        %v3652 = vld [vmem:[%s3624 + $0xd8] sm:$0xff]
        %v3653 = vld [vmem:[%s3624 + $0xe0] sm:$0xff]
        %v3654 = vld [vmem:[%s3624 + $0xe8] sm:$0xff]
        %v3655 = vld [vmem:[%s3624 + $0xf0] sm:$0xff]
        %v3656 = vld [vmem:[%s3624 + $0xf8] sm:$0xff]
        %v3657 = vld [vmem:[%s3624 + $0x100] sm:$0xff]
        %v3658 = vld [vmem:[%s3624 + $0x108] sm:$0xff]
        %v3659 = vld [vmem:[%s3624 + $0x110] sm:$0xff]
        %v3660 = vld [vmem:[%s3624 + $0x118] sm:$0xff]
        %v3661 = vld [vmem:[%s3624 + $0x120] sm:$0xff]
        %v3662 = vld [vmem:[%s3624 + $0x128] sm:$0xff]
        %v3663 = vld [vmem:[%s3624 + $0x130] sm:$0xff]
        %v3664 = vld [vmem:[%s3624 + $0x138] sm:$0xff]
        %v3665 = vld [vmem:[%s3624 + $0x140] sm:$0xff]
        %v3666 = vld [vmem:[%s3624 + $0x148] sm:$0xff]
        %v3667 = vld [vmem:[%s3624 + $0x150] sm:$0xff]
        %v3668 = vld [vmem:[%s3624 + $0x158] sm:$0xff]
        %v3669 = vld [vmem:[%s3624 + $0x160] sm:$0xff]
        %v3670 = vld [vmem:[%s3624 + $0x168] sm:$0xff]
        %v3671 = vld [vmem:[%s3624 + $0x170] sm:$0xff]
        %v3672 = vld [vmem:[%s3624 + $0x178] sm:$0xff]
        %s3673 = scalar_lea.vmem [#allocation2], 1
        %v3674 = vld [vmem:[%s3673] ss:$4 sm:$0x3f]
        %v3676 = vlaneseq
        %v3677 = vshrl.u32 %v3676, 7
        %v3678 = vsub.s32 0, %v3677
        %v3679 = vrot.slane %v3674, %v3678
        %v3680 = vlaneseq
        %v3681 = vshrl.u32 %v3680, 7
        %v3682 = vsub.s32 1, %v3681
        %v3683 = vrot.slane %v3674, %v3682
        %v3684 = vlaneseq
        %v3685 = vshrl.u32 %v3684, 7
        %v3686 = vsub.s32 2, %v3685
        %v3687 = vrot.slane %v3674, %v3686
        %v3688 = vlaneseq
        %v3689 = vshrl.u32 %v3688, 7
        %v3690 = vsub.s32 3, %v3689
        %v3691 = vrot.slane %v3674, %v3690
        %v3692 = vlaneseq
        %v3693 = vshrl.u32 %v3692, 7
        %v3694 = vsub.s32 4, %v3693
        %v3695 = vrot.slane %v3674, %v3694
        %v3696 = vlaneseq
        %v3697 = vshrl.u32 %v3696, 7
        %v3698 = vsub.s32 5, %v3697
        %v3699 = vrot.slane %v3674, %v3698
        %v3706 = vmul.f32 %v3625, %v3679
        %v3707 = vmul.f32 %v3626, %v3683
        %v3708 = vmul.f32 %v3627, %v3687
        %v3709 = vmul.f32 %v3628, %v3691
        %v3710 = vmul.f32 %v3629, %v3695
        %v3711 = vmul.f32 %v3630, %v3699
        %v3712 = vmul.f32 %v3631, %v3679
        %v3713 = vmul.f32 %v3632, %v3683
        %v3714 = vmul.f32 %v3633, %v3687
        %v3715 = vmul.f32 %v3634, %v3691
        %v3716 = vmul.f32 %v3635, %v3695
        %v3717 = vmul.f32 %v3636, %v3699
        %v3718 = vmul.f32 %v3637, %v3679
        %v3719 = vmul.f32 %v3638, %v3683
        %v3720 = vmul.f32 %v3639, %v3687
        %v3721 = vmul.f32 %v3640, %v3691
        %v3722 = vmul.f32 %v3641, %v3695
        %v3723 = vmul.f32 %v3642, %v3699
        %v3724 = vmul.f32 %v3643, %v3679
        %v3725 = vmul.f32 %v3644, %v3683
        %v3726 = vmul.f32 %v3645, %v3687
        %v3727 = vmul.f32 %v3646, %v3691
        %v3728 = vmul.f32 %v3647, %v3695
        %v3729 = vmul.f32 %v3648, %v3699
        %v3730 = vmul.f32 %v3649, %v3679
        %v3731 = vmul.f32 %v3650, %v3683
        %v3732 = vmul.f32 %v3651, %v3687
        %v3733 = vmul.f32 %v3652, %v3691
        %v3734 = vmul.f32 %v3653, %v3695
        %v3735 = vmul.f32 %v3654, %v3699
        %v3736 = vmul.f32 %v3655, %v3679
        %v3737 = vmul.f32 %v3656, %v3683
        %v3738 = vmul.f32 %v3657, %v3687
        %v3739 = vmul.f32 %v3658, %v3691
        %v3740 = vmul.f32 %v3659, %v3695
        %v3741 = vmul.f32 %v3660, %v3699
        %v3742 = vmul.f32 %v3661, %v3679
        %v3743 = vmul.f32 %v3662, %v3683
        %v3744 = vmul.f32 %v3663, %v3687
        %v3745 = vmul.f32 %v3664, %v3691
        %v3746 = vmul.f32 %v3665, %v3695
        %v3747 = vmul.f32 %v3666, %v3699
        %v3748 = vmul.f32 %v3667, %v3679
        %v3749 = vmul.f32 %v3668, %v3683
        %v3750 = vmul.f32 %v3669, %v3687
        %v3751 = vmul.f32 %v3670, %v3691
        %v3752 = vmul.f32 %v3671, %v3695
        %v3753 = vmul.f32 %v3672, %v3699
        %v3754 = vadd.f32 %v3576, %v3706
        %v3755 = vadd.f32 %v3577, %v3707
        %v3756 = vadd.f32 %v3578, %v3708
        %v3757 = vadd.f32 %v3579, %v3709
        %v3758 = vadd.f32 %v3580, %v3710
        %v3759 = vadd.f32 %v3581, %v3711
        %v3760 = vadd.f32 %v3582, %v3712
        %v3761 = vadd.f32 %v3583, %v3713
        %v3762 = vadd.f32 %v3584, %v3714
        %v3763 = vadd.f32 %v3585, %v3715
        %v3764 = vadd.f32 %v3586, %v3716
        %v3765 = vadd.f32 %v3587, %v3717
        %v3766 = vadd.f32 %v3588, %v3718
        %v3767 = vadd.f32 %v3589, %v3719
        %v3768 = vadd.f32 %v3590, %v3720
        %v3769 = vadd.f32 %v3591, %v3721
        %v3770 = vadd.f32 %v3592, %v3722
        %v3771 = vadd.f32 %v3593, %v3723
        %v3772 = vadd.f32 %v3594, %v3724
        %v3773 = vadd.f32 %v3595, %v3725
        %v3774 = vadd.f32 %v3596, %v3726
        %v3775 = vadd.f32 %v3597, %v3727
        %v3776 = vadd.f32 %v3598, %v3728
        %v3777 = vadd.f32 %v3599, %v3729
        %v3778 = vadd.f32 %v3600, %v3730
        %v3779 = vadd.f32 %v3601, %v3731
        %v3780 = vadd.f32 %v3602, %v3732
        %v3781 = vadd.f32 %v3603, %v3733
        %v3782 = vadd.f32 %v3604, %v3734
        %v3783 = vadd.f32 %v3605, %v3735
        %v3784 = vadd.f32 %v3606, %v3736
        %v3785 = vadd.f32 %v3607, %v3737
        %v3786 = vadd.f32 %v3608, %v3738
        %v3787 = vadd.f32 %v3609, %v3739
        %v3788 = vadd.f32 %v3610, %v3740
        %v3789 = vadd.f32 %v3611, %v3741
        %v3790 = vadd.f32 %v3612, %v3742
        %v3791 = vadd.f32 %v3613, %v3743
        %v3792 = vadd.f32 %v3614, %v3744
        %v3793 = vadd.f32 %v3615, %v3745
        %v3794 = vadd.f32 %v3616, %v3746
        %v3795 = vadd.f32 %v3617, %v3747
        %v3796 = vadd.f32 %v3618, %v3748
        %v3797 = vadd.f32 %v3619, %v3749
        %v3798 = vadd.f32 %v3620, %v3750
        %v3799 = vadd.f32 %v3621, %v3751
        %v3800 = vadd.f32 %v3622, %v3752
        %v3801 = vadd.f32 %v3623, %v3753
        %s3802 = scalar_lea.vmem %s586, 768 [#allocation3]
        %v3803 = vld [vmem:[%s3802] sm:$0xff]
        %v3804 = vld [vmem:[%s3802 + $0x8] sm:$0xff]
        %v3805 = vld [vmem:[%s3802 + $0x10] sm:$0xff]
        %v3806 = vld [vmem:[%s3802 + $0x18] sm:$0xff]
        %v3807 = vld [vmem:[%s3802 + $0x20] sm:$0xff]
        %v3808 = vld [vmem:[%s3802 + $0x28] sm:$0xff]
        %v3809 = vld [vmem:[%s3802 + $0x30] sm:$0xff]
        %v3810 = vld [vmem:[%s3802 + $0x38] sm:$0xff]
        %v3811 = vld [vmem:[%s3802 + $0x40] sm:$0xff]
        %v3812 = vld [vmem:[%s3802 + $0x48] sm:$0xff]
        %v3813 = vld [vmem:[%s3802 + $0x50] sm:$0xff]
        %v3814 = vld [vmem:[%s3802 + $0x58] sm:$0xff]
        %v3815 = vld [vmem:[%s3802 + $0x60] sm:$0xff]
        %v3816 = vld [vmem:[%s3802 + $0x68] sm:$0xff]
        %v3817 = vld [vmem:[%s3802 + $0x70] sm:$0xff]
        %v3818 = vld [vmem:[%s3802 + $0x78] sm:$0xff]
        %v3819 = vld [vmem:[%s3802 + $0x80] sm:$0xff]
        %v3820 = vld [vmem:[%s3802 + $0x88] sm:$0xff]
        %v3821 = vld [vmem:[%s3802 + $0x90] sm:$0xff]
        %v3822 = vld [vmem:[%s3802 + $0x98] sm:$0xff]
        %v3823 = vld [vmem:[%s3802 + $0xa0] sm:$0xff]
        %v3824 = vld [vmem:[%s3802 + $0xa8] sm:$0xff]
        %v3825 = vld [vmem:[%s3802 + $0xb0] sm:$0xff]
        %v3826 = vld [vmem:[%s3802 + $0xb8] sm:$0xff]
        %v3827 = vld [vmem:[%s3802 + $0xc0] sm:$0xff]
        %v3828 = vld [vmem:[%s3802 + $0xc8] sm:$0xff]
        %v3829 = vld [vmem:[%s3802 + $0xd0] sm:$0xff]
        %v3830 = vld [vmem:[%s3802 + $0xd8] sm:$0xff]
        %v3831 = vld [vmem:[%s3802 + $0xe0] sm:$0xff]
        %v3832 = vld [vmem:[%s3802 + $0xe8] sm:$0xff]
        %v3833 = vld [vmem:[%s3802 + $0xf0] sm:$0xff]
        %v3834 = vld [vmem:[%s3802 + $0xf8] sm:$0xff]
        %v3835 = vld [vmem:[%s3802 + $0x100] sm:$0xff]
        %v3836 = vld [vmem:[%s3802 + $0x108] sm:$0xff]
        %v3837 = vld [vmem:[%s3802 + $0x110] sm:$0xff]
        %v3838 = vld [vmem:[%s3802 + $0x118] sm:$0xff]
        %v3839 = vld [vmem:[%s3802 + $0x120] sm:$0xff]
        %v3840 = vld [vmem:[%s3802 + $0x128] sm:$0xff]
        %v3841 = vld [vmem:[%s3802 + $0x130] sm:$0xff]
        %v3842 = vld [vmem:[%s3802 + $0x138] sm:$0xff]
        %v3843 = vld [vmem:[%s3802 + $0x140] sm:$0xff]
        %v3844 = vld [vmem:[%s3802 + $0x148] sm:$0xff]
        %v3845 = vld [vmem:[%s3802 + $0x150] sm:$0xff]
        %v3846 = vld [vmem:[%s3802 + $0x158] sm:$0xff]
        %v3847 = vld [vmem:[%s3802 + $0x160] sm:$0xff]
        %v3848 = vld [vmem:[%s3802 + $0x168] sm:$0xff]
        %v3849 = vld [vmem:[%s3802 + $0x170] sm:$0xff]
        %v3850 = vld [vmem:[%s3802 + $0x178] sm:$0xff]
        %s3851 = scalar_lea.vmem [#allocation2], 2
        %v3852 = vld [vmem:[%s3851] ss:$4 sm:$0x3f]
        %v3854 = vlaneseq
        %v3855 = vshrl.u32 %v3854, 7
        %v3856 = vsub.s32 0, %v3855
        %v3857 = vrot.slane %v3852, %v3856
        %v3858 = vlaneseq
        %v3859 = vshrl.u32 %v3858, 7
        %v3860 = vsub.s32 1, %v3859
        %v3861 = vrot.slane %v3852, %v3860
        %v3862 = vlaneseq
        %v3863 = vshrl.u32 %v3862, 7
        %v3864 = vsub.s32 2, %v3863
        %v3865 = vrot.slane %v3852, %v3864
        %v3866 = vlaneseq
        %v3867 = vshrl.u32 %v3866, 7
        %v3868 = vsub.s32 3, %v3867
        %v3869 = vrot.slane %v3852, %v3868
        %v3870 = vlaneseq
        %v3871 = vshrl.u32 %v3870, 7
        %v3872 = vsub.s32 4, %v3871
        %v3873 = vrot.slane %v3852, %v3872
        %v3874 = vlaneseq
        %v3875 = vshrl.u32 %v3874, 7
        %v3876 = vsub.s32 5, %v3875
        %v3877 = vrot.slane %v3852, %v3876
        %v3884 = vmul.f32 %v3803, %v3857
        %v3885 = vmul.f32 %v3804, %v3861
        %v3886 = vmul.f32 %v3805, %v3865
        %v3887 = vmul.f32 %v3806, %v3869
        %v3888 = vmul.f32 %v3807, %v3873
        %v3889 = vmul.f32 %v3808, %v3877
        %v3890 = vmul.f32 %v3809, %v3857
        %v3891 = vmul.f32 %v3810, %v3861
        %v3892 = vmul.f32 %v3811, %v3865
        %v3893 = vmul.f32 %v3812, %v3869
        %v3894 = vmul.f32 %v3813, %v3873
        %v3895 = vmul.f32 %v3814, %v3877
        %v3896 = vmul.f32 %v3815, %v3857
        %v3897 = vmul.f32 %v3816, %v3861
        %v3898 = vmul.f32 %v3817, %v3865
        %v3899 = vmul.f32 %v3818, %v3869
        %v3900 = vmul.f32 %v3819, %v3873
        %v3901 = vmul.f32 %v3820, %v3877
        %v3902 = vmul.f32 %v3821, %v3857
        %v3903 = vmul.f32 %v3822, %v3861
        %v3904 = vmul.f32 %v3823, %v3865
        %v3905 = vmul.f32 %v3824, %v3869
        %v3906 = vmul.f32 %v3825, %v3873
        %v3907 = vmul.f32 %v3826, %v3877
        %v3908 = vmul.f32 %v3827, %v3857
        %v3909 = vmul.f32 %v3828, %v3861
        %v3910 = vmul.f32 %v3829, %v3865
        %v3911 = vmul.f32 %v3830, %v3869
        %v3912 = vmul.f32 %v3831, %v3873
        %v3913 = vmul.f32 %v3832, %v3877
        %v3914 = vmul.f32 %v3833, %v3857
        %v3915 = vmul.f32 %v3834, %v3861
        %v3916 = vmul.f32 %v3835, %v3865
        %v3917 = vmul.f32 %v3836, %v3869
        %v3918 = vmul.f32 %v3837, %v3873
        %v3919 = vmul.f32 %v3838, %v3877
        %v3920 = vmul.f32 %v3839, %v3857
        %v3921 = vmul.f32 %v3840, %v3861
        %v3922 = vmul.f32 %v3841, %v3865
        %v3923 = vmul.f32 %v3842, %v3869
        %v3924 = vmul.f32 %v3843, %v3873
        %v3925 = vmul.f32 %v3844, %v3877
        %v3926 = vmul.f32 %v3845, %v3857
        %v3927 = vmul.f32 %v3846, %v3861
        %v3928 = vmul.f32 %v3847, %v3865
        %v3929 = vmul.f32 %v3848, %v3869
        %v3930 = vmul.f32 %v3849, %v3873
        %v3931 = vmul.f32 %v3850, %v3877
        %v3932 = vadd.f32 %v3754, %v3884
        %v3933 = vadd.f32 %v3755, %v3885
        %v3934 = vadd.f32 %v3756, %v3886
        %v3935 = vadd.f32 %v3757, %v3887
        %v3936 = vadd.f32 %v3758, %v3888
        %v3937 = vadd.f32 %v3759, %v3889
        %v3938 = vadd.f32 %v3760, %v3890
        %v3939 = vadd.f32 %v3761, %v3891
        %v3940 = vadd.f32 %v3762, %v3892
        %v3941 = vadd.f32 %v3763, %v3893
        %v3942 = vadd.f32 %v3764, %v3894
        %v3943 = vadd.f32 %v3765, %v3895
        %v3944 = vadd.f32 %v3766, %v3896
        %v3945 = vadd.f32 %v3767, %v3897
        %v3946 = vadd.f32 %v3768, %v3898
        %v3947 = vadd.f32 %v3769, %v3899
        %v3948 = vadd.f32 %v3770, %v3900
        %v3949 = vadd.f32 %v3771, %v3901
        %v3950 = vadd.f32 %v3772, %v3902
        %v3951 = vadd.f32 %v3773, %v3903
        %v3952 = vadd.f32 %v3774, %v3904
        %v3953 = vadd.f32 %v3775, %v3905
        %v3954 = vadd.f32 %v3776, %v3906
        %v3955 = vadd.f32 %v3777, %v3907
        %v3956 = vadd.f32 %v3778, %v3908
        %v3957 = vadd.f32 %v3779, %v3909
        %v3958 = vadd.f32 %v3780, %v3910
        %v3959 = vadd.f32 %v3781, %v3911
        %v3960 = vadd.f32 %v3782, %v3912
        %v3961 = vadd.f32 %v3783, %v3913
        %v3962 = vadd.f32 %v3784, %v3914
        %v3963 = vadd.f32 %v3785, %v3915
        %v3964 = vadd.f32 %v3786, %v3916
        %v3965 = vadd.f32 %v3787, %v3917
        %v3966 = vadd.f32 %v3788, %v3918
        %v3967 = vadd.f32 %v3789, %v3919
        %v3968 = vadd.f32 %v3790, %v3920
        %v3969 = vadd.f32 %v3791, %v3921
        %v3970 = vadd.f32 %v3792, %v3922
        %v3971 = vadd.f32 %v3793, %v3923
        %v3972 = vadd.f32 %v3794, %v3924
        %v3973 = vadd.f32 %v3795, %v3925
        %v3974 = vadd.f32 %v3796, %v3926
        %v3975 = vadd.f32 %v3797, %v3927
        %v3976 = vadd.f32 %v3798, %v3928
        %v3977 = vadd.f32 %v3799, %v3929
        %v3978 = vadd.f32 %v3800, %v3930
        %v3979 = vadd.f32 %v3801, %v3931
        %s3980 = scalar_lea.vmem %s586, 1152 [#allocation3]
        %v3981 = vld [vmem:[%s3980] sm:$0xff]
        %v3982 = vld [vmem:[%s3980 + $0x8] sm:$0xff]
        %v3983 = vld [vmem:[%s3980 + $0x10] sm:$0xff]
        %v3984 = vld [vmem:[%s3980 + $0x18] sm:$0xff]
        %v3985 = vld [vmem:[%s3980 + $0x20] sm:$0xff]
        %v3986 = vld [vmem:[%s3980 + $0x28] sm:$0xff]
        %v3987 = vld [vmem:[%s3980 + $0x30] sm:$0xff]
        %v3988 = vld [vmem:[%s3980 + $0x38] sm:$0xff]
        %v3989 = vld [vmem:[%s3980 + $0x40] sm:$0xff]
        %v3990 = vld [vmem:[%s3980 + $0x48] sm:$0xff]
        %v3991 = vld [vmem:[%s3980 + $0x50] sm:$0xff]
        %v3992 = vld [vmem:[%s3980 + $0x58] sm:$0xff]
        %v3993 = vld [vmem:[%s3980 + $0x60] sm:$0xff]
        %v3994 = vld [vmem:[%s3980 + $0x68] sm:$0xff]
        %v3995 = vld [vmem:[%s3980 + $0x70] sm:$0xff]
        %v3996 = vld [vmem:[%s3980 + $0x78] sm:$0xff]
        %v3997 = vld [vmem:[%s3980 + $0x80] sm:$0xff]
        %v3998 = vld [vmem:[%s3980 + $0x88] sm:$0xff]
        %v3999 = vld [vmem:[%s3980 + $0x90] sm:$0xff]
        %v4000 = vld [vmem:[%s3980 + $0x98] sm:$0xff]
        %v4001 = vld [vmem:[%s3980 + $0xa0] sm:$0xff]
        %v4002 = vld [vmem:[%s3980 + $0xa8] sm:$0xff]
        %v4003 = vld [vmem:[%s3980 + $0xb0] sm:$0xff]
        %v4004 = vld [vmem:[%s3980 + $0xb8] sm:$0xff]
        %v4005 = vld [vmem:[%s3980 + $0xc0] sm:$0xff]
        %v4006 = vld [vmem:[%s3980 + $0xc8] sm:$0xff]
        %v4007 = vld [vmem:[%s3980 + $0xd0] sm:$0xff]
        %v4008 = vld [vmem:[%s3980 + $0xd8] sm:$0xff]
        %v4009 = vld [vmem:[%s3980 + $0xe0] sm:$0xff]
        %v4010 = vld [vmem:[%s3980 + $0xe8] sm:$0xff]
        %v4011 = vld [vmem:[%s3980 + $0xf0] sm:$0xff]
        %v4012 = vld [vmem:[%s3980 + $0xf8] sm:$0xff]
        %v4013 = vld [vmem:[%s3980 + $0x100] sm:$0xff]
        %v4014 = vld [vmem:[%s3980 + $0x108] sm:$0xff]
        %v4015 = vld [vmem:[%s3980 + $0x110] sm:$0xff]
        %v4016 = vld [vmem:[%s3980 + $0x118] sm:$0xff]
        %v4017 = vld [vmem:[%s3980 + $0x120] sm:$0xff]
        %v4018 = vld [vmem:[%s3980 + $0x128] sm:$0xff]
        %v4019 = vld [vmem:[%s3980 + $0x130] sm:$0xff]
        %v4020 = vld [vmem:[%s3980 + $0x138] sm:$0xff]
        %v4021 = vld [vmem:[%s3980 + $0x140] sm:$0xff]
        %v4022 = vld [vmem:[%s3980 + $0x148] sm:$0xff]
        %v4023 = vld [vmem:[%s3980 + $0x150] sm:$0xff]
        %v4024 = vld [vmem:[%s3980 + $0x158] sm:$0xff]
        %v4025 = vld [vmem:[%s3980 + $0x160] sm:$0xff]
        %v4026 = vld [vmem:[%s3980 + $0x168] sm:$0xff]
        %v4027 = vld [vmem:[%s3980 + $0x170] sm:$0xff]
        %v4028 = vld [vmem:[%s3980 + $0x178] sm:$0xff]
        %s4029 = scalar_lea.vmem [#allocation2], 3
        %v4030 = vld [vmem:[%s4029] ss:$4 sm:$0x3f]
        %v4032 = vlaneseq
        %v4033 = vshrl.u32 %v4032, 7
        %v4034 = vsub.s32 0, %v4033
        %v4035 = vrot.slane %v4030, %v4034
        %v4036 = vlaneseq
        %v4037 = vshrl.u32 %v4036, 7
        %v4038 = vsub.s32 1, %v4037
        %v4039 = vrot.slane %v4030, %v4038
        %v4040 = vlaneseq
        %v4041 = vshrl.u32 %v4040, 7
        %v4042 = vsub.s32 2, %v4041
        %v4043 = vrot.slane %v4030, %v4042
        %v4044 = vlaneseq
        %v4045 = vshrl.u32 %v4044, 7
        %v4046 = vsub.s32 3, %v4045
        %v4047 = vrot.slane %v4030, %v4046
        %v4048 = vlaneseq
        %v4049 = vshrl.u32 %v4048, 7
        %v4050 = vsub.s32 4, %v4049
        %v4051 = vrot.slane %v4030, %v4050
        %v4052 = vlaneseq
        %v4053 = vshrl.u32 %v4052, 7
        %v4054 = vsub.s32 5, %v4053
        %v4055 = vrot.slane %v4030, %v4054
        %v4062 = vmul.f32 %v3981, %v4035
        %v4063 = vmul.f32 %v3982, %v4039
        %v4064 = vmul.f32 %v3983, %v4043
        %v4065 = vmul.f32 %v3984, %v4047
        %v4066 = vmul.f32 %v3985, %v4051
        %v4067 = vmul.f32 %v3986, %v4055
        %v4068 = vmul.f32 %v3987, %v4035
        %v4069 = vmul.f32 %v3988, %v4039
        %v4070 = vmul.f32 %v3989, %v4043
        %v4071 = vmul.f32 %v3990, %v4047
        %v4072 = vmul.f32 %v3991, %v4051
        %v4073 = vmul.f32 %v3992, %v4055
        %v4074 = vmul.f32 %v3993, %v4035
        %v4075 = vmul.f32 %v3994, %v4039
        %v4076 = vmul.f32 %v3995, %v4043
        %v4077 = vmul.f32 %v3996, %v4047
        %v4078 = vmul.f32 %v3997, %v4051
        %v4079 = vmul.f32 %v3998, %v4055
        %v4080 = vmul.f32 %v3999, %v4035
        %v4081 = vmul.f32 %v4000, %v4039
        %v4082 = vmul.f32 %v4001, %v4043
        %v4083 = vmul.f32 %v4002, %v4047
        %v4084 = vmul.f32 %v4003, %v4051
        %v4085 = vmul.f32 %v4004, %v4055
        %v4086 = vmul.f32 %v4005, %v4035
        %v4087 = vmul.f32 %v4006, %v4039
        %v4088 = vmul.f32 %v4007, %v4043
        %v4089 = vmul.f32 %v4008, %v4047
        %v4090 = vmul.f32 %v4009, %v4051
        %v4091 = vmul.f32 %v4010, %v4055
        %v4092 = vmul.f32 %v4011, %v4035
        %v4093 = vmul.f32 %v4012, %v4039
        %v4094 = vmul.f32 %v4013, %v4043
        %v4095 = vmul.f32 %v4014, %v4047
        %v4096 = vmul.f32 %v4015, %v4051
        %v4097 = vmul.f32 %v4016, %v4055
        %v4098 = vmul.f32 %v4017, %v4035
        %v4099 = vmul.f32 %v4018, %v4039
        %v4100 = vmul.f32 %v4019, %v4043
        %v4101 = vmul.f32 %v4020, %v4047
        %v4102 = vmul.f32 %v4021, %v4051
        %v4103 = vmul.f32 %v4022, %v4055
        %v4104 = vmul.f32 %v4023, %v4035
        %v4105 = vmul.f32 %v4024, %v4039
        %v4106 = vmul.f32 %v4025, %v4043
        %v4107 = vmul.f32 %v4026, %v4047
        %v4108 = vmul.f32 %v4027, %v4051
        %v4109 = vmul.f32 %v4028, %v4055
        %v4110 = vadd.f32 %v3932, %v4062
        %v4111 = vadd.f32 %v3933, %v4063
        %v4112 = vadd.f32 %v3934, %v4064
        %v4113 = vadd.f32 %v3935, %v4065
        %v4114 = vadd.f32 %v3936, %v4066
        %v4115 = vadd.f32 %v3937, %v4067
        %v4116 = vadd.f32 %v3938, %v4068
        %v4117 = vadd.f32 %v3939, %v4069
        %v4118 = vadd.f32 %v3940, %v4070
        %v4119 = vadd.f32 %v3941, %v4071
        %v4120 = vadd.f32 %v3942, %v4072
        %v4121 = vadd.f32 %v3943, %v4073
        %v4122 = vadd.f32 %v3944, %v4074
        %v4123 = vadd.f32 %v3945, %v4075
        %v4124 = vadd.f32 %v3946, %v4076
        %v4125 = vadd.f32 %v3947, %v4077
        %v4126 = vadd.f32 %v3948, %v4078
        %v4127 = vadd.f32 %v3949, %v4079
        %v4128 = vadd.f32 %v3950, %v4080
        %v4129 = vadd.f32 %v3951, %v4081
        %v4130 = vadd.f32 %v3952, %v4082
        %v4131 = vadd.f32 %v3953, %v4083
        %v4132 = vadd.f32 %v3954, %v4084
        %v4133 = vadd.f32 %v3955, %v4085
        %v4134 = vadd.f32 %v3956, %v4086
        %v4135 = vadd.f32 %v3957, %v4087
        %v4136 = vadd.f32 %v3958, %v4088
        %v4137 = vadd.f32 %v3959, %v4089
        %v4138 = vadd.f32 %v3960, %v4090
        %v4139 = vadd.f32 %v3961, %v4091
        %v4140 = vadd.f32 %v3962, %v4092
        %v4141 = vadd.f32 %v3963, %v4093
        %v4142 = vadd.f32 %v3964, %v4094
        %v4143 = vadd.f32 %v3965, %v4095
        %v4144 = vadd.f32 %v3966, %v4096
        %v4145 = vadd.f32 %v3967, %v4097
        %v4146 = vadd.f32 %v3968, %v4098
        %v4147 = vadd.f32 %v3969, %v4099
        %v4148 = vadd.f32 %v3970, %v4100
        %v4149 = vadd.f32 %v3971, %v4101
        %v4150 = vadd.f32 %v3972, %v4102
        %v4151 = vadd.f32 %v3973, %v4103
        %v4152 = vadd.f32 %v3974, %v4104
        %v4153 = vadd.f32 %v3975, %v4105
        %v4154 = vadd.f32 %v3976, %v4106
        %v4155 = vadd.f32 %v3977, %v4107
        %v4156 = vadd.f32 %v3978, %v4108
        %v4157 = vadd.f32 %v3979, %v4109
        %4158 = vst [vmem:[%s630] sm:$0xff] %v4110
        %4159 = vst [vmem:[%s630 + $0x8] sm:$0xff] %v4111
        %4160 = vst [vmem:[%s630 + $0x10] sm:$0xff] %v4112
        %4161 = vst [vmem:[%s630 + $0x18] sm:$0xff] %v4113
        %4162 = vst [vmem:[%s630 + $0x20] sm:$0xff] %v4114
        %4163 = vst [vmem:[%s630 + $0x28] sm:$0xff] %v4115
        %4164 = vst [vmem:[%s630 + $0x30] sm:$0xff] %v4116
        %4165 = vst [vmem:[%s630 + $0x38] sm:$0xff] %v4117
        %4166 = vst [vmem:[%s630 + $0x40] sm:$0xff] %v4118
        %4167 = vst [vmem:[%s630 + $0x48] sm:$0xff] %v4119
        %4168 = vst [vmem:[%s630 + $0x50] sm:$0xff] %v4120
        %4169 = vst [vmem:[%s630 + $0x58] sm:$0xff] %v4121
        %4170 = vst [vmem:[%s630 + $0x60] sm:$0xff] %v4122
        %4171 = vst [vmem:[%s630 + $0x68] sm:$0xff] %v4123
        %4172 = vst [vmem:[%s630 + $0x70] sm:$0xff] %v4124
        %4173 = vst [vmem:[%s630 + $0x78] sm:$0xff] %v4125
        %4174 = vst [vmem:[%s630 + $0x80] sm:$0xff] %v4126
        %4175 = vst [vmem:[%s630 + $0x88] sm:$0xff] %v4127
        %4176 = vst [vmem:[%s630 + $0x90] sm:$0xff] %v4128
        %4177 = vst [vmem:[%s630 + $0x98] sm:$0xff] %v4129
        %4178 = vst [vmem:[%s630 + $0xa0] sm:$0xff] %v4130
        %4179 = vst [vmem:[%s630 + $0xa8] sm:$0xff] %v4131
        %4180 = vst [vmem:[%s630 + $0xb0] sm:$0xff] %v4132
        %4181 = vst [vmem:[%s630 + $0xb8] sm:$0xff] %v4133
        %4182 = vst [vmem:[%s630 + $0xc0] sm:$0xff] %v4134
        %4183 = vst [vmem:[%s630 + $0xc8] sm:$0xff] %v4135
        %4184 = vst [vmem:[%s630 + $0xd0] sm:$0xff] %v4136
        %4185 = vst [vmem:[%s630 + $0xd8] sm:$0xff] %v4137
        %4186 = vst [vmem:[%s630 + $0xe0] sm:$0xff] %v4138
        %4187 = vst [vmem:[%s630 + $0xe8] sm:$0xff] %v4139
        %4188 = vst [vmem:[%s630 + $0xf0] sm:$0xff] %v4140
        %4189 = vst [vmem:[%s630 + $0xf8] sm:$0xff] %v4141
        %4190 = vst [vmem:[%s630 + $0x100] sm:$0xff] %v4142
        %4191 = vst [vmem:[%s630 + $0x108] sm:$0xff] %v4143
        %4192 = vst [vmem:[%s630 + $0x110] sm:$0xff] %v4144
        %4193 = vst [vmem:[%s630 + $0x118] sm:$0xff] %v4145
        %4194 = vst [vmem:[%s630 + $0x120] sm:$0xff] %v4146
        %4195 = vst [vmem:[%s630 + $0x128] sm:$0xff] %v4147
        %4196 = vst [vmem:[%s630 + $0x130] sm:$0xff] %v4148
        %4197 = vst [vmem:[%s630 + $0x138] sm:$0xff] %v4149
        %4198 = vst [vmem:[%s630 + $0x140] sm:$0xff] %v4150
        %4199 = vst [vmem:[%s630 + $0x148] sm:$0xff] %v4151
        %4200 = vst [vmem:[%s630 + $0x150] sm:$0xff] %v4152
        %4201 = vst [vmem:[%s630 + $0x158] sm:$0xff] %v4153
        %4202 = vst [vmem:[%s630 + $0x160] sm:$0xff] %v4154
        %4203 = vst [vmem:[%s630 + $0x168] sm:$0xff] %v4155
        %4204 = vst [vmem:[%s630 + $0x170] sm:$0xff] %v4156
        %4205 = vst [vmem:[%s630 + $0x178] sm:$0xff] %v4157
        %p4206 = scmp.lt.s32.totalorder %s25, 1
        %s4207 = scalar_select %p4206, %s25, 1
        %s4208 = smul.addr %s4207, 4
        %s4209 = scalar_lea.vmem %s8, %s4208
        %s4210 = sand.u32 %s254, 1
        %s4211 = sand.u32 %s254, 1
        %s4212 = smul.addr %s4211, 384
        %s4213 = scalar_lea.vmem [#allocation4], %s4212
        // Predicated region
        $region87: #{image_set_question_attention.1} parent=77 // pred_check
          %p4214 = pneg %p236
        $region88: #{image_set_question_attention.1} parent=77 // pred_check_branch
          %4216 = sbr.rel (%p4214) target = $region90
        $region89: #{image_set_question_attention.1} parent=77 // pred_region
          _
        $region90: #{image_set_question_attention.1} parent=77 // pred_fallthru
          _
        // Predicated region
        $region91: #{image_set_question_attention.1} parent=77 // pred_check
          %p4217 = pneg %p264
        $region92: #{image_set_question_attention.1} parent=77 // pred_check_branch
          %4219 = sbr.rel (%p4217) target = $region94
        $region93: #{image_set_question_attention.1} parent=77 // pred_region
          %s4220 = smul.u32 8, %s26
          %s4221 = ssub.s32 25, %s4220
          %p4222 = scmp.lt.s32.totalorder %s4221, 8
          %s4223 = scalar_select %p4222, %s4221, 8
          %s4224 = smul.u32 128, %s4223
          %s4225 = smul.u32 %s4224, 6
          %p4226 = scmp.ne.s32.totalorder 0, %s4225
          %s4227 = smul.addr %s4220, 6
          %s4228 = smul.addr %s25, 150
          %s4229 = sadd.s32 %s4227, %s4228
          %s4230 = smul.addr %s4229, 8
          %s4231 = scalar_lea.vmem %s9, %s4230
          // Predicated region
          $region95: #{image_set_question_attention.1} parent=93 // pred_check
            %p4232 = pneg %p4226
          $region96: #{image_set_question_attention.1} parent=93 // pred_check_branch
            %4234 = sbr.rel (%p4232) target = $region98
          $region97: #{image_set_question_attention.1} parent=93 // pred_region
            // Predicated region
            $region99: #{image_set_question_attention.1} parent=97 // pred_check
              _
            $region100: #{image_set_question_attention.1} parent=97 // pred_check_branch
              %4236 = sbr.rel (0) target = $region102
            $region101: #{image_set_question_attention.1} parent=97 // pred_region
              %s4237 = sshrl.u32 %s4223, 3
              // While loop
              $region103: #{image_set_question_attention.1} parent=101 // loop_pre_header
                _
              $region104: #{image_set_question_attention.1} parent=101 // loop_header
                %s4239 = sphi 0, %s4241
                %p4240 = scmp.ge.s32.totalorder %s4239, %s4237
                %s4244 = sphi 0, %s4345
                %s4245 = sphi %s4213, %s4348
                %s4246 = sphi %s4231, %s4349
              $region105: #{image_set_question_attention.1} parent=101 // loop_header_branch
                %4243 = sbr.rel (%p4240) target = $region109
              $region106: #{image_set_question_attention.1} parent=101 // loop_body
                %v4247 = vld [vmem:[%s4245] sm:$0xff]
                %4248 = vst [vmem:[%s4246] sm:$0xff] %v4247
                %v4249 = vld [vmem:[%s4245 + $0x30] sm:$0xff]
                %4250 = vst [vmem:[%s4246 + $0x30] sm:$0xff] %v4249
                %v4251 = vld [vmem:[%s4245 + $0x60] sm:$0xff]
                %4252 = vst [vmem:[%s4246 + $0x60] sm:$0xff] %v4251
                %v4253 = vld [vmem:[%s4245 + $0x90] sm:$0xff]
                %4254 = vst [vmem:[%s4246 + $0x90] sm:$0xff] %v4253
                %v4255 = vld [vmem:[%s4245 + $0xc0] sm:$0xff]
                %4256 = vst [vmem:[%s4246 + $0xc0] sm:$0xff] %v4255
                %v4257 = vld [vmem:[%s4245 + $0xf0] sm:$0xff]
                %4258 = vst [vmem:[%s4246 + $0xf0] sm:$0xff] %v4257
                %v4259 = vld [vmem:[%s4245 + $0x120] sm:$0xff]
                %4260 = vst [vmem:[%s4246 + $0x120] sm:$0xff] %v4259
                %v4261 = vld [vmem:[%s4245 + $0x150] sm:$0xff]
                %4262 = vst [vmem:[%s4246 + $0x150] sm:$0xff] %v4261
                %v4263 = vld [vmem:[%s4245 + $0x8] sm:$0xff]
                %4264 = vst [vmem:[%s4246 + $0x8] sm:$0xff] %v4263
                %v4265 = vld [vmem:[%s4245 + $0x38] sm:$0xff]
                %4266 = vst [vmem:[%s4246 + $0x38] sm:$0xff] %v4265
                %v4267 = vld [vmem:[%s4245 + $0x68] sm:$0xff]
                %4268 = vst [vmem:[%s4246 + $0x68] sm:$0xff] %v4267
                %v4269 = vld [vmem:[%s4245 + $0x98] sm:$0xff]
                %4270 = vst [vmem:[%s4246 + $0x98] sm:$0xff] %v4269
                %v4271 = vld [vmem:[%s4245 + $0xc8] sm:$0xff]
                %4272 = vst [vmem:[%s4246 + $0xc8] sm:$0xff] %v4271
                %v4273 = vld [vmem:[%s4245 + $0xf8] sm:$0xff]
                %4274 = vst [vmem:[%s4246 + $0xf8] sm:$0xff] %v4273
                %v4275 = vld [vmem:[%s4245 + $0x128] sm:$0xff]
                %4276 = vst [vmem:[%s4246 + $0x128] sm:$0xff] %v4275
                %v4277 = vld [vmem:[%s4245 + $0x158] sm:$0xff]
                %4278 = vst [vmem:[%s4246 + $0x158] sm:$0xff] %v4277
                %v4279 = vld [vmem:[%s4245 + $0x10] sm:$0xff]
                %4280 = vst [vmem:[%s4246 + $0x10] sm:$0xff] %v4279
                %v4281 = vld [vmem:[%s4245 + $0x40] sm:$0xff]
                %4282 = vst [vmem:[%s4246 + $0x40] sm:$0xff] %v4281
                %v4283 = vld [vmem:[%s4245 + $0x70] sm:$0xff]
                %4284 = vst [vmem:[%s4246 + $0x70] sm:$0xff] %v4283
                %v4285 = vld [vmem:[%s4245 + $0xa0] sm:$0xff]
                %4286 = vst [vmem:[%s4246 + $0xa0] sm:$0xff] %v4285
                %v4287 = vld [vmem:[%s4245 + $0xd0] sm:$0xff]
                %4288 = vst [vmem:[%s4246 + $0xd0] sm:$0xff] %v4287
                %v4289 = vld [vmem:[%s4245 + $0x100] sm:$0xff]
                %4290 = vst [vmem:[%s4246 + $0x100] sm:$0xff] %v4289
                %v4291 = vld [vmem:[%s4245 + $0x130] sm:$0xff]
                %4292 = vst [vmem:[%s4246 + $0x130] sm:$0xff] %v4291
                %v4293 = vld [vmem:[%s4245 + $0x160] sm:$0xff]
                %4294 = vst [vmem:[%s4246 + $0x160] sm:$0xff] %v4293
                %v4295 = vld [vmem:[%s4245 + $0x18] sm:$0xff]
                %4296 = vst [vmem:[%s4246 + $0x18] sm:$0xff] %v4295
                %v4297 = vld [vmem:[%s4245 + $0x48] sm:$0xff]
                %4298 = vst [vmem:[%s4246 + $0x48] sm:$0xff] %v4297
                %v4299 = vld [vmem:[%s4245 + $0x78] sm:$0xff]
                %4300 = vst [vmem:[%s4246 + $0x78] sm:$0xff] %v4299
                %v4301 = vld [vmem:[%s4245 + $0xa8] sm:$0xff]
                %4302 = vst [vmem:[%s4246 + $0xa8] sm:$0xff] %v4301
                %v4303 = vld [vmem:[%s4245 + $0xd8] sm:$0xff]
                %4304 = vst [vmem:[%s4246 + $0xd8] sm:$0xff] %v4303
                %v4305 = vld [vmem:[%s4245 + $0x108] sm:$0xff]
                %4306 = vst [vmem:[%s4246 + $0x108] sm:$0xff] %v4305
                %v4307 = vld [vmem:[%s4245 + $0x138] sm:$0xff]
                %4308 = vst [vmem:[%s4246 + $0x138] sm:$0xff] %v4307
                %v4309 = vld [vmem:[%s4245 + $0x168] sm:$0xff]
                %4310 = vst [vmem:[%s4246 + $0x168] sm:$0xff] %v4309
                %v4311 = vld [vmem:[%s4245 + $0x20] sm:$0xff]
                %4312 = vst [vmem:[%s4246 + $0x20] sm:$0xff] %v4311
                %v4313 = vld [vmem:[%s4245 + $0x50] sm:$0xff]
                %4314 = vst [vmem:[%s4246 + $0x50] sm:$0xff] %v4313
                %v4315 = vld [vmem:[%s4245 + $0x80] sm:$0xff]
                %4316 = vst [vmem:[%s4246 + $0x80] sm:$0xff] %v4315
                %v4317 = vld [vmem:[%s4245 + $0xb0] sm:$0xff]
                %4318 = vst [vmem:[%s4246 + $0xb0] sm:$0xff] %v4317
                %v4319 = vld [vmem:[%s4245 + $0xe0] sm:$0xff]
                %4320 = vst [vmem:[%s4246 + $0xe0] sm:$0xff] %v4319
                %v4321 = vld [vmem:[%s4245 + $0x110] sm:$0xff]
                %4322 = vst [vmem:[%s4246 + $0x110] sm:$0xff] %v4321
                %v4323 = vld [vmem:[%s4245 + $0x140] sm:$0xff]
                %4324 = vst [vmem:[%s4246 + $0x140] sm:$0xff] %v4323
                %v4325 = vld [vmem:[%s4245 + $0x170] sm:$0xff]
                %4326 = vst [vmem:[%s4246 + $0x170] sm:$0xff] %v4325
                %v4327 = vld [vmem:[%s4245 + $0x28] sm:$0xff]
                %4328 = vst [vmem:[%s4246 + $0x28] sm:$0xff] %v4327
                %v4329 = vld [vmem:[%s4245 + $0x58] sm:$0xff]
                %4330 = vst [vmem:[%s4246 + $0x58] sm:$0xff] %v4329
                %v4331 = vld [vmem:[%s4245 + $0x88] sm:$0xff]
                %4332 = vst [vmem:[%s4246 + $0x88] sm:$0xff] %v4331
                %v4333 = vld [vmem:[%s4245 + $0xb8] sm:$0xff]
                %4334 = vst [vmem:[%s4246 + $0xb8] sm:$0xff] %v4333
                %v4335 = vld [vmem:[%s4245 + $0xe8] sm:$0xff]
                %4336 = vst [vmem:[%s4246 + $0xe8] sm:$0xff] %v4335
                %v4337 = vld [vmem:[%s4245 + $0x118] sm:$0xff]
                %4338 = vst [vmem:[%s4246 + $0x118] sm:$0xff] %v4337
                %v4339 = vld [vmem:[%s4245 + $0x148] sm:$0xff]
                %4340 = vst [vmem:[%s4246 + $0x148] sm:$0xff] %v4339
                %v4341 = vld [vmem:[%s4245 + $0x178] sm:$0xff]
                %4342 = vst [vmem:[%s4246 + $0x178] sm:$0xff] %v4341
                %s4343 = sadd.s32 1, %s4244
                %p4344 = scmp.ge.s32.totalorder %s4343, %s4237
                %s4345 = scalar_select %p4344, 0, %s4343
                %s4346 = smul.u32 %s4345, 384
                %s4347 = smul.u32 %s4345, 384
                %s4348 = scalar_lea.vmem %s4213, %s4346 [#allocation4]
                %s4349 = scalar_lea.vmem %s4231, %s4347
              $region107: #{image_set_question_attention.1} parent=101 // loop_footer
                %s4241 = sadd.s32 %s4239, 1
              $region108: #{image_set_question_attention.1} parent=101 // loop_footer_branch
                %4238 = sbr.rel target = $region104
              $region109: #{image_set_question_attention.1} parent=101 // loop_exit
                _
              %s4350 = sshrl.u32 %s4223, 3
              %s4351 = sand.u32 %s4223, 7
              %s4352 = smul.u32 %s4350, 8
              %s4353 = smul.u32 48, %s4352
              %s4354 = scalar_lea.vmem %s4213, %s4353 [#allocation4]
              %s4355 = smul.u32 48, %s4352
              %s4356 = scalar_lea.vmem %s4231, %s4355
              // While loop
              $region110: #{image_set_question_attention.1} parent=101 // loop_pre_header
                _
              $region111: #{image_set_question_attention.1} parent=101 // loop_header
                %s4358 = sphi 0, %s4360
                %p4359 = scmp.ge.s32.totalorder %s4358, %s4351
                %s4363 = sphi 0, %s4380
                %s4364 = sphi %s4354, %s4383
                %s4365 = sphi %s4356, %s4384
              $region112: #{image_set_question_attention.1} parent=101 // loop_header_branch
                %4362 = sbr.rel (%p4359) target = $region116
              $region113: #{image_set_question_attention.1} parent=101 // loop_body
                %v4366 = vld [vmem:[%s4364] sm:$0xff]
                %4367 = vst [vmem:[%s4365] sm:$0xff] %v4366
                %v4368 = vld [vmem:[%s4364 + $0x8] sm:$0xff]
                %4369 = vst [vmem:[%s4365 + $0x8] sm:$0xff] %v4368
                %v4370 = vld [vmem:[%s4364 + $0x10] sm:$0xff]
                %4371 = vst [vmem:[%s4365 + $0x10] sm:$0xff] %v4370
                %v4372 = vld [vmem:[%s4364 + $0x18] sm:$0xff]
                %4373 = vst [vmem:[%s4365 + $0x18] sm:$0xff] %v4372
                %v4374 = vld [vmem:[%s4364 + $0x20] sm:$0xff]
                %4375 = vst [vmem:[%s4365 + $0x20] sm:$0xff] %v4374
                %v4376 = vld [vmem:[%s4364 + $0x28] sm:$0xff]
                %4377 = vst [vmem:[%s4365 + $0x28] sm:$0xff] %v4376
                %s4378 = sadd.s32 1, %s4363
                %p4379 = scmp.ge.s32.totalorder %s4378, %s4351
                %s4380 = scalar_select %p4379, 0, %s4378
                %s4381 = smul.u32 %s4380, 48
                %s4382 = smul.u32 %s4380, 48
                %s4383 = scalar_lea.vmem %s4354, %s4381 [#allocation4]
                %s4384 = scalar_lea.vmem %s4356, %s4382
              $region114: #{image_set_question_attention.1} parent=101 // loop_footer
                %s4360 = sadd.s32 %s4358, 1
              $region115: #{image_set_question_attention.1} parent=101 // loop_footer_branch
                %4357 = sbr.rel target = $region111
              $region116: #{image_set_question_attention.1} parent=101 // loop_exit
                _
            $region102: #{image_set_question_attention.1} parent=97 // pred_fallthru
              _
            // Predicated region
            $region117: #{image_set_question_attention.1} parent=97 // pred_check
              _
            $region118: #{image_set_question_attention.1} parent=97 // pred_check_branch
              %4386 = sbr.rel target = $region120
            $region119: #{image_set_question_attention.1} parent=97 // pred_region
              _
            $region120: #{image_set_question_attention.1} parent=97 // pred_fallthru
              _
          $region98: #{image_set_question_attention.1} parent=93 // pred_fallthru
            _
          %4387 = vnop
        $region94: #{image_set_question_attention.1} parent=77 // pred_fallthru
          _
      $region78: #{image_set_question_attention.1} parent=5 // pred_fallthru
        _
      %p4388 = scmp.le.s32.totalorder 2, %s16
      // Predicated region
      $region121: #{image_set_question_attention.1} parent=5 // pred_check
        %p4389 = pneg %p4388
      $region122: #{image_set_question_attention.1} parent=5 // pred_check_branch
        %4391 = sbr.rel (%p4389) target = $region124
      $region123: #{image_set_question_attention.1} parent=5 // pred_region
        %s4392 = ssub.s32 %s16, 2
        // Predicated region
        $region125: #{image_set_question_attention.1} parent=123 // pred_check
          %p4393 = pneg %p242
        $region126: #{image_set_question_attention.1} parent=123 // pred_check_branch
          %4395 = sbr.rel (%p4393) target = $region128
        $region127: #{image_set_question_attention.1} parent=123 // pred_region
          %p4396 = scmp.lt.s32.totalorder %s27, 1
          %s4397 = scalar_select %p4396, %s27, 1
          %s4398 = smul.addr %s4397, 4
          %s4399 = scalar_lea.vmem %s8, %s4398
        $region128: #{image_set_question_attention.1} parent=123 // pred_fallthru
          _
        // Predicated region
        $region129: #{image_set_question_attention.1} parent=123 // pred_check
          %p4400 = pneg %p270
        $region130: #{image_set_question_attention.1} parent=123 // pred_check_branch
          %4402 = sbr.rel (%p4400) target = $region132
        $region131: #{image_set_question_attention.1} parent=123 // pred_region
          %s4403 = sand.u32 %s255, 1
          %s4404 = sand.u32 %s255, 1
          %s4405 = smul.addr %s4404, 384
          %s4406 = scalar_lea.vmem [#allocation4], %s4405
        $region132: #{image_set_question_attention.1} parent=123 // pred_fallthru
          _
      $region124: #{image_set_question_attention.1} parent=5 // pred_fallthru
        _
    $region6: #{image_set_question_attention.1} parent=1 // loop_footer
      %s20 = sadd.s32 1, %s16
    $region7: #{image_set_question_attention.1} parent=1 // loop_footer_branch
      %15 = sbr.rel target = $region3
    $region8: #{image_set_question_attention.1} parent=1 // loop_exit
      _

</llo_original>
